<compile_context>
chip_gen: v5e
topology: v5e:2x2
jax: 0.10.0
libtpu: 0.0.40
codegen_flags: <defaults>
</compile_context>

<pallas_src>
import math
from functools import partial

import jax
import jax.numpy as jnp
from jax.experimental import pallas as pl
from jax.experimental.pallas import tpu as pltpu


# ----------------------------------------------------------------------------
# In-kernel multi-head self-attention.
#   x_     : (Np, C)   tokens (already conv+LayerNorm'd on the SR path)
#   w_qkv  : (C, 3C)   columns ordered per head as [q(hd) k(hd) v(hd)],
#                      softmax scale already folded into the q columns
# returns (Np, C)
# ----------------------------------------------------------------------------
def _mhsa(x_, w_qkv, *, num_heads):
    n_tok, C = x_.shape
    hd = C // num_heads
    f32 = jnp.float32

    # Single lane-dense QKV projection: (Np, C) @ (C, 3C) -> (Np, 96).
    qkv = jnp.dot(x_, w_qkv, preferred_element_type=f32)

    # Head split: 8 lane slices (width 3*hd) stacked along a new leading dim.
    per_head = jnp.stack(
        [qkv[:, h * 3 * hd:(h + 1) * 3 * hd] for h in range(num_heads)],
        axis=0)                                               # (H, Np, 3*hd)
    q = per_head[:, :, 0:hd]                                  # (H, Np, hd)
    k = per_head[:, :, hd:2 * hd]                             # (H, Np, hd)
    v = per_head[:, :, 2 * hd:3 * hd]                         # (H, Np, hd)

    # Scores per head (scale already in q); q @ k^T without any transpose.
    s = jax.lax.dot_general(q, k, (((2,), (2,)), ((0,), (0,))),
                            preferred_element_type=f32)       # (H, Np, Np)
    s = s - jnp.max(s, axis=-1, keepdims=True)
    e = jnp.exp(s)

    # Deferred softmax normalization: matmul the unnormalized exponentials,
    # then rescale the small (H, Np, hd) output (exact division, no approx).
    o = jax.lax.dot_general(e, v, (((2,), (1,)), ((0,), (0,))),
                            preferred_element_type=f32)       # (H, Np, hd)
    o = o / jnp.sum(e, axis=-1, keepdims=True)

    # Merge heads back along channels: == (attn @ v).transpose(1,2).reshape(..,C)
    return jnp.concatenate([o[h] for h in range(num_heads)], axis=-1)  # (Np, C)


# ----------------------------------------------------------------------------
# Fused kernel: SR conv (as patch matmul) + bias + LayerNorm + QKV + attention
# ----------------------------------------------------------------------------
def _sr_attn_kernel(patches_ref, w_sr_ref, ln_ref, w_qkv_ref, out_ref,
                    *, num_heads, eps):
    p = patches_ref[0]                                                  # (Np, P)
    y = jnp.dot(p, w_sr_ref[...], preferred_element_type=jnp.float32)   # (Np, C)
    ln = ln_ref[...]                                                    # (3, C)
    y = y + ln[0:1, :]                                                  # conv bias
    mu = jnp.mean(y, axis=-1, keepdims=True)
    d = y - mu
    var = jnp.mean(d * d, axis=-1, keepdims=True)                       # two-pass, like torch LN
    x_ = d * jax.lax.rsqrt(var + eps) * ln[1:2, :] + ln[2:3, :]
    out_ref[0] = _mhsa(x_, w_qkv_ref[...], num_heads=num_heads).astype(out_ref.dtype)


def sr_attn_pallas(patches, w_sr, ln, w_qkv, *, num_heads, eps=1e-5):
    B, Np, P = patches.shape
    C = w_sr.shape[1]
    return pl.pallas_call(
        partial(_sr_attn_kernel, num_heads=num_heads, eps=eps),
        out_shape=jax.ShapeDtypeStruct((B, Np, C), jnp.float32),
        grid=(B,),
        in_specs=[
            pl.BlockSpec((1, Np, P), lambda b: (b, 0, 0)),
            pl.BlockSpec((P, C), lambda b: (0, 0)),
            pl.BlockSpec((3, C), lambda b: (0, 0)),
            pl.BlockSpec((C, 3 * C), lambda b: (0, 0)),
        ],
        out_specs=pl.BlockSpec((1, Np, C), lambda b: (b, 0, 0)),
        compiler_params=pltpu.CompilerParams(dimension_semantics=("parallel",)),
    )(patches, w_sr, ln, w_qkv)


# ----------------------------------------------------------------------------
# Attention-only kernel (stage not in {1,2,3}): QKV + attention on raw tokens
# ----------------------------------------------------------------------------
def _attn_only_kernel(x_ref, w_qkv_ref, out_ref, *, num_heads):
    out_ref[0] = _mhsa(x_ref[0], w_qkv_ref[...],
                       num_heads=num_heads).astype(out_ref.dtype)


def attn_pallas(x, w_qkv, *, num_heads):
    B, Np, C = x.shape
    return pl.pallas_call(
        partial(_attn_only_kernel, num_heads=num_heads),
        out_shape=jax.ShapeDtypeStruct((B, Np, C), jnp.float32),
        grid=(B,),
        in_specs=[
            pl.BlockSpec((1, Np, C), lambda b: (b, 0, 0)),
            pl.BlockSpec((C, 3 * C), lambda b: (0, 0)),
        ],
        out_specs=pl.BlockSpec((1, Np, C), lambda b: (b, 0, 0)),
        compiler_params=pltpu.CompilerParams(dimension_semantics=("parallel",)),
    )(x, w_qkv)


# ----------------------------------------------------------------------------
# JAX glue (trace-time weight / patch prep; no hot-path compute here)
# ----------------------------------------------------------------------------
def extract_patches(x, H, W, sr):
    """(B, N, C) tokens -> (B, N', sr*sr*C) non-overlapping patches, (kh,kw,ci) order."""
    B, N, C = x.shape
    x_hw = x.reshape(B, H, W, C)
    x_p = x_hw.reshape(B, H // sr, sr, W // sr, sr, C)
    x_p = jnp.transpose(x_p, (0, 1, 3, 2, 4, 5))        # (B, H', W', kh, kw, C)
    return x_p.reshape(B, (H // sr) * (W // sr), sr * sr * C)


def prep_qkv_weight(w_qkv, num_heads, scale):
    """PyTorch Linear weight (3C, C) -> (C, 3C) with head-major column blocks
    [q_h(hd) k_h(hd) v_h(hd)] and the softmax scale folded into the q columns."""
    three_c, C = w_qkv.shape
    hd = C // num_heads
    w = w_qkv.T.reshape(C, 3, num_heads, hd)             # (C, 3, H, hd); y = x @ W.T
    w = w.at[:, 0].multiply(scale)                        # fold scale into q
    w = jnp.transpose(w, (0, 2, 1, 3))                    # (C, H, 3, hd)
    return w.reshape(C, 3 * C)


def multi_head_self_attention(x, H, W, stage, params, *, num_heads, sr_ratio):
    """Mirrors MultiHeadSelfAttention.forward(x, H, W, stage). attn_drop p=0 -> identity."""
    B, N, C = x.shape
    assert N == H * W, "input feature has wrong size"
    head_dim = C // num_heads
    scale = head_dim ** (-0.5)
    w_qkv2d = prep_qkv_weight(params["w_qkv"], num_heads, scale)

    if stage in (1, 2, 3):
        # TODO(synk): at production PVT sizes, fold the patch extraction into the
        # kernel's index_map and kv-tile the softmax (VMEM) instead of wrapper-side prep.
        patches = extract_patches(x, H, W, sr_ratio)
        # conv weight (C_out, C_in, kh, kw) -> (kh*kw*C_in, C_out) matching patch order
        w_sr = jnp.transpose(params["w_conv"], (2, 3, 1, 0)).reshape(-1, C)
        ln = jnp.stack([params["b_conv"], params["ln_gamma"], params["ln_beta"]],
                       axis=0)                            # (3, C): bias / gamma / beta
        return sr_attn_pallas(patches, w_sr, ln, w_qkv2d, num_heads=num_heads)
    else:
        return attn_pallas(x, w_qkv2d, num_heads=num_heads)


# ----------------------------------------------------------------------------
# Pure-JAX reference (mirrors the PyTorch ops directly) for validation
# ----------------------------------------------------------------------------
def reference_forward(x, H, W, stage, params, *, num_heads, sr_ratio):
    B, N, C = x.shape
    head_dim = C // num_heads
    scale = head_dim ** (-0.5)
    hi = jax.lax.Precision.HIGHEST
    if stage in (1, 2, 3):
        x_nchw = jnp.transpose(x, (0, 2, 1)).reshape(B, C, H, W)
        y = jax.lax.conv_general_dilated(
            x_nchw, params["w_conv"], window_strides=(sr_ratio, sr_ratio),
            padding="VALID", dimension_numbers=("NCHW", "OIHW", "NCHW"),
            precision=hi)
        y = y + params["b_conv"][None, :, None, None]
        x_ = jnp.transpose(y.reshape(B, C, -1), (0, 2, 1))
        mean = x_.mean(-1, keepdims=True)
        var = ((x_ - mean) ** 2).mean(-1, keepdims=True)
        x_ = (x_ - mean) / jnp.sqrt(var + 1e-5) * params["ln_gamma"] + params["ln_beta"]
    else:
        x_ = x
    Np = x_.shape[1]
    qkv = jnp.einsum("bnc,kc->bnk", x_, params["w_qkv"], precision=hi)
    qkv = qkv.reshape(B, Np, 3, num_heads, head_dim).transpose(2, 0, 3, 1, 4)
    q, k, v = qkv[0], qkv[1], qkv[2]
    attn = jnp.einsum("bhnd,bhmd->bhnm", q, k, precision=hi) * scale
    attn = jax.nn.softmax(attn, axis=-1)
    out = jnp.einsum("bhnm,bhmd->bhnd", attn, v, precision=hi)
    return out.transpose(0, 2, 1, 3).reshape(B, Np, C)


# ----------------------------------------------------------------------------
# Main
# ----------------------------------------------------------------------------
if __name__ == "__main__":
    # module config: dim=32, num_heads=8, qkv_bias=False, sr_ratio=2
    B, H, W = 2, 16, 16
    dim, num_heads, sr_ratio = 32, 8, 2
    N = H * W

    key = jax.random.PRNGKey(0)
    kx, kqkv, kconv = jax.random.split(key, 3)

    x = jax.random.normal(kx, (B, N, dim), dtype=jnp.float32)

    # deterministic parameter init mirroring _init_weights
    fan_out = sr_ratio * sr_ratio * dim
    params = {
        # nn.Linear(dim, 3*dim, bias=False): trunc_normal std=0.02
        "w_qkv": 0.02 * jax.random.truncated_normal(
            kqkv, -2.0, 2.0, (3 * dim, dim), dtype=jnp.float32),
        # nn.Conv2d(dim, dim, kernel=sr, stride=sr): normal(0, sqrt(2/fan_out)), bias=0
        "w_conv": math.sqrt(2.0 / fan_out) * jax.random.normal(
            kconv, (dim, dim, sr_ratio, sr_ratio), dtype=jnp.float32),
        "b_conv": jnp.zeros((dim,), jnp.float32),
        # nn.LayerNorm(dim): weight=1, bias=0
        "ln_gamma": jnp.ones((dim,), jnp.float32),
        "ln_beta": jnp.zeros((dim,), jnp.float32),
    }

    # All math is exact f32 now (no approx reciprocal, two-pass LN variance),
    # so tolerances are ~20x tighter than the previous version; typical max
    # abs deviation vs the HIGHEST-precision reference is ~1e-6.
    RTOL, ATOL = 1e-3, 1e-4

    # stage 1/2/3 path (fused SR conv + LayerNorm + attention, N' = N / sr^2 tokens)
    out1 = multi_head_self_attention(x, H, W, 1, params,
                                     num_heads=num_heads, sr_ratio=sr_ratio)
    out1 = jax.block_until_ready(out1)
    ref1 = reference_forward(x, H, W, 1, params,
                             num_heads=num_heads, sr_ratio=sr_ratio)
    assert out1.shape == (B, N // (sr_ratio * sr_ratio), dim)
    assert jnp.allclose(out1, ref1, rtol=RTOL, atol=ATOL), "stage-1 mismatch"

    # stage != 1,2,3 path (attention directly on x)
    out4 = multi_head_self_attention(x, H, W, 4, params,
                                     num_heads=num_heads, sr_ratio=sr_ratio)
    out4 = jax.block_until_ready(out4)
    ref4 = reference_forward(x, H, W, 4, params,
                             num_heads=num_heads, sr_ratio=sr_ratio)
    assert out4.shape == (B, N, dim)
    assert jnp.allclose(out4, ref4, rtol=RTOL, atol=ATOL), "stage-4 mismatch"

    print("KERNEL_OK")
</pallas_src>

<mosaic_0001>
module attributes {stable_mosaic.version = 11 : i64} {
  func.func @_sr_attn_kernel(%arg0: i32, %arg1: memref<1x64x128xf32, #tpu.memory_space<vmem>>, %arg2: memref<128x32xf32, #tpu.memory_space<vmem>>, %arg3: memref<3x32xf32, #tpu.memory_space<vmem>>, %arg4: memref<32x96xf32, #tpu.memory_space<vmem>>, %arg5: memref<1x64x32xf32, #tpu.memory_space<vmem>>) attributes {dimension_semantics = [#tpu.dimension_semantics<parallel>], iteration_bounds = array<i64: 2>, scalar_prefetch = 0 : i64, scratch_operands = 0 : i64, tpu.core_type = #tpu.core_type<tc>, window_params = [{transform_indices = @transform_0, window_bounds = array<i64: 1, 64, 128>}, {pipeline_mode = #tpu.pipeline_mode<synchronous>, transform_indices = @transform_1, window_bounds = array<i64: 128, 32>}, {pipeline_mode = #tpu.pipeline_mode<synchronous>, transform_indices = @transform_2, window_bounds = array<i64: 3, 32>}, {pipeline_mode = #tpu.pipeline_mode<synchronous>, transform_indices = @transform_3, window_bounds = array<i64: 32, 96>}, {transform_indices = @transform_4, window_bounds = array<i64: 1, 64, 32>}]} {
    %c0 = arith.constant 0 : index
    %c0_0 = arith.constant 0 : index
    %c0_1 = arith.constant 0 : index
    %0 = vector.load %arg1[%c0, %c0_0, %c0_1] : memref<1x64x128xf32, #tpu.memory_space<vmem>>, vector<1x64x128xf32>
    %1 = vector.shape_cast %0 : vector<1x64x128xf32> to vector<64x128xf32>
    %c0_2 = arith.constant 0 : index
    %c0_3 = arith.constant 0 : index
    %2 = vector.load %arg2[%c0_2, %c0_3] : memref<128x32xf32, #tpu.memory_space<vmem>>, vector<128x32xf32>
    %cst = arith.constant dense<0.000000e+00> : vector<64x32xf32>
    %3 = tpu.matmul %1, %2, %cst {dimension_numbers = #tpu.dot_dimension_numbers<[1], [0], [0], [1], [0, 0, 1, 1], [], []>} : vector<64x128xf32>, vector<128x32xf32>, vector<64x32xf32> -> vector<64x32xf32>
    %c0_4 = arith.constant 0 : index
    %c0_5 = arith.constant 0 : index
    %4 = vector.load %arg3[%c0_4, %c0_5] : memref<3x32xf32, #tpu.memory_space<vmem>>, vector<3x32xf32>
    %5 = vector.extract_strided_slice %4 {offsets = [0, 0], sizes = [1, 32], strides = [1, 1]} : vector<3x32xf32> to vector<1x32xf32>
    %6 = vector.broadcast %5 : vector<1x32xf32> to vector<64x32xf32>
    %7 = arith.addf %3, %6 : vector<64x32xf32>
    %cst_6 = arith.constant dense<0.000000e+00> : vector<64xf32>
    %8 = vector.multi_reduction <add>, %7, %cst_6 [1] : vector<64x32xf32> to vector<64xf32>
    %9 = vector.shape_cast %8 : vector<64xf32> to vector<64x1xf32>
    %cst_7 = arith.constant 3.200000e+01 : f32
    %10 = vector.broadcast %cst_7 : f32 to vector<64x1xf32>
    %11 = arith.divf %9, %10 : vector<64x1xf32>
    %12 = vector.broadcast %11 : vector<64x1xf32> to vector<64x32xf32>
    %13 = arith.subf %7, %12 : vector<64x32xf32>
    %14 = arith.mulf %13, %13 : vector<64x32xf32>
    %cst_8 = arith.constant dense<0.000000e+00> : vector<64xf32>
    %15 = vector.multi_reduction <add>, %14, %cst_8 [1] : vector<64x32xf32> to vector<64xf32>
    %16 = vector.shape_cast %15 : vector<64xf32> to vector<64x1xf32>
    %cst_9 = arith.constant 3.200000e+01 : f32
    %17 = vector.broadcast %cst_9 : f32 to vector<64x1xf32>
    %18 = arith.divf %16, %17 : vector<64x1xf32>
    %cst_10 = arith.constant 9.99999974E-6 : f32
    %19 = vector.broadcast %cst_10 : f32 to vector<64x1xf32>
    %20 = arith.addf %18, %19 : vector<64x1xf32>
    %21 = math.rsqrt %20 : vector<64x1xf32>
    %22 = vector.broadcast %21 : vector<64x1xf32> to vector<64x32xf32>
    %23 = arith.mulf %13, %22 : vector<64x32xf32>
    %24 = vector.extract_strided_slice %4 {offsets = [1, 0], sizes = [1, 32], strides = [1, 1]} : vector<3x32xf32> to vector<1x32xf32>
    %25 = vector.broadcast %24 : vector<1x32xf32> to vector<64x32xf32>
    %26 = arith.mulf %23, %25 : vector<64x32xf32>
    %27 = vector.extract_strided_slice %4 {offsets = [2, 0], sizes = [1, 32], strides = [1, 1]} : vector<3x32xf32> to vector<1x32xf32>
    %28 = vector.broadcast %27 : vector<1x32xf32> to vector<64x32xf32>
    %29 = arith.addf %26, %28 : vector<64x32xf32>
    %c0_11 = arith.constant 0 : index
    %c0_12 = arith.constant 0 : index
    %30 = vector.load %arg4[%c0_11, %c0_12] : memref<32x96xf32, #tpu.memory_space<vmem>>, vector<32x96xf32>
    %cst_13 = arith.constant dense<0.000000e+00> : vector<64x96xf32>
    %31 = tpu.matmul %29, %30, %cst_13 {dimension_numbers = #tpu.dot_dimension_numbers<[1], [0], [0], [1], [0, 0, 1, 1], [], []>} : vector<64x32xf32>, vector<32x96xf32>, vector<64x96xf32> -> vector<64x96xf32>
    %32 = vector.extract_strided_slice %31 {offsets = [0, 0], sizes = [64, 12], strides = [1, 1]} : vector<64x96xf32> to vector<64x12xf32>
    %33 = vector.extract_strided_slice %31 {offsets = [0, 12], sizes = [64, 12], strides = [1, 1]} : vector<64x96xf32> to vector<64x12xf32>
    %34 = vector.extract_strided_slice %31 {offsets = [0, 24], sizes = [64, 12], strides = [1, 1]} : vector<64x96xf32> to vector<64x12xf32>
    %35 = vector.extract_strided_slice %31 {offsets = [0, 36], sizes = [64, 12], strides = [1, 1]} : vector<64x96xf32> to vector<64x12xf32>
    %36 = vector.extract_strided_slice %31 {offsets = [0, 48], sizes = [64, 12], strides = [1, 1]} : vector<64x96xf32> to vector<64x12xf32>
    %37 = vector.extract_strided_slice %31 {offsets = [0, 60], sizes = [64, 12], strides = [1, 1]} : vector<64x96xf32> to vector<64x12xf32>
    %38 = vector.extract_strided_slice %31 {offsets = [0, 72], sizes = [64, 12], strides = [1, 1]} : vector<64x96xf32> to vector<64x12xf32>
    %39 = vector.extract_strided_slice %31 {offsets = [0, 84], sizes = [64, 12], strides = [1, 1]} : vector<64x96xf32> to vector<64x12xf32>
    %40 = vector.shape_cast %32 : vector<64x12xf32> to vector<1x64x12xf32>
    %41 = vector.shape_cast %33 : vector<64x12xf32> to vector<1x64x12xf32>
    %42 = vector.shape_cast %34 : vector<64x12xf32> to vector<1x64x12xf32>
    %43 = vector.shape_cast %35 : vector<64x12xf32> to vector<1x64x12xf32>
    %44 = vector.shape_cast %36 : vector<64x12xf32> to vector<1x64x12xf32>
    %45 = vector.shape_cast %37 : vector<64x12xf32> to vector<1x64x12xf32>
    %46 = vector.shape_cast %38 : vector<64x12xf32> to vector<1x64x12xf32>
    %47 = vector.shape_cast %39 : vector<64x12xf32> to vector<1x64x12xf32>
    %48 = tpu.concatenate %40, %41, %42, %43, %44, %45, %46, %47 in 0 : vector<1x64x12xf32>, vector<1x64x12xf32>, vector<1x64x12xf32>, vector<1x64x12xf32>, vector<1x64x12xf32>, vector<1x64x12xf32>, vector<1x64x12xf32>, vector<1x64x12xf32> -> vector<8x64x12xf32>
    %49 = vector.extract_strided_slice %48 {offsets = [0, 0, 0], sizes = [8, 64, 4], strides = [1, 1, 1]} : vector<8x64x12xf32> to vector<8x64x4xf32>
    %50 = vector.extract_strided_slice %48 {offsets = [0, 0, 4], sizes = [8, 64, 4], strides = [1, 1, 1]} : vector<8x64x12xf32> to vector<8x64x4xf32>
    %51 = vector.extract_strided_slice %48 {offsets = [0, 0, 8], sizes = [8, 64, 4], strides = [1, 1, 1]} : vector<8x64x12xf32> to vector<8x64x4xf32>
    %cst_14 = arith.constant dense<0.000000e+00> : vector<8x64x64xf32>
    %52 = tpu.matmul %49, %50, %cst_14 {dimension_numbers = #tpu.dot_dimension_numbers<[2], [2], [1], [1], [0, 0, 0, 1, 1, 1], [0], [0]>} : vector<8x64x4xf32>, vector<8x64x4xf32>, vector<8x64x64xf32> -> vector<8x64x64xf32>
    %cst_15 = arith.constant dense<0xFF800000> : vector<8x64xf32>
    %53 = vector.multi_reduction <maximumf>, %52, %cst_15 [2] : vector<8x64x64xf32> to vector<8x64xf32>
    %54 = vector.shape_cast %53 : vector<8x64xf32> to vector<8x64x1xf32>
    %55 = vector.broadcast %54 : vector<8x64x1xf32> to vector<8x64x64xf32>
    %56 = arith.subf %52, %55 : vector<8x64x64xf32>
    %57 = math.exp %56 : vector<8x64x64xf32>
    %cst_16 = arith.constant dense<0.000000e+00> : vector<8x64x4xf32>
    %58 = tpu.matmul %57, %51, %cst_16 {dimension_numbers = #tpu.dot_dimension_numbers<[2], [1], [1], [2], [0, 0, 0, 1, 1, 2], [0], [0]>} : vector<8x64x64xf32>, vector<8x64x4xf32>, vector<8x64x4xf32> -> vector<8x64x4xf32>
    %cst_17 = arith.constant dense<0.000000e+00> : vector<8x64xf32>
    %59 = vector.multi_reduction <add>, %57, %cst_17 [2] : vector<8x64x64xf32> to vector<8x64xf32>
    %60 = vector.shape_cast %59 : vector<8x64xf32> to vector<8x64x1xf32>
    %61 = vector.broadcast %60 : vector<8x64x1xf32> to vector<8x64x4xf32>
    %62 = arith.divf %58, %61 : vector<8x64x4xf32>
    %63 = vector.extract_strided_slice %62 {offsets = [0, 0, 0], sizes = [1, 64, 4], strides = [1, 1, 1]} : vector<8x64x4xf32> to vector<1x64x4xf32>
    %64 = vector.shape_cast %63 : vector<1x64x4xf32> to vector<64x4xf32>
    %65 = vector.extract_strided_slice %62 {offsets = [1, 0, 0], sizes = [1, 64, 4], strides = [1, 1, 1]} : vector<8x64x4xf32> to vector<1x64x4xf32>
    %66 = vector.shape_cast %65 : vector<1x64x4xf32> to vector<64x4xf32>
    %67 = vector.extract_strided_slice %62 {offsets = [2, 0, 0], sizes = [1, 64, 4], strides = [1, 1, 1]} : vector<8x64x4xf32> to vector<1x64x4xf32>
    %68 = vector.shape_cast %67 : vector<1x64x4xf32> to vector<64x4xf32>
    %69 = vector.extract_strided_slice %62 {offsets = [3, 0, 0], sizes = [1, 64, 4], strides = [1, 1, 1]} : vector<8x64x4xf32> to vector<1x64x4xf32>
    %70 = vector.shape_cast %69 : vector<1x64x4xf32> to vector<64x4xf32>
    %71 = vector.extract_strided_slice %62 {offsets = [4, 0, 0], sizes = [1, 64, 4], strides = [1, 1, 1]} : vector<8x64x4xf32> to vector<1x64x4xf32>
    %72 = vector.shape_cast %71 : vector<1x64x4xf32> to vector<64x4xf32>
    %73 = vector.extract_strided_slice %62 {offsets = [5, 0, 0], sizes = [1, 64, 4], strides = [1, 1, 1]} : vector<8x64x4xf32> to vector<1x64x4xf32>
    %74 = vector.shape_cast %73 : vector<1x64x4xf32> to vector<64x4xf32>
    %75 = vector.extract_strided_slice %62 {offsets = [6, 0, 0], sizes = [1, 64, 4], strides = [1, 1, 1]} : vector<8x64x4xf32> to vector<1x64x4xf32>
    %76 = vector.shape_cast %75 : vector<1x64x4xf32> to vector<64x4xf32>
    %77 = vector.extract_strided_slice %62 {offsets = [7, 0, 0], sizes = [1, 64, 4], strides = [1, 1, 1]} : vector<8x64x4xf32> to vector<1x64x4xf32>
    %78 = vector.shape_cast %77 : vector<1x64x4xf32> to vector<64x4xf32>
    %79 = tpu.concatenate %64, %66, %68, %70, %72, %74, %76, %78 in 1 : vector<64x4xf32>, vector<64x4xf32>, vector<64x4xf32>, vector<64x4xf32>, vector<64x4xf32>, vector<64x4xf32>, vector<64x4xf32>, vector<64x4xf32> -> vector<64x32xf32>
    %c0_18 = arith.constant 0 : index
    %c0_19 = arith.constant 0 : index
    %c0_20 = arith.constant 0 : index
    %80 = vector.load %arg5[%c0_18, %c0_19, %c0_20] : memref<1x64x32xf32, #tpu.memory_space<vmem>>, vector<1x64x32xf32>
    %81 = vector.shape_cast %80 : vector<1x64x32xf32> to vector<64x32xf32>
    %82 = vector.shape_cast %79 : vector<64x32xf32> to vector<1x64x32xf32>
    tpu.vector_store %arg5[%c0_18, %c0_19, %c0_20], %82 {strides = array<i32>} : memref<1x64x32xf32, #tpu.memory_space<vmem>>, vector<1x64x32xf32>,
    return
  }
  func.func @transform_0(%arg0: i32) -> (i32, i32, i32) {
    %c0_i32 = arith.constant 0 : i32
    %c0_i32_0 = arith.constant 0 : i32
    %c0_i32_1 = arith.constant 0 : i32
    return %arg0, %c0_i32, %c0_i32_0 : i32, i32, i32
  }
  func.func @transform_1(%arg0: i32) -> (i32, i32) {
    %c0_i32 = arith.constant 0 : i32
    %c0_i32_0 = arith.constant 0 : i32
    %c0_i32_1 = arith.constant 0 : i32
    return %c0_i32, %c0_i32_0 : i32, i32
  }
  func.func @transform_2(%arg0: i32) -> (i32, i32) {
    %c0_i32 = arith.constant 0 : i32
    %c0_i32_0 = arith.constant 0 : i32
    %c0_i32_1 = arith.constant 0 : i32
    return %c0_i32, %c0_i32_0 : i32, i32
  }
  func.func @transform_3(%arg0: i32) -> (i32, i32) {
    %c0_i32 = arith.constant 0 : i32
    %c0_i32_0 = arith.constant 0 : i32
    %c0_i32_1 = arith.constant 0 : i32
    return %c0_i32, %c0_i32_0 : i32, i32
  }
  func.func @transform_4(%arg0: i32) -> (i32, i32, i32) {
    %c0_i32 = arith.constant 0 : i32
    %c0_i32_0 = arith.constant 0 : i32
    %c0_i32_1 = arith.constant 0 : i32
    return %arg0, %c0_i32, %c0_i32_0 : i32, i32, i32
  }
}

</mosaic_0001>

<llo_original>
// kernel: tpu_custom_call.1
$region0: #{tpu_custom_call.1}
  #allocation0 [shape = 'u32[]', space=smem, size = 0x4, offset = 0x4, fixed_abs, tag = 'smem constant byte address 0x4 - core index']
  #allocation1 [shape = 'u32[72,128]{1,0:T(1,128)}', space=vmem, size = 0x9000, scoped, tag = 'internal scratch']
  %s0 = inlined_call_operand.vmem [shape: f32[2,64,128], index: 0, kind: input, shape index: {}]
  %s1 = inlined_call_operand.vmem [shape: f32[128,32], index: 1, kind: input, shape index: {}]
  %s2 = inlined_call_operand.hbm [shape: f32[3,32], index: 2, kind: input, shape index: {}]
  %s3 = inlined_call_operand.vmem [shape: f32[32,96], index: 3, kind: input, shape index: {}]
  %s4 = inlined_call_operand.vmem [shape: f32[2,64,32], index: 4, kind: output, shape index: {}]
  %s5 = sld [smem:[#allocation0]]
  $region53: #{tpu_custom_call.1} parent=0
    _
  %s7 = ssub.s32 1, %s5
  %s8 = scalar_select 0, %s7, %s5
  $region1: #{tpu_custom_call.1} parent=0
    #allocation2 [shape = 'u8[2048]{0}', space=vmem, size = 0x800, scoped, tag = 'input window, operand 2, single buffered']
    #allocation3 [shape = 's32[2]{0}', space=sflag, size = 0x8, scoped, tag = 'scoped memory for tpu_custom_call.1']
    %9 = vsyncpa [#allocation3], 0
    loop: start=0, step=1, limit=4
    $region2: #{tpu_custom_call.1} parent=1 // loop_pre_header
      _
    $region3: #{tpu_custom_call.1} parent=1 // loop_header
      %s11 = sphi 0, %s15
      %p12 = scmp.ge.s32.totalorder %s11, 4
      %s21 = sphi 0, %s23
      %s24 = sphi 0, %s21
      %s25 = sphi 0, %s24
      %s41 = sphi 0, %s25
      %s45 = sphi 0, %s45
      %s47 = sphi 0, %s45
      %s48 = sphi 0, %s47
      %s62 = sphi 0, %s48
      %s66 = sphi 0, %s66
      %s68 = sphi 0, %s66
      %s69 = sphi 0, %s68
      %s83 = sphi 0, %s69
      %s87 = sphi 0, %s87
      %s89 = sphi 0, %s87
      %s90 = sphi 0, %s89
      %s104 = sphi 0, %s90
      %s110 = sphi 0, %s112
      %s113 = sphi 0, %s110
      %s114 = sphi 0, %s113
      %s130 = sphi 0, %s114
    $region4: #{tpu_custom_call.1} parent=1 // loop_header_branch
      %14 = sbr.rel (%p12) target = $region8
    $region5: #{tpu_custom_call.1} parent=1 // loop_body
      %s16 = ssub.s32 %s11, 1
      %s17 = ssub.s32 %s11, 2
      %s18 = sadd.s32 %s11, 1
      %s19 = ssub.s32 %s11, %s18
      %p20 = scmp.eq.s32.totalorder %s19, 0
      %s22 = sadd.s32 %s21, 1
      %s23 = scalar_select %p20, %s21, %s22
      %p26 = pneg %p20
      %p27 = scmp.eq.s32.totalorder %s11, 1
      %p28 = por %p26, %p27
      %p29 = scmp.ne.s32.totalorder %s21, %s24
      %p30 = scmp.eq.s32.totalorder %s11, 0
      %p31 = por %p29, %p30
      %p32 = scmp.ne.s32.totalorder %s21, %s24
      %p33 = scmp.eq.s32.totalorder %s16, 1
      %p34 = por %p32, %p33
      %p35 = scmp.ne.s32.totalorder %s24, %s25
      %p36 = scmp.eq.s32.totalorder %s16, 0
      %p37 = por %p35, %p36
      %p38 = scmp.ne.s32.totalorder %s24, %s25
      %p39 = scmp.eq.s32.totalorder %s17, 1
      %p40 = por %p38, %p39
      %p42 = scmp.ne.s32.totalorder %s25, %s41
      %p43 = scmp.eq.s32.totalorder %s17, 0
      %p44 = por %p42, %p43
      %s46 = sadd.s32 %s45, 1
      %p49 = scmp.eq.s32.totalorder %s11, 1
      %p50 = scmp.ne.s32.totalorder %s45, %s47
      %p51 = scmp.eq.s32.totalorder %s11, 0
      %p52 = por %p50, %p51
      %p53 = scmp.ne.s32.totalorder %s45, %s47
      %p54 = scmp.eq.s32.totalorder %s16, 1
      %p55 = por %p53, %p54
      %p56 = scmp.ne.s32.totalorder %s47, %s48
      %p57 = scmp.eq.s32.totalorder %s16, 0
      %p58 = por %p56, %p57
      %p59 = scmp.ne.s32.totalorder %s47, %s48
      %p60 = scmp.eq.s32.totalorder %s17, 1
      %p61 = por %p59, %p60
      %p63 = scmp.ne.s32.totalorder %s48, %s62
      %p64 = scmp.eq.s32.totalorder %s17, 0
      %p65 = por %p63, %p64
      %s67 = sadd.s32 %s66, 1
      %p70 = scmp.eq.s32.totalorder %s11, 1
      %p71 = scmp.ne.s32.totalorder %s66, %s68
      %p72 = scmp.eq.s32.totalorder %s11, 0
      %p73 = por %p71, %p72
      %p74 = scmp.ne.s32.totalorder %s66, %s68
      %p75 = scmp.eq.s32.totalorder %s16, 1
      %p76 = por %p74, %p75
      %p77 = scmp.ne.s32.totalorder %s68, %s69
      %p78 = scmp.eq.s32.totalorder %s16, 0
      %p79 = por %p77, %p78
      %p80 = scmp.ne.s32.totalorder %s68, %s69
      %p81 = scmp.eq.s32.totalorder %s17, 1
      %p82 = por %p80, %p81
      %p84 = scmp.ne.s32.totalorder %s69, %s83
      %p85 = scmp.eq.s32.totalorder %s17, 0
      %p86 = por %p84, %p85
      %s88 = sadd.s32 %s87, 1
      %p91 = scmp.eq.s32.totalorder %s11, 1
      %p92 = scmp.ne.s32.totalorder %s87, %s89
      %p93 = scmp.eq.s32.totalorder %s11, 0
      %p94 = por %p92, %p93
      %p95 = scmp.ne.s32.totalorder %s87, %s89
      %p96 = scmp.eq.s32.totalorder %s16, 1
      %p97 = por %p95, %p96
      %p98 = scmp.ne.s32.totalorder %s89, %s90
      %p99 = scmp.eq.s32.totalorder %s16, 0
      %p100 = por %p98, %p99
      %p101 = scmp.ne.s32.totalorder %s89, %s90
      %p102 = scmp.eq.s32.totalorder %s17, 1
      %p103 = por %p101, %p102
      %p105 = scmp.ne.s32.totalorder %s90, %s104
      %p106 = scmp.eq.s32.totalorder %s17, 0
      %p107 = por %p105, %p106
      %s108 = ssub.s32 %s11, %s18
      %p109 = scmp.eq.s32.totalorder %s108, 0
      %s111 = sadd.s32 %s110, 1
      %s112 = scalar_select %p109, %s110, %s111
      %p115 = pneg %p109
      %p116 = scmp.eq.s32.totalorder %s11, 1
      %p117 = por %p115, %p116
      %p118 = scmp.ne.s32.totalorder %s110, %s113
      %p119 = scmp.eq.s32.totalorder %s11, 0
      %p120 = por %p118, %p119
      %p121 = scmp.ne.s32.totalorder %s110, %s113
      %p122 = scmp.eq.s32.totalorder %s16, 1
      %p123 = por %p121, %p122
      %p124 = scmp.ne.s32.totalorder %s113, %s114
      %p125 = scmp.eq.s32.totalorder %s16, 0
      %p126 = por %p124, %p125
      %p127 = scmp.ne.s32.totalorder %s113, %s114
      %p128 = scmp.eq.s32.totalorder %s17, 1
      %p129 = por %p127, %p128
      %p131 = scmp.ne.s32.totalorder %s114, %s130
      %p132 = scmp.eq.s32.totalorder %s17, 0
      %p133 = por %p131, %p132
      %p134 = scmp.le.s32.totalorder 1, %s11
      %p135 = scmp.lt.s32.totalorder %s11, 3
      %p136 = pnand %p134, %p135
      %p137 = pneg %p136
      // Predicated region
      $region9: #{tpu_custom_call.1} parent=5 // pred_check
        _
      $region10: #{tpu_custom_call.1} parent=5 // pred_check_branch
        %139 = sbr.rel (%p136) target = $region12
      $region11: #{tpu_custom_call.1} parent=5 // pred_region
        %s140 = ssub.s32 %s11, 1
        // Predicated region
        $region13: #{tpu_custom_call.1} parent=11 // pred_check
          %p141 = pneg %p58
        $region14: #{tpu_custom_call.1} parent=11 // pred_check_branch
          %143 = sbr.rel (%p141) target = $region16
        $region15: #{tpu_custom_call.1} parent=11 // pred_region
          _
        $region16: #{tpu_custom_call.1} parent=11 // pred_fallthru
          _
        // Predicated region
        $region17: #{tpu_custom_call.1} parent=11 // pred_check
          %p144 = pneg %p79
        $region18: #{tpu_custom_call.1} parent=11 // pred_check_branch
          %146 = sbr.rel (%p144) target = $region20
        $region19: #{tpu_custom_call.1} parent=11 // pred_region
          %148 = vsyncadd [#allocation3], 0
          %s150 = sshll.u32 %s2, 4
          %s151 = int_to_ptr.hbm [resolvable:$true] %s150
          %s152 = sshll.u32 [#allocation2], 4
          %s153 = int_to_ptr.vmem [resolvable:$true] %s152
          %155 = dma.hbm_to_vmem [thread:$0]  %s151, 64, %s153, [#allocation3]
        $region20: #{tpu_custom_call.1} parent=11 // pred_fallthru
          _
        // Predicated region
        $region21: #{tpu_custom_call.1} parent=11 // pred_check
          %p156 = pneg %p100
        $region22: #{tpu_custom_call.1} parent=11 // pred_check_branch
          %158 = sbr.rel (%p156) target = $region24
        $region23: #{tpu_custom_call.1} parent=11 // pred_region
          _
        $region24: #{tpu_custom_call.1} parent=11 // pred_fallthru
          _
      $region12: #{tpu_custom_call.1} parent=5 // pred_fallthru
        _
      %p159 = scmp.lt.s32.totalorder %s11, 2
      // Predicated region
      $region25: #{tpu_custom_call.1} parent=5 // pred_check
        %p160 = pneg %p159
      $region26: #{tpu_custom_call.1} parent=5 // pred_check_branch
        %162 = sbr.rel (%p160) target = $region28
      $region27: #{tpu_custom_call.1} parent=5 // pred_region
        // Predicated region
        $region29: #{tpu_custom_call.1} parent=27 // pred_check
          %p163 = pneg %p31
        $region30: #{tpu_custom_call.1} parent=27 // pred_check_branch
          %165 = sbr.rel (%p163) target = $region32
        $region31: #{tpu_custom_call.1} parent=27 // pred_region
          %p166 = scmp.lt.s32.totalorder %s11, 1
          %s167 = scalar_select %p166, %s11, 1
          %s168 = smul.addr %s167, 8
          %s169 = smul.addr %s168, 8
          %s170 = scalar_lea.vmem %s0, %s169
        $region32: #{tpu_custom_call.1} parent=27 // pred_fallthru
          _
      $region28: #{tpu_custom_call.1} parent=5 // pred_fallthru
        _
      %p171 = scmp.le.s32.totalorder 1, %s11
      %p172 = scmp.lt.s32.totalorder %s11, 3
      %p173 = pnand %p171, %p172
      %p174 = pneg %p173
      // Predicated region
      $region33: #{tpu_custom_call.1} parent=5 // pred_check
        _
      $region34: #{tpu_custom_call.1} parent=5 // pred_check_branch
        %176 = sbr.rel (%p173) target = $region36
      $region35: #{tpu_custom_call.1} parent=5 // pred_region
        %s177 = ssub.s32 %s11, 1
        // Predicated region
        $region37: #{tpu_custom_call.1} parent=35 // pred_check
          %p178 = pneg %p79
        $region38: #{tpu_custom_call.1} parent=35 // pred_check_branch
          %180 = sbr.rel (%p178) target = $region40
        $region39: #{tpu_custom_call.1} parent=35 // pred_region
          %182 = dma.done [#allocation3], 64
        $region40: #{tpu_custom_call.1} parent=35 // pred_fallthru
          _
        %p183 = scmp.lt.s32.totalorder %s16, 1
        %s184 = scalar_select %p183, %s16, 1
        %s185 = smul.addr %s184, 8
        %s186 = smul.addr %s185, 8
        %s187 = scalar_lea.vmem %s0, %s186
        %p188 = pneg %p37
        %p189 = pneg %p34
        %p190 = pneg %p58
        %p191 = pneg %p55
        %p192 = pneg %p79
        %p193 = pneg %p76
        %p194 = pneg %p100
        %p195 = pneg %p97
        %p196 = pneg %p126
        %p197 = pneg %p123
        %p198 = scmp.lt.s32.totalorder %s16, 1
        %s199 = scalar_select %p198, %s16, 1
        %s200 = smul.addr %s199, 8
        %s201 = smul.addr %s200, 8
        %s202 = scalar_lea.vmem %s4, %s201
        %p203 = scmp.lt.s32.totalorder %s16, 1
        %s204 = scalar_select %p203, %s16, 1
        %s205 = smul.addr %s204, 8
        %s206 = smul.addr %s205, 8
        %s207 = scalar_lea.vmem %s0, %s206
        %p208 = scmp.lt.s32.totalorder %s16, 1
        %s209 = scalar_select %p208, %s16, 1
        %s210 = smul.addr %s209, 8
        %s211 = smul.addr %s210, 8
        %s212 = scalar_lea.vmem %s4, %s211
        %v213 = vld [vmem:[%s207] sm:$0xff]
        %v214 = vld [vmem:[%s207 + $0x8] sm:$0xff]
        %v215 = vld [vmem:[%s207 + $0x10] sm:$0xff]
        %v216 = vld [vmem:[%s207 + $0x18] sm:$0xff]
        %v217 = vld [vmem:[%s207 + $0x20] sm:$0xff]
        %v218 = vld [vmem:[%s207 + $0x28] sm:$0xff]
        %v219 = vld [vmem:[%s207 + $0x30] sm:$0xff]
        %v220 = vld [vmem:[%s207 + $0x38] sm:$0xff]
        %v221 = vld [vmem:[%s1] sm:$0xff]
        %v222 = vld [vmem:[%s1 + $0x8] sm:$0xff]
        %v223 = vld [vmem:[%s1 + $0x10] sm:$0xff]
        %v224 = vld [vmem:[%s1 + $0x18] sm:$0xff]
        %v225 = vld [vmem:[%s1 + $0x20] sm:$0xff]
        %v226 = vld [vmem:[%s1 + $0x28] sm:$0xff]
        %v227 = vld [vmem:[%s1 + $0x30] sm:$0xff]
        %v228 = vld [vmem:[%s1 + $0x38] sm:$0xff]
        %v229 = vld [vmem:[%s1 + $0x40] sm:$0xff]
        %v230 = vld [vmem:[%s1 + $0x48] sm:$0xff]
        %v231 = vld [vmem:[%s1 + $0x50] sm:$0xff]
        %v232 = vld [vmem:[%s1 + $0x58] sm:$0xff]
        %v233 = vld [vmem:[%s1 + $0x60] sm:$0xff]
        %v234 = vld [vmem:[%s1 + $0x68] sm:$0xff]
        %v235 = vld [vmem:[%s1 + $0x70] sm:$0xff]
        %v236 = vld [vmem:[%s1 + $0x78] sm:$0xff]
        %v237 = vld [vmem:[#allocation2] sm:$0x7]
        %v238 = vperm.slane %v237, 0
        %239 = vmatpush.msra.mxu0 %v236
        %240 = vmatpush.msra.mxu0 %v235
        %241 = vmatpush.msra.mxu0 %v234
        %242 = vmatpush.msra.mxu0 %v233
        %243 = vmatpush.msra.mxu0 %v232
        %244 = vmatpush.msra.mxu0 %v231
        %245 = vmatpush.msra.mxu0 %v230
        %246 = vmatpush.msra.mxu0 %v229
        %247 = vmatpush.msra.mxu0 %v228
        %248 = vmatpush.msra.mxu0 %v227
        %249 = vmatpush.msra.mxu0 %v226
        %250 = vmatpush.msra.mxu0 %v225
        %251 = vmatpush.msra.mxu0 %v224
        %252 = vmatpush.msra.mxu0 %v223
        %253 = vmatpush.msra.mxu0 %v222
        %254 = vmatpush.msra.mxu0 %v221
        %255 = vmatmul.f32.gmra.mxu0 %v213
        %v256 = vpop.f32.mrf.mxu0
        %v257 = vadd.f32 %v238, %v256
        %258 = vmatmul.f32.gmra.mxu0 %v214
        %v259 = vpop.f32.mrf.mxu0
        %v260 = vadd.f32 %v238, %v259
        %261 = vmatmul.f32.gmra.mxu0 %v215
        %v262 = vpop.f32.mrf.mxu0
        %v263 = vadd.f32 %v238, %v262
        %264 = vmatmul.f32.gmra.mxu0 %v216
        %v265 = vpop.f32.mrf.mxu0
        %v266 = vadd.f32 %v238, %v265
        %267 = vmatmul.f32.gmra.mxu0 %v217
        %v268 = vpop.f32.mrf.mxu0
        %v269 = vadd.f32 %v238, %v268
        %270 = vmatmul.f32.gmra.mxu0 %v218
        %v271 = vpop.f32.mrf.mxu0
        %v272 = vadd.f32 %v238, %v271
        %273 = vmatmul.f32.gmra.mxu0 %v219
        %v274 = vpop.f32.mrf.mxu0
        %v275 = vadd.f32 %v238, %v274
        %276 = vmatmul.f32.gmra.mxu0 %v220
        %v277 = vpop.f32.mrf.mxu0
        %v278 = vadd.f32 %v238, %v277
        %279 = vdwg.mxu0
        %vm280 = vcmask 261120
        %v281 = vsel %vm280, %v257, 0.0
        %282 = vadd.xlane.f32.xlu0 %v281
        %v283 = vpop.xlane.xlu0 %282
        %v284 = vsel %vm280, %v260, 0.0
        %285 = vadd.xlane.f32.xlu0 %v284
        %v286 = vpop.xlane.xlu0 %285
        %v287 = vsel %vm280, %v263, 0.0
        %288 = vadd.xlane.f32.xlu0 %v287
        %v289 = vpop.xlane.xlu0 %288
        %v290 = vsel %vm280, %v266, 0.0
        %291 = vadd.xlane.f32.xlu0 %v290
        %v292 = vpop.xlane.xlu0 %291
        %v293 = vsel %vm280, %v269, 0.0
        %294 = vadd.xlane.f32.xlu0 %v293
        %v295 = vpop.xlane.xlu0 %294
        %v296 = vsel %vm280, %v272, 0.0
        %297 = vadd.xlane.f32.xlu0 %v296
        %v298 = vpop.xlane.xlu0 %297
        %v299 = vsel %vm280, %v275, 0.0
        %300 = vadd.xlane.f32.xlu0 %v299
        %v301 = vpop.xlane.xlu0 %300
        %v302 = vsel %vm280, %v278, 0.0
        %303 = vadd.xlane.f32.xlu0 %v302
        %v304 = vpop.xlane.xlu0 %303
        %v305 = vrcp.pop 32.0
        %v306 = vmul.f32 32.0, %v305
        %v307 = vsub.f32 1.0, %v306
        %v308 = vmul.f32 %v305, %v307
        %v309 = vadd.f32 %v305, %v308
        %vm310 = vweird.f32 %v305
        %v311 = vsel %vm310, %v305, %v309
        %v312 = vmul.f32 %v283, %v311
        %v313 = vmul.f32 %v286, %v311
        %v314 = vmul.f32 %v289, %v311
        %v315 = vmul.f32 %v292, %v311
        %v316 = vmul.f32 %v295, %v311
        %v317 = vmul.f32 %v298, %v311
        %v318 = vmul.f32 %v301, %v311
        %v319 = vmul.f32 %v304, %v311
        %v320 = vsub.f32 %v257, %v312
        %v321 = vsub.f32 %v260, %v313
        %v322 = vsub.f32 %v263, %v314
        %v323 = vsub.f32 %v266, %v315
        %v324 = vsub.f32 %v269, %v316
        %v325 = vsub.f32 %v272, %v317
        %v326 = vsub.f32 %v275, %v318
        %v327 = vsub.f32 %v278, %v319
        %v328 = vmul.f32 %v320, %v320
        %v329 = vmul.f32 %v321, %v321
        %v330 = vmul.f32 %v322, %v322
        %v331 = vmul.f32 %v323, %v323
        %v332 = vmul.f32 %v324, %v324
        %v333 = vmul.f32 %v325, %v325
        %v334 = vmul.f32 %v326, %v326
        %v335 = vmul.f32 %v327, %v327
        %v336 = vsel %vm280, %v328, 0.0
        %337 = vadd.xlane.f32.xlu0 %v336
        %v338 = vpop.xlane.xlu0 %337
        %v339 = vsel %vm280, %v329, 0.0
        %340 = vadd.xlane.f32.xlu0 %v339
        %v341 = vpop.xlane.xlu0 %340
        %v342 = vsel %vm280, %v330, 0.0
        %343 = vadd.xlane.f32.xlu0 %v342
        %v344 = vpop.xlane.xlu0 %343
        %v345 = vsel %vm280, %v331, 0.0
        %346 = vadd.xlane.f32.xlu0 %v345
        %v347 = vpop.xlane.xlu0 %346
        %v348 = vsel %vm280, %v332, 0.0
        %349 = vadd.xlane.f32.xlu0 %v348
        %v350 = vpop.xlane.xlu0 %349
        %v351 = vsel %vm280, %v333, 0.0
        %352 = vadd.xlane.f32.xlu0 %v351
        %v353 = vpop.xlane.xlu0 %352
        %v354 = vsel %vm280, %v334, 0.0
        %355 = vadd.xlane.f32.xlu0 %v354
        %v356 = vpop.xlane.xlu0 %355
        %v357 = vsel %vm280, %v335, 0.0
        %358 = vadd.xlane.f32.xlu0 %v357
        %v359 = vpop.xlane.xlu0 %358
        %v360 = vmul.f32 %v338, %v311
        %v361 = vmul.f32 %v341, %v311
        %v362 = vmul.f32 %v344, %v311
        %v363 = vmul.f32 %v347, %v311
        %v364 = vmul.f32 %v350, %v311
        %v365 = vmul.f32 %v353, %v311
        %v366 = vmul.f32 %v356, %v311
        %v367 = vmul.f32 %v359, %v311
        %v368 = vadd.f32 %v360, 1e-05
        %v369 = vadd.f32 %v361, 1e-05
        %v370 = vadd.f32 %v362, 1e-05
        %v371 = vadd.f32 %v363, 1e-05
        %v372 = vadd.f32 %v364, 1e-05
        %v373 = vadd.f32 %v365, 1e-05
        %v374 = vadd.f32 %v366, 1e-05
        %v375 = vadd.f32 %v367, 1e-05
        %v376 = vrsqrt.pop %v368
        %v377 = vmul.f32 %v376, %v368
        %v378 = vmul.f32 %v377, %v376
        %v379 = vmul.f32 0.5, %v378
        %v380 = vsub.f32 1.5, %v379
        %v381 = vmul.f32 %v376, %v380
        %vm382 = vweird.f32 %v368
        %vm383 = vweird.f32 %v376
        %vm384 = vmor %vm382, %vm383
        %v385 = vsel %vm384, %v376, %v381
        %v386 = vrsqrt.pop %v369
        %v387 = vmul.f32 %v386, %v369
        %v388 = vmul.f32 %v387, %v386
        %v389 = vmul.f32 0.5, %v388
        %v390 = vsub.f32 1.5, %v389
        %v391 = vmul.f32 %v386, %v390
        %vm392 = vweird.f32 %v369
        %vm393 = vweird.f32 %v386
        %vm394 = vmor %vm392, %vm393
        %v395 = vsel %vm394, %v386, %v391
        %v396 = vrsqrt.pop %v370
        %v397 = vmul.f32 %v396, %v370
        %v398 = vmul.f32 %v397, %v396
        %v399 = vmul.f32 0.5, %v398
        %v400 = vsub.f32 1.5, %v399
        %v401 = vmul.f32 %v396, %v400
        %vm402 = vweird.f32 %v370
        %vm403 = vweird.f32 %v396
        %vm404 = vmor %vm402, %vm403
        %v405 = vsel %vm404, %v396, %v401
        %v406 = vrsqrt.pop %v371
        %v407 = vmul.f32 %v406, %v371
        %v408 = vmul.f32 %v407, %v406
        %v409 = vmul.f32 0.5, %v408
        %v410 = vsub.f32 1.5, %v409
        %v411 = vmul.f32 %v406, %v410
        %vm412 = vweird.f32 %v371
        %vm413 = vweird.f32 %v406
        %vm414 = vmor %vm412, %vm413
        %v415 = vsel %vm414, %v406, %v411
        %v416 = vrsqrt.pop %v372
        %v417 = vmul.f32 %v416, %v372
        %v418 = vmul.f32 %v417, %v416
        %v419 = vmul.f32 0.5, %v418
        %v420 = vsub.f32 1.5, %v419
        %v421 = vmul.f32 %v416, %v420
        %vm422 = vweird.f32 %v372
        %vm423 = vweird.f32 %v416
        %vm424 = vmor %vm422, %vm423
        %v425 = vsel %vm424, %v416, %v421
        %v426 = vrsqrt.pop %v373
        %v427 = vmul.f32 %v426, %v373
        %v428 = vmul.f32 %v427, %v426
        %v429 = vmul.f32 0.5, %v428
        %v430 = vsub.f32 1.5, %v429
        %v431 = vmul.f32 %v426, %v430
        %vm432 = vweird.f32 %v373
        %vm433 = vweird.f32 %v426
        %vm434 = vmor %vm432, %vm433
        %v435 = vsel %vm434, %v426, %v431
        %v436 = vrsqrt.pop %v374
        %v437 = vmul.f32 %v436, %v374
        %v438 = vmul.f32 %v437, %v436
        %v439 = vmul.f32 0.5, %v438
        %v440 = vsub.f32 1.5, %v439
        %v441 = vmul.f32 %v436, %v440
        %vm442 = vweird.f32 %v374
        %vm443 = vweird.f32 %v436
        %vm444 = vmor %vm442, %vm443
        %v445 = vsel %vm444, %v436, %v441
        %v446 = vrsqrt.pop %v375
        %v447 = vmul.f32 %v446, %v375
        %v448 = vmul.f32 %v447, %v446
        %v449 = vmul.f32 0.5, %v448
        %v450 = vsub.f32 1.5, %v449
        %v451 = vmul.f32 %v446, %v450
        %vm452 = vweird.f32 %v375
        %vm453 = vweird.f32 %v446
        %vm454 = vmor %vm452, %vm453
        %v455 = vsel %vm454, %v446, %v451
        %v456 = vmul.f32 %v320, %v385
        %v457 = vmul.f32 %v321, %v395
        %v458 = vmul.f32 %v322, %v405
        %v459 = vmul.f32 %v323, %v415
        %v460 = vmul.f32 %v324, %v425
        %v461 = vmul.f32 %v325, %v435
        %v462 = vmul.f32 %v326, %v445
        %v463 = vmul.f32 %v327, %v455
        %v464 = vperm.slane %v237, 1
        %v465 = vmul.f32 %v456, %v464
        %v466 = vmul.f32 %v457, %v464
        %v467 = vmul.f32 %v458, %v464
        %v468 = vmul.f32 %v459, %v464
        %v469 = vmul.f32 %v460, %v464
        %v470 = vmul.f32 %v461, %v464
        %v471 = vmul.f32 %v462, %v464
        %v472 = vmul.f32 %v463, %v464
        %v473 = vperm.slane %v237, 2
        %v474 = vadd.f32 %v465, %v473
        %v475 = vadd.f32 %v466, %v473
        %v476 = vadd.f32 %v467, %v473
        %v477 = vadd.f32 %v468, %v473
        %v478 = vadd.f32 %v469, %v473
        %v479 = vadd.f32 %v470, %v473
        %v480 = vadd.f32 %v471, %v473
        %v481 = vadd.f32 %v472, %v473
        %v482 = vld [vmem:[%s3] sm:$0xff]
        %v483 = vld [vmem:[%s3 + $0x8] sm:$0xff]
        %v484 = vld [vmem:[%s3 + $0x10] sm:$0xff]
        %v485 = vld [vmem:[%s3 + $0x18] sm:$0xff]
        %v487 = vsel %vm280, %v474, 0
        %v490 = vsel %vm280, %v475, 0
        %v493 = vsel %vm280, %v476, 0
        %v496 = vsel %vm280, %v477, 0
        %v499 = vsel %vm280, %v478, 0
        %v502 = vsel %vm280, %v479, 0
        %v505 = vsel %vm280, %v480, 0
        %v508 = vsel %vm280, %v481, 0
        %510 = vmatpush.msra.mxu0 0.0
        %511 = vmatpush.msra.mxu0 0.0
        %512 = vmatpush.msra.mxu0 0.0
        %513 = vmatpush.msra.mxu0 0.0
        %514 = vmatpush.msra.mxu0 0.0
        %515 = vmatpush.msra.mxu0 0.0
        %516 = vmatpush.msra.mxu0 0.0
        %517 = vmatpush.msra.mxu0 0.0
        %518 = vmatpush.msra.mxu0 0.0
        %519 = vmatpush.msra.mxu0 0.0
        %520 = vmatpush.msra.mxu0 0.0
        %521 = vmatpush.msra.mxu0 0.0
        %522 = vmatpush.msra.mxu0 %v485
        %523 = vmatpush.msra.mxu0 %v484
        %524 = vmatpush.msra.mxu0 %v483
        %525 = vmatpush.msra.mxu0 %v482
        %526 = vmatmul.f32.gmra.mxu0 %v487
        %v527 = vpop.f32.mrf.mxu0
        %v528 = vadd.f32 0.0, %v527
        %529 = vmatmul.f32.gmra.mxu0 %v490
        %v530 = vpop.f32.mrf.mxu0
        %v531 = vadd.f32 0.0, %v530
        %532 = vmatmul.f32.gmra.mxu0 %v493
        %v533 = vpop.f32.mrf.mxu0
        %v534 = vadd.f32 0.0, %v533
        %535 = vmatmul.f32.gmra.mxu0 %v496
        %v536 = vpop.f32.mrf.mxu0
        %v537 = vadd.f32 0.0, %v536
        %538 = vmatmul.f32.gmra.mxu0 %v499
        %v539 = vpop.f32.mrf.mxu0
        %v540 = vadd.f32 0.0, %v539
        %541 = vmatmul.f32.gmra.mxu0 %v502
        %v542 = vpop.f32.mrf.mxu0
        %v543 = vadd.f32 0.0, %v542
        %544 = vmatmul.f32.gmra.mxu0 %v505
        %v545 = vpop.f32.mrf.mxu0
        %v546 = vadd.f32 0.0, %v545
        %547 = vmatmul.f32.gmra.mxu0 %v508
        %v548 = vpop.f32.mrf.mxu0
        %v549 = vadd.f32 0.0, %v548
        %550 = vdwg.mxu0
        %559 = vrot.lane.b32.xlu0 %v528, 116
        %v560 = vpop.permute.xlu0 %559
        %561 = vrot.lane.b32.xlu0 %v531, 116
        %v562 = vpop.permute.xlu0 %561
        %563 = vrot.lane.b32.xlu0 %v534, 116
        %v564 = vpop.permute.xlu0 %563
        %565 = vrot.lane.b32.xlu0 %v537, 116
        %v566 = vpop.permute.xlu0 %565
        %567 = vrot.lane.b32.xlu0 %v540, 116
        %v568 = vpop.permute.xlu0 %567
        %569 = vrot.lane.b32.xlu0 %v543, 116
        %v570 = vpop.permute.xlu0 %569
        %571 = vrot.lane.b32.xlu0 %v546, 116
        %v572 = vpop.permute.xlu0 %571
        %573 = vrot.lane.b32.xlu0 %v549, 116
        %v574 = vpop.permute.xlu0 %573
        %575 = vrot.lane.b32.xlu0 %v528, 104
        %v576 = vpop.permute.xlu0 %575
        %577 = vrot.lane.b32.xlu0 %v531, 104
        %v578 = vpop.permute.xlu0 %577
        %579 = vrot.lane.b32.xlu0 %v534, 104
        %v580 = vpop.permute.xlu0 %579
        %581 = vrot.lane.b32.xlu0 %v537, 104
        %v582 = vpop.permute.xlu0 %581
        %583 = vrot.lane.b32.xlu0 %v540, 104
        %v584 = vpop.permute.xlu0 %583
        %585 = vrot.lane.b32.xlu0 %v543, 104
        %v586 = vpop.permute.xlu0 %585
        %587 = vrot.lane.b32.xlu0 %v546, 104
        %v588 = vpop.permute.xlu0 %587
        %589 = vrot.lane.b32.xlu0 %v549, 104
        %v590 = vpop.permute.xlu0 %589
        %591 = vrot.lane.b32.xlu0 %v528, 92
        %v592 = vpop.permute.xlu0 %591
        %593 = vrot.lane.b32.xlu0 %v531, 92
        %v594 = vpop.permute.xlu0 %593
        %595 = vrot.lane.b32.xlu0 %v534, 92
        %v596 = vpop.permute.xlu0 %595
        %597 = vrot.lane.b32.xlu0 %v537, 92
        %v598 = vpop.permute.xlu0 %597
        %599 = vrot.lane.b32.xlu0 %v540, 92
        %v600 = vpop.permute.xlu0 %599
        %601 = vrot.lane.b32.xlu0 %v543, 92
        %v602 = vpop.permute.xlu0 %601
        %603 = vrot.lane.b32.xlu0 %v546, 92
        %v604 = vpop.permute.xlu0 %603
        %605 = vrot.lane.b32.xlu0 %v549, 92
        %v606 = vpop.permute.xlu0 %605
        %607 = vrot.lane.b32.xlu0 %v528, 80
        %v608 = vpop.permute.xlu0 %607
        %609 = vrot.lane.b32.xlu0 %v531, 80
        %v610 = vpop.permute.xlu0 %609
        %611 = vrot.lane.b32.xlu0 %v534, 80
        %v612 = vpop.permute.xlu0 %611
        %613 = vrot.lane.b32.xlu0 %v537, 80
        %v614 = vpop.permute.xlu0 %613
        %615 = vrot.lane.b32.xlu0 %v540, 80
        %v616 = vpop.permute.xlu0 %615
        %617 = vrot.lane.b32.xlu0 %v543, 80
        %v618 = vpop.permute.xlu0 %617
        %619 = vrot.lane.b32.xlu0 %v546, 80
        %v620 = vpop.permute.xlu0 %619
        %621 = vrot.lane.b32.xlu0 %v549, 80
        %v622 = vpop.permute.xlu0 %621
        %623 = vrot.lane.b32.xlu0 %v528, 68
        %v624 = vpop.permute.xlu0 %623
        %625 = vrot.lane.b32.xlu0 %v531, 68
        %v626 = vpop.permute.xlu0 %625
        %627 = vrot.lane.b32.xlu0 %v534, 68
        %v628 = vpop.permute.xlu0 %627
        %629 = vrot.lane.b32.xlu0 %v537, 68
        %v630 = vpop.permute.xlu0 %629
        %631 = vrot.lane.b32.xlu0 %v540, 68
        %v632 = vpop.permute.xlu0 %631
        %633 = vrot.lane.b32.xlu0 %v543, 68
        %v634 = vpop.permute.xlu0 %633
        %635 = vrot.lane.b32.xlu0 %v546, 68
        %v636 = vpop.permute.xlu0 %635
        %637 = vrot.lane.b32.xlu0 %v549, 68
        %v638 = vpop.permute.xlu0 %637
        %639 = vrot.lane.b32.xlu0 %v528, 56
        %v640 = vpop.permute.xlu0 %639
        %641 = vrot.lane.b32.xlu0 %v531, 56
        %v642 = vpop.permute.xlu0 %641
        %643 = vrot.lane.b32.xlu0 %v534, 56
        %v644 = vpop.permute.xlu0 %643
        %645 = vrot.lane.b32.xlu0 %v537, 56
        %v646 = vpop.permute.xlu0 %645
        %647 = vrot.lane.b32.xlu0 %v540, 56
        %v648 = vpop.permute.xlu0 %647
        %649 = vrot.lane.b32.xlu0 %v543, 56
        %v650 = vpop.permute.xlu0 %649
        %651 = vrot.lane.b32.xlu0 %v546, 56
        %v652 = vpop.permute.xlu0 %651
        %653 = vrot.lane.b32.xlu0 %v549, 56
        %v654 = vpop.permute.xlu0 %653
        %655 = vrot.lane.b32.xlu0 %v528, 44
        %v656 = vpop.permute.xlu0 %655
        %657 = vrot.lane.b32.xlu0 %v531, 44
        %v658 = vpop.permute.xlu0 %657
        %659 = vrot.lane.b32.xlu0 %v534, 44
        %v660 = vpop.permute.xlu0 %659
        %661 = vrot.lane.b32.xlu0 %v537, 44
        %v662 = vpop.permute.xlu0 %661
        %663 = vrot.lane.b32.xlu0 %v540, 44
        %v664 = vpop.permute.xlu0 %663
        %665 = vrot.lane.b32.xlu0 %v543, 44
        %v666 = vpop.permute.xlu0 %665
        %667 = vrot.lane.b32.xlu0 %v546, 44
        %v668 = vpop.permute.xlu0 %667
        %669 = vrot.lane.b32.xlu0 %v549, 44
        %v670 = vpop.permute.xlu0 %669
        %671 = vrot.lane.b32.xlu0 %v528, 124
        %v672 = vpop.permute.xlu0 %671
        %673 = vrot.lane.b32.xlu0 %v531, 124
        %v674 = vpop.permute.xlu0 %673
        %675 = vrot.lane.b32.xlu0 %v534, 124
        %v676 = vpop.permute.xlu0 %675
        %677 = vrot.lane.b32.xlu0 %v537, 124
        %v678 = vpop.permute.xlu0 %677
        %679 = vrot.lane.b32.xlu0 %v540, 124
        %v680 = vpop.permute.xlu0 %679
        %681 = vrot.lane.b32.xlu0 %v543, 124
        %v682 = vpop.permute.xlu0 %681
        %683 = vrot.lane.b32.xlu0 %v546, 124
        %v684 = vpop.permute.xlu0 %683
        %685 = vrot.lane.b32.xlu0 %v549, 124
        %v686 = vpop.permute.xlu0 %685
        %vm687 = vcmask 31744
        %v688 = vsel %vm687, %v528, 0
        %v690 = vsel %vm687, %v531, 0
        %v692 = vsel %vm687, %v534, 0
        %v694 = vsel %vm687, %v537, 0
        %v696 = vsel %vm687, %v540, 0
        %v698 = vsel %vm687, %v543, 0
        %v700 = vsel %vm687, %v546, 0
        %v702 = vsel %vm687, %v549, 0
        %v704 = vsel %vm687, %v672, 0
        %v706 = vsel %vm687, %v674, 0
        %v708 = vsel %vm687, %v676, 0
        %v710 = vsel %vm687, %v678, 0
        %v712 = vsel %vm687, %v680, 0
        %v714 = vsel %vm687, %v682, 0
        %v716 = vsel %vm687, %v684, 0
        %v718 = vsel %vm687, %v686, 0
        %720 = vmatpush.xpose.msra.mxu0 0.0
        %721 = vmatpush.xpose.msra.mxu0 0.0
        %722 = vmatpush.xpose.msra.mxu0 0.0
        %723 = vmatpush.xpose.msra.mxu0 0.0
        %724 = vmatpush.xpose.msra.mxu0 0.0
        %725 = vmatpush.xpose.msra.mxu0 0.0
        %726 = vmatpush.xpose.msra.mxu0 0.0
        %727 = vmatpush.xpose.msra.mxu0 0.0
        %728 = vmatpush.xpose.msra.mxu0 %v718
        %729 = vmatpush.xpose.msra.mxu0 %v716
        %730 = vmatpush.xpose.msra.mxu0 %v714
        %731 = vmatpush.xpose.msra.mxu0 %v712
        %732 = vmatpush.xpose.msra.mxu0 %v710
        %733 = vmatpush.xpose.msra.mxu0 %v708
        %734 = vmatpush.xpose.msra.mxu0 %v706
        %735 = vmatpush.xpose.msra.mxu0 %v704
        %736 = vmatmul.f32.gmra.mxu0 %v688
        %v737 = vpop.f32.mrf.mxu0
        %v738 = vadd.f32 0.0, %v737
        %739 = vmatmul.f32.gmra.mxu0 %v690
        %v740 = vpop.f32.mrf.mxu0
        %v741 = vadd.f32 0.0, %v740
        %742 = vmatmul.f32.gmra.mxu0 %v692
        %v743 = vpop.f32.mrf.mxu0
        %v744 = vadd.f32 0.0, %v743
        %745 = vmatmul.f32.gmra.mxu0 %v694
        %v746 = vpop.f32.mrf.mxu0
        %v747 = vadd.f32 0.0, %v746
        %748 = vmatmul.f32.gmra.mxu0 %v696
        %v749 = vpop.f32.mrf.mxu0
        %v750 = vadd.f32 0.0, %v749
        %751 = vmatmul.f32.gmra.mxu0 %v698
        %v752 = vpop.f32.mrf.mxu0
        %v753 = vadd.f32 0.0, %v752
        %754 = vmatmul.f32.gmra.mxu0 %v700
        %v755 = vpop.f32.mrf.mxu0
        %v756 = vadd.f32 0.0, %v755
        %757 = vmatmul.f32.gmra.mxu0 %v702
        %v758 = vpop.f32.mrf.mxu0
        %v759 = vadd.f32 0.0, %v758
        %760 = vdwg.mxu0
        %761 = vrot.lane.b32.xlu0 %v560, 124
        %v762 = vpop.permute.xlu0 %761
        %763 = vrot.lane.b32.xlu0 %v562, 124
        %v764 = vpop.permute.xlu0 %763
        %765 = vrot.lane.b32.xlu0 %v564, 124
        %v766 = vpop.permute.xlu0 %765
        %767 = vrot.lane.b32.xlu0 %v566, 124
        %v768 = vpop.permute.xlu0 %767
        %769 = vrot.lane.b32.xlu0 %v568, 124
        %v770 = vpop.permute.xlu0 %769
        %771 = vrot.lane.b32.xlu0 %v570, 124
        %v772 = vpop.permute.xlu0 %771
        %773 = vrot.lane.b32.xlu0 %v572, 124
        %v774 = vpop.permute.xlu0 %773
        %775 = vrot.lane.b32.xlu0 %v574, 124
        %v776 = vpop.permute.xlu0 %775
        %v777 = vsel %vm687, %v560, 0
        %v779 = vsel %vm687, %v562, 0
        %v781 = vsel %vm687, %v564, 0
        %v783 = vsel %vm687, %v566, 0
        %v785 = vsel %vm687, %v568, 0
        %v787 = vsel %vm687, %v570, 0
        %v789 = vsel %vm687, %v572, 0
        %v791 = vsel %vm687, %v574, 0
        %v793 = vsel %vm687, %v762, 0
        %v795 = vsel %vm687, %v764, 0
        %v797 = vsel %vm687, %v766, 0
        %v799 = vsel %vm687, %v768, 0
        %v801 = vsel %vm687, %v770, 0
        %v803 = vsel %vm687, %v772, 0
        %v805 = vsel %vm687, %v774, 0
        %v807 = vsel %vm687, %v776, 0
        %809 = vmatpush.xpose.msra.mxu0 0.0
        %810 = vmatpush.xpose.msra.mxu0 0.0
        %811 = vmatpush.xpose.msra.mxu0 0.0
        %812 = vmatpush.xpose.msra.mxu0 0.0
        %813 = vmatpush.xpose.msra.mxu0 0.0
        %814 = vmatpush.xpose.msra.mxu0 0.0
        %815 = vmatpush.xpose.msra.mxu0 0.0
        %816 = vmatpush.xpose.msra.mxu0 0.0
        %817 = vmatpush.xpose.msra.mxu0 %v807
        %818 = vmatpush.xpose.msra.mxu0 %v805
        %819 = vmatpush.xpose.msra.mxu0 %v803
        %820 = vmatpush.xpose.msra.mxu0 %v801
        %821 = vmatpush.xpose.msra.mxu0 %v799
        %822 = vmatpush.xpose.msra.mxu0 %v797
        %823 = vmatpush.xpose.msra.mxu0 %v795
        %824 = vmatpush.xpose.msra.mxu0 %v793
        %825 = vmatmul.f32.gmra.mxu0 %v777
        %v826 = vpop.f32.mrf.mxu0
        %v827 = vadd.f32 0.0, %v826
        %828 = vmatmul.f32.gmra.mxu0 %v779
        %v829 = vpop.f32.mrf.mxu0
        %v830 = vadd.f32 0.0, %v829
        %831 = vmatmul.f32.gmra.mxu0 %v781
        %v832 = vpop.f32.mrf.mxu0
        %v833 = vadd.f32 0.0, %v832
        %834 = vmatmul.f32.gmra.mxu0 %v783
        %v835 = vpop.f32.mrf.mxu0
        %v836 = vadd.f32 0.0, %v835
        %837 = vmatmul.f32.gmra.mxu0 %v785
        %v838 = vpop.f32.mrf.mxu0
        %v839 = vadd.f32 0.0, %v838
        %840 = vmatmul.f32.gmra.mxu0 %v787
        %v841 = vpop.f32.mrf.mxu0
        %v842 = vadd.f32 0.0, %v841
        %843 = vmatmul.f32.gmra.mxu0 %v789
        %v844 = vpop.f32.mrf.mxu0
        %v845 = vadd.f32 0.0, %v844
        %846 = vmatmul.f32.gmra.mxu0 %v791
        %v847 = vpop.f32.mrf.mxu0
        %v848 = vadd.f32 0.0, %v847
        %849 = vdwg.mxu0
        %850 = vrot.lane.b32.xlu0 %v576, 124
        %v851 = vpop.permute.xlu0 %850
        %852 = vrot.lane.b32.xlu0 %v578, 124
        %v853 = vpop.permute.xlu0 %852
        %854 = vrot.lane.b32.xlu0 %v580, 124
        %v855 = vpop.permute.xlu0 %854
        %856 = vrot.lane.b32.xlu0 %v582, 124
        %v857 = vpop.permute.xlu0 %856
        %858 = vrot.lane.b32.xlu0 %v584, 124
        %v859 = vpop.permute.xlu0 %858
        %860 = vrot.lane.b32.xlu0 %v586, 124
        %v861 = vpop.permute.xlu0 %860
        %862 = vrot.lane.b32.xlu0 %v588, 124
        %v863 = vpop.permute.xlu0 %862
        %864 = vrot.lane.b32.xlu0 %v590, 124
        %v865 = vpop.permute.xlu0 %864
        %v866 = vsel %vm687, %v576, 0
        %v868 = vsel %vm687, %v578, 0
        %v870 = vsel %vm687, %v580, 0
        %v872 = vsel %vm687, %v582, 0
        %v874 = vsel %vm687, %v584, 0
        %v876 = vsel %vm687, %v586, 0
        %v878 = vsel %vm687, %v588, 0
        %v880 = vsel %vm687, %v590, 0
        %v882 = vsel %vm687, %v851, 0
        %v884 = vsel %vm687, %v853, 0
        %v886 = vsel %vm687, %v855, 0
        %v888 = vsel %vm687, %v857, 0
        %v890 = vsel %vm687, %v859, 0
        %v892 = vsel %vm687, %v861, 0
        %v894 = vsel %vm687, %v863, 0
        %v896 = vsel %vm687, %v865, 0
        %898 = vmatpush.xpose.msra.mxu0 0.0
        %899 = vmatpush.xpose.msra.mxu0 0.0
        %900 = vmatpush.xpose.msra.mxu0 0.0
        %901 = vmatpush.xpose.msra.mxu0 0.0
        %902 = vmatpush.xpose.msra.mxu0 0.0
        %903 = vmatpush.xpose.msra.mxu0 0.0
        %904 = vmatpush.xpose.msra.mxu0 0.0
        %905 = vmatpush.xpose.msra.mxu0 0.0
        %906 = vmatpush.xpose.msra.mxu0 %v896
        %907 = vmatpush.xpose.msra.mxu0 %v894
        %908 = vmatpush.xpose.msra.mxu0 %v892
        %909 = vmatpush.xpose.msra.mxu0 %v890
        %910 = vmatpush.xpose.msra.mxu0 %v888
        %911 = vmatpush.xpose.msra.mxu0 %v886
        %912 = vmatpush.xpose.msra.mxu0 %v884
        %913 = vmatpush.xpose.msra.mxu0 %v882
        %914 = vmatmul.f32.gmra.mxu0 %v866
        %v915 = vpop.f32.mrf.mxu0
        %v916 = vadd.f32 0.0, %v915
        %917 = vmatmul.f32.gmra.mxu0 %v868
        %v918 = vpop.f32.mrf.mxu0
        %v919 = vadd.f32 0.0, %v918
        %920 = vmatmul.f32.gmra.mxu0 %v870
        %v921 = vpop.f32.mrf.mxu0
        %v922 = vadd.f32 0.0, %v921
        %923 = vmatmul.f32.gmra.mxu0 %v872
        %v924 = vpop.f32.mrf.mxu0
        %v925 = vadd.f32 0.0, %v924
        %926 = vmatmul.f32.gmra.mxu0 %v874
        %v927 = vpop.f32.mrf.mxu0
        %v928 = vadd.f32 0.0, %v927
        %929 = vmatmul.f32.gmra.mxu0 %v876
        %v930 = vpop.f32.mrf.mxu0
        %v931 = vadd.f32 0.0, %v930
        %932 = vmatmul.f32.gmra.mxu0 %v878
        %v933 = vpop.f32.mrf.mxu0
        %v934 = vadd.f32 0.0, %v933
        %935 = vmatmul.f32.gmra.mxu0 %v880
        %v936 = vpop.f32.mrf.mxu0
        %v937 = vadd.f32 0.0, %v936
        %938 = vdwg.mxu0
        %939 = vrot.lane.b32.xlu0 %v592, 124
        %v940 = vpop.permute.xlu0 %939
        %941 = vrot.lane.b32.xlu0 %v594, 124
        %v942 = vpop.permute.xlu0 %941
        %943 = vrot.lane.b32.xlu0 %v596, 124
        %v944 = vpop.permute.xlu0 %943
        %945 = vrot.lane.b32.xlu0 %v598, 124
        %v946 = vpop.permute.xlu0 %945
        %947 = vrot.lane.b32.xlu0 %v600, 124
        %v948 = vpop.permute.xlu0 %947
        %949 = vrot.lane.b32.xlu0 %v602, 124
        %v950 = vpop.permute.xlu0 %949
        %951 = vrot.lane.b32.xlu0 %v604, 124
        %v952 = vpop.permute.xlu0 %951
        %953 = vrot.lane.b32.xlu0 %v606, 124
        %v954 = vpop.permute.xlu0 %953
        %v955 = vsel %vm687, %v592, 0
        %v957 = vsel %vm687, %v594, 0
        %v959 = vsel %vm687, %v596, 0
        %v961 = vsel %vm687, %v598, 0
        %v963 = vsel %vm687, %v600, 0
        %v965 = vsel %vm687, %v602, 0
        %v967 = vsel %vm687, %v604, 0
        %v969 = vsel %vm687, %v606, 0
        %v971 = vsel %vm687, %v940, 0
        %v973 = vsel %vm687, %v942, 0
        %v975 = vsel %vm687, %v944, 0
        %v977 = vsel %vm687, %v946, 0
        %v979 = vsel %vm687, %v948, 0
        %v981 = vsel %vm687, %v950, 0
        %v983 = vsel %vm687, %v952, 0
        %v985 = vsel %vm687, %v954, 0
        %987 = vmatpush.xpose.msra.mxu0 0.0
        %988 = vmatpush.xpose.msra.mxu0 0.0
        %989 = vmatpush.xpose.msra.mxu0 0.0
        %990 = vmatpush.xpose.msra.mxu0 0.0
        %991 = vmatpush.xpose.msra.mxu0 0.0
        %992 = vmatpush.xpose.msra.mxu0 0.0
        %993 = vmatpush.xpose.msra.mxu0 0.0
        %994 = vmatpush.xpose.msra.mxu0 0.0
        %995 = vmatpush.xpose.msra.mxu0 %v985
        %996 = vmatpush.xpose.msra.mxu0 %v983
        %997 = vmatpush.xpose.msra.mxu0 %v981
        %998 = vmatpush.xpose.msra.mxu0 %v979
        %999 = vmatpush.xpose.msra.mxu0 %v977
        %1000 = vmatpush.xpose.msra.mxu0 %v975
        %1001 = vmatpush.xpose.msra.mxu0 %v973
        %1002 = vmatpush.xpose.msra.mxu0 %v971
        %1003 = vmatmul.f32.gmra.mxu0 %v955
        %v1004 = vpop.f32.mrf.mxu0
        %v1005 = vadd.f32 0.0, %v1004
        %1006 = vmatmul.f32.gmra.mxu0 %v957
        %v1007 = vpop.f32.mrf.mxu0
        %v1008 = vadd.f32 0.0, %v1007
        %1009 = vmatmul.f32.gmra.mxu0 %v959
        %v1010 = vpop.f32.mrf.mxu0
        %v1011 = vadd.f32 0.0, %v1010
        %1012 = vmatmul.f32.gmra.mxu0 %v961
        %v1013 = vpop.f32.mrf.mxu0
        %v1014 = vadd.f32 0.0, %v1013
        %1015 = vmatmul.f32.gmra.mxu0 %v963
        %v1016 = vpop.f32.mrf.mxu0
        %v1017 = vadd.f32 0.0, %v1016
        %1018 = vmatmul.f32.gmra.mxu0 %v965
        %v1019 = vpop.f32.mrf.mxu0
        %v1020 = vadd.f32 0.0, %v1019
        %1021 = vmatmul.f32.gmra.mxu0 %v967
        %v1022 = vpop.f32.mrf.mxu0
        %v1023 = vadd.f32 0.0, %v1022
        %1024 = vmatmul.f32.gmra.mxu0 %v969
        %v1025 = vpop.f32.mrf.mxu0
        %v1026 = vadd.f32 0.0, %v1025
        %1027 = vdwg.mxu0
        %1028 = vrot.lane.b32.xlu0 %v608, 124
        %v1029 = vpop.permute.xlu0 %1028
        %1030 = vrot.lane.b32.xlu0 %v610, 124
        %v1031 = vpop.permute.xlu0 %1030
        %1032 = vrot.lane.b32.xlu0 %v612, 124
        %v1033 = vpop.permute.xlu0 %1032
        %1034 = vrot.lane.b32.xlu0 %v614, 124
        %v1035 = vpop.permute.xlu0 %1034
        %1036 = vrot.lane.b32.xlu0 %v616, 124
        %v1037 = vpop.permute.xlu0 %1036
        %1038 = vrot.lane.b32.xlu0 %v618, 124
        %v1039 = vpop.permute.xlu0 %1038
        %1040 = vrot.lane.b32.xlu0 %v620, 124
        %v1041 = vpop.permute.xlu0 %1040
        %1042 = vrot.lane.b32.xlu0 %v622, 124
        %v1043 = vpop.permute.xlu0 %1042
        %v1044 = vsel %vm687, %v608, 0
        %v1046 = vsel %vm687, %v610, 0
        %v1048 = vsel %vm687, %v612, 0
        %v1050 = vsel %vm687, %v614, 0
        %v1052 = vsel %vm687, %v616, 0
        %v1054 = vsel %vm687, %v618, 0
        %v1056 = vsel %vm687, %v620, 0
        %v1058 = vsel %vm687, %v622, 0
        %v1060 = vsel %vm687, %v1029, 0
        %v1062 = vsel %vm687, %v1031, 0
        %v1064 = vsel %vm687, %v1033, 0
        %v1066 = vsel %vm687, %v1035, 0
        %v1068 = vsel %vm687, %v1037, 0
        %v1070 = vsel %vm687, %v1039, 0
        %v1072 = vsel %vm687, %v1041, 0
        %v1074 = vsel %vm687, %v1043, 0
        %1076 = vmatpush.xpose.msra.mxu0 0.0
        %1077 = vmatpush.xpose.msra.mxu0 0.0
        %1078 = vmatpush.xpose.msra.mxu0 0.0
        %1079 = vmatpush.xpose.msra.mxu0 0.0
        %1080 = vmatpush.xpose.msra.mxu0 0.0
        %1081 = vmatpush.xpose.msra.mxu0 0.0
        %1082 = vmatpush.xpose.msra.mxu0 0.0
        %1083 = vmatpush.xpose.msra.mxu0 0.0
        %1084 = vmatpush.xpose.msra.mxu0 %v1074
        %1085 = vmatpush.xpose.msra.mxu0 %v1072
        %1086 = vmatpush.xpose.msra.mxu0 %v1070
        %1087 = vmatpush.xpose.msra.mxu0 %v1068
        %1088 = vmatpush.xpose.msra.mxu0 %v1066
        %1089 = vmatpush.xpose.msra.mxu0 %v1064
        %1090 = vmatpush.xpose.msra.mxu0 %v1062
        %1091 = vmatpush.xpose.msra.mxu0 %v1060
        %1092 = vmatmul.f32.gmra.mxu0 %v1044
        %v1093 = vpop.f32.mrf.mxu0
        %v1094 = vadd.f32 0.0, %v1093
        %1095 = vmatmul.f32.gmra.mxu0 %v1046
        %v1096 = vpop.f32.mrf.mxu0
        %v1097 = vadd.f32 0.0, %v1096
        %1098 = vmatmul.f32.gmra.mxu0 %v1048
        %v1099 = vpop.f32.mrf.mxu0
        %v1100 = vadd.f32 0.0, %v1099
        %1101 = vmatmul.f32.gmra.mxu0 %v1050
        %v1102 = vpop.f32.mrf.mxu0
        %v1103 = vadd.f32 0.0, %v1102
        %1104 = vmatmul.f32.gmra.mxu0 %v1052
        %v1105 = vpop.f32.mrf.mxu0
        %v1106 = vadd.f32 0.0, %v1105
        %1107 = vmatmul.f32.gmra.mxu0 %v1054
        %v1108 = vpop.f32.mrf.mxu0
        %v1109 = vadd.f32 0.0, %v1108
        %1110 = vmatmul.f32.gmra.mxu0 %v1056
        %v1111 = vpop.f32.mrf.mxu0
        %v1112 = vadd.f32 0.0, %v1111
        %1113 = vmatmul.f32.gmra.mxu0 %v1058
        %v1114 = vpop.f32.mrf.mxu0
        %v1115 = vadd.f32 0.0, %v1114
        %1116 = vdwg.mxu0
        %1117 = vrot.lane.b32.xlu0 %v624, 124
        %v1118 = vpop.permute.xlu0 %1117
        %1119 = vrot.lane.b32.xlu0 %v626, 124
        %v1120 = vpop.permute.xlu0 %1119
        %1121 = vrot.lane.b32.xlu0 %v628, 124
        %v1122 = vpop.permute.xlu0 %1121
        %1123 = vrot.lane.b32.xlu0 %v630, 124
        %v1124 = vpop.permute.xlu0 %1123
        %1125 = vrot.lane.b32.xlu0 %v632, 124
        %v1126 = vpop.permute.xlu0 %1125
        %1127 = vrot.lane.b32.xlu0 %v634, 124
        %v1128 = vpop.permute.xlu0 %1127
        %1129 = vrot.lane.b32.xlu0 %v636, 124
        %v1130 = vpop.permute.xlu0 %1129
        %1131 = vrot.lane.b32.xlu0 %v638, 124
        %v1132 = vpop.permute.xlu0 %1131
        %v1133 = vsel %vm687, %v624, 0
        %v1135 = vsel %vm687, %v626, 0
        %v1137 = vsel %vm687, %v628, 0
        %v1139 = vsel %vm687, %v630, 0
        %v1141 = vsel %vm687, %v632, 0
        %v1143 = vsel %vm687, %v634, 0
        %v1145 = vsel %vm687, %v636, 0
        %v1147 = vsel %vm687, %v638, 0
        %v1149 = vsel %vm687, %v1118, 0
        %v1151 = vsel %vm687, %v1120, 0
        %v1153 = vsel %vm687, %v1122, 0
        %v1155 = vsel %vm687, %v1124, 0
        %v1157 = vsel %vm687, %v1126, 0
        %v1159 = vsel %vm687, %v1128, 0
        %v1161 = vsel %vm687, %v1130, 0
        %v1163 = vsel %vm687, %v1132, 0
        %1165 = vmatpush.xpose.msra.mxu0 0.0
        %1166 = vmatpush.xpose.msra.mxu0 0.0
        %1167 = vmatpush.xpose.msra.mxu0 0.0
        %1168 = vmatpush.xpose.msra.mxu0 0.0
        %1169 = vmatpush.xpose.msra.mxu0 0.0
        %1170 = vmatpush.xpose.msra.mxu0 0.0
        %1171 = vmatpush.xpose.msra.mxu0 0.0
        %1172 = vmatpush.xpose.msra.mxu0 0.0
        %1173 = vmatpush.xpose.msra.mxu0 %v1163
        %1174 = vmatpush.xpose.msra.mxu0 %v1161
        %1175 = vmatpush.xpose.msra.mxu0 %v1159
        %1176 = vmatpush.xpose.msra.mxu0 %v1157
        %1177 = vmatpush.xpose.msra.mxu0 %v1155
        %1178 = vmatpush.xpose.msra.mxu0 %v1153
        %1179 = vmatpush.xpose.msra.mxu0 %v1151
        %1180 = vmatpush.xpose.msra.mxu0 %v1149
        %1181 = vmatmul.f32.gmra.mxu0 %v1133
        %v1182 = vpop.f32.mrf.mxu0
        %v1183 = vadd.f32 0.0, %v1182
        %1184 = vmatmul.f32.gmra.mxu0 %v1135
        %v1185 = vpop.f32.mrf.mxu0
        %v1186 = vadd.f32 0.0, %v1185
        %1187 = vmatmul.f32.gmra.mxu0 %v1137
        %v1188 = vpop.f32.mrf.mxu0
        %v1189 = vadd.f32 0.0, %v1188
        %1190 = vmatmul.f32.gmra.mxu0 %v1139
        %v1191 = vpop.f32.mrf.mxu0
        %v1192 = vadd.f32 0.0, %v1191
        %1193 = vmatmul.f32.gmra.mxu0 %v1141
        %v1194 = vpop.f32.mrf.mxu0
        %v1195 = vadd.f32 0.0, %v1194
        %1196 = vmatmul.f32.gmra.mxu0 %v1143
        %v1197 = vpop.f32.mrf.mxu0
        %v1198 = vadd.f32 0.0, %v1197
        %1199 = vmatmul.f32.gmra.mxu0 %v1145
        %v1200 = vpop.f32.mrf.mxu0
        %v1201 = vadd.f32 0.0, %v1200
        %1202 = vmatmul.f32.gmra.mxu0 %v1147
        %v1203 = vpop.f32.mrf.mxu0
        %v1204 = vadd.f32 0.0, %v1203
        %1205 = vdwg.mxu0
        %1206 = vrot.lane.b32.xlu0 %v640, 124
        %v1207 = vpop.permute.xlu0 %1206
        %1208 = vrot.lane.b32.xlu0 %v642, 124
        %v1209 = vpop.permute.xlu0 %1208
        %1210 = vrot.lane.b32.xlu0 %v644, 124
        %v1211 = vpop.permute.xlu0 %1210
        %1212 = vrot.lane.b32.xlu0 %v646, 124
        %v1213 = vpop.permute.xlu0 %1212
        %1214 = vrot.lane.b32.xlu0 %v648, 124
        %v1215 = vpop.permute.xlu0 %1214
        %1216 = vrot.lane.b32.xlu0 %v650, 124
        %v1217 = vpop.permute.xlu0 %1216
        %1218 = vrot.lane.b32.xlu0 %v652, 124
        %v1219 = vpop.permute.xlu0 %1218
        %1220 = vrot.lane.b32.xlu0 %v654, 124
        %v1221 = vpop.permute.xlu0 %1220
        %v1222 = vsel %vm687, %v640, 0
        %v1224 = vsel %vm687, %v642, 0
        %v1226 = vsel %vm687, %v644, 0
        %v1228 = vsel %vm687, %v646, 0
        %v1230 = vsel %vm687, %v648, 0
        %v1232 = vsel %vm687, %v650, 0
        %v1234 = vsel %vm687, %v652, 0
        %v1236 = vsel %vm687, %v654, 0
        %v1238 = vsel %vm687, %v1207, 0
        %v1240 = vsel %vm687, %v1209, 0
        %v1242 = vsel %vm687, %v1211, 0
        %v1244 = vsel %vm687, %v1213, 0
        %v1246 = vsel %vm687, %v1215, 0
        %v1248 = vsel %vm687, %v1217, 0
        %v1250 = vsel %vm687, %v1219, 0
        %v1252 = vsel %vm687, %v1221, 0
        %1254 = vmatpush.xpose.msra.mxu0 0.0
        %1255 = vmatpush.xpose.msra.mxu0 0.0
        %1256 = vmatpush.xpose.msra.mxu0 0.0
        %1257 = vmatpush.xpose.msra.mxu0 0.0
        %1258 = vmatpush.xpose.msra.mxu0 0.0
        %1259 = vmatpush.xpose.msra.mxu0 0.0
        %1260 = vmatpush.xpose.msra.mxu0 0.0
        %1261 = vmatpush.xpose.msra.mxu0 0.0
        %1262 = vmatpush.xpose.msra.mxu0 %v1252
        %1263 = vmatpush.xpose.msra.mxu0 %v1250
        %1264 = vmatpush.xpose.msra.mxu0 %v1248
        %1265 = vmatpush.xpose.msra.mxu0 %v1246
        %1266 = vmatpush.xpose.msra.mxu0 %v1244
        %1267 = vmatpush.xpose.msra.mxu0 %v1242
        %1268 = vmatpush.xpose.msra.mxu0 %v1240
        %1269 = vmatpush.xpose.msra.mxu0 %v1238
        %1270 = vmatmul.f32.gmra.mxu0 %v1222
        %v1271 = vpop.f32.mrf.mxu0
        %v1272 = vadd.f32 0.0, %v1271
        %1273 = vmatmul.f32.gmra.mxu0 %v1224
        %v1274 = vpop.f32.mrf.mxu0
        %v1275 = vadd.f32 0.0, %v1274
        %1276 = vmatmul.f32.gmra.mxu0 %v1226
        %v1277 = vpop.f32.mrf.mxu0
        %v1278 = vadd.f32 0.0, %v1277
        %1279 = vmatmul.f32.gmra.mxu0 %v1228
        %v1280 = vpop.f32.mrf.mxu0
        %v1281 = vadd.f32 0.0, %v1280
        %1282 = vmatmul.f32.gmra.mxu0 %v1230
        %v1283 = vpop.f32.mrf.mxu0
        %v1284 = vadd.f32 0.0, %v1283
        %1285 = vmatmul.f32.gmra.mxu0 %v1232
        %v1286 = vpop.f32.mrf.mxu0
        %v1287 = vadd.f32 0.0, %v1286
        %1288 = vmatmul.f32.gmra.mxu0 %v1234
        %v1289 = vpop.f32.mrf.mxu0
        %v1290 = vadd.f32 0.0, %v1289
        %1291 = vmatmul.f32.gmra.mxu0 %v1236
        %v1292 = vpop.f32.mrf.mxu0
        %v1293 = vadd.f32 0.0, %v1292
        %1294 = vdwg.mxu0
        %1295 = vrot.lane.b32.xlu0 %v656, 124
        %v1296 = vpop.permute.xlu0 %1295
        %1297 = vrot.lane.b32.xlu0 %v658, 124
        %v1298 = vpop.permute.xlu0 %1297
        %1299 = vrot.lane.b32.xlu0 %v660, 124
        %v1300 = vpop.permute.xlu0 %1299
        %1301 = vrot.lane.b32.xlu0 %v662, 124
        %v1302 = vpop.permute.xlu0 %1301
        %1303 = vrot.lane.b32.xlu0 %v664, 124
        %v1304 = vpop.permute.xlu0 %1303
        %1305 = vrot.lane.b32.xlu0 %v666, 124
        %v1306 = vpop.permute.xlu0 %1305
        %1307 = vrot.lane.b32.xlu0 %v668, 124
        %v1308 = vpop.permute.xlu0 %1307
        %1309 = vrot.lane.b32.xlu0 %v670, 124
        %v1310 = vpop.permute.xlu0 %1309
        %v1311 = vsel %vm687, %v656, 0
        %v1313 = vsel %vm687, %v658, 0
        %v1315 = vsel %vm687, %v660, 0
        %v1317 = vsel %vm687, %v662, 0
        %v1319 = vsel %vm687, %v664, 0
        %v1321 = vsel %vm687, %v666, 0
        %v1323 = vsel %vm687, %v668, 0
        %v1325 = vsel %vm687, %v670, 0
        %v1327 = vsel %vm687, %v1296, 0
        %v1329 = vsel %vm687, %v1298, 0
        %v1331 = vsel %vm687, %v1300, 0
        %v1333 = vsel %vm687, %v1302, 0
        %v1335 = vsel %vm687, %v1304, 0
        %v1337 = vsel %vm687, %v1306, 0
        %v1339 = vsel %vm687, %v1308, 0
        %v1341 = vsel %vm687, %v1310, 0
        %1343 = vmatpush.xpose.msra.mxu0 0.0
        %1344 = vmatpush.xpose.msra.mxu0 0.0
        %1345 = vmatpush.xpose.msra.mxu0 0.0
        %1346 = vmatpush.xpose.msra.mxu0 0.0
        %1347 = vmatpush.xpose.msra.mxu0 0.0
        %1348 = vmatpush.xpose.msra.mxu0 0.0
        %1349 = vmatpush.xpose.msra.mxu0 0.0
        %1350 = vmatpush.xpose.msra.mxu0 0.0
        %1351 = vmatpush.xpose.msra.mxu0 %v1341
        %1352 = vmatpush.xpose.msra.mxu0 %v1339
        %1353 = vmatpush.xpose.msra.mxu0 %v1337
        %1354 = vmatpush.xpose.msra.mxu0 %v1335
        %1355 = vmatpush.xpose.msra.mxu0 %v1333
        %1356 = vmatpush.xpose.msra.mxu0 %v1331
        %1357 = vmatpush.xpose.msra.mxu0 %v1329
        %1358 = vmatpush.xpose.msra.mxu0 %v1327
        %1359 = vmatmul.f32.gmra.mxu0 %v1311
        %v1360 = vpop.f32.mrf.mxu0
        %v1361 = vadd.f32 0.0, %v1360
        %1362 = vmatmul.f32.gmra.mxu0 %v1313
        %v1363 = vpop.f32.mrf.mxu0
        %v1364 = vadd.f32 0.0, %v1363
        %1365 = vmatmul.f32.gmra.mxu0 %v1315
        %v1366 = vpop.f32.mrf.mxu0
        %v1367 = vadd.f32 0.0, %v1366
        %1368 = vmatmul.f32.gmra.mxu0 %v1317
        %v1369 = vpop.f32.mrf.mxu0
        %v1370 = vadd.f32 0.0, %v1369
        %1371 = vmatmul.f32.gmra.mxu0 %v1319
        %v1372 = vpop.f32.mrf.mxu0
        %v1373 = vadd.f32 0.0, %v1372
        %1374 = vmatmul.f32.gmra.mxu0 %v1321
        %v1375 = vpop.f32.mrf.mxu0
        %v1376 = vadd.f32 0.0, %v1375
        %1377 = vmatmul.f32.gmra.mxu0 %v1323
        %v1378 = vpop.f32.mrf.mxu0
        %v1379 = vadd.f32 0.0, %v1378
        %1380 = vmatmul.f32.gmra.mxu0 %v1325
        %v1381 = vpop.f32.mrf.mxu0
        %v1382 = vadd.f32 0.0, %v1381
        %1383 = vdwg.mxu0
        %vm1384 = vcmask 523264
        %v1385 = vsel %vm1384, %v738, -inf
        %1386 = vmax.xlane.f32.xlu0 %v1385
        %v1387 = vpop.xlane.xlu0 %1386
        %v1388 = vsel %vm1384, %v741, -inf
        %1389 = vmax.xlane.f32.xlu0 %v1388
        %v1390 = vpop.xlane.xlu0 %1389
        %v1391 = vsel %vm1384, %v744, -inf
        %1392 = vmax.xlane.f32.xlu0 %v1391
        %v1393 = vpop.xlane.xlu0 %1392
        %v1394 = vsel %vm1384, %v747, -inf
        %1395 = vmax.xlane.f32.xlu0 %v1394
        %v1396 = vpop.xlane.xlu0 %1395
        %v1397 = vsel %vm1384, %v750, -inf
        %1398 = vmax.xlane.f32.xlu0 %v1397
        %v1399 = vpop.xlane.xlu0 %1398
        %v1400 = vsel %vm1384, %v753, -inf
        %1401 = vmax.xlane.f32.xlu0 %v1400
        %v1402 = vpop.xlane.xlu0 %1401
        %v1403 = vsel %vm1384, %v756, -inf
        %1404 = vmax.xlane.f32.xlu0 %v1403
        %v1405 = vpop.xlane.xlu0 %1404
        %v1406 = vsel %vm1384, %v759, -inf
        %1407 = vmax.xlane.f32.xlu0 %v1406
        %v1408 = vpop.xlane.xlu0 %1407
        %v1409 = vsel %vm1384, %v827, -inf
        %1410 = vmax.xlane.f32.xlu0 %v1409
        %v1411 = vpop.xlane.xlu0 %1410
        %v1412 = vsel %vm1384, %v830, -inf
        %1413 = vmax.xlane.f32.xlu0 %v1412
        %v1414 = vpop.xlane.xlu0 %1413
        %v1415 = vsel %vm1384, %v833, -inf
        %1416 = vmax.xlane.f32.xlu0 %v1415
        %v1417 = vpop.xlane.xlu0 %1416
        %v1418 = vsel %vm1384, %v836, -inf
        %1419 = vmax.xlane.f32.xlu0 %v1418
        %v1420 = vpop.xlane.xlu0 %1419
        %v1421 = vsel %vm1384, %v839, -inf
        %1422 = vmax.xlane.f32.xlu0 %v1421
        %v1423 = vpop.xlane.xlu0 %1422
        %v1424 = vsel %vm1384, %v842, -inf
        %1425 = vmax.xlane.f32.xlu0 %v1424
        %v1426 = vpop.xlane.xlu0 %1425
        %v1427 = vsel %vm1384, %v845, -inf
        %1428 = vmax.xlane.f32.xlu0 %v1427
        %v1429 = vpop.xlane.xlu0 %1428
        %v1430 = vsel %vm1384, %v848, -inf
        %1431 = vmax.xlane.f32.xlu0 %v1430
        %v1432 = vpop.xlane.xlu0 %1431
        %v1433 = vsel %vm1384, %v916, -inf
        %1434 = vmax.xlane.f32.xlu0 %v1433
        %v1435 = vpop.xlane.xlu0 %1434
        %v1436 = vsel %vm1384, %v919, -inf
        %1437 = vmax.xlane.f32.xlu0 %v1436
        %v1438 = vpop.xlane.xlu0 %1437
        %v1439 = vsel %vm1384, %v922, -inf
        %1440 = vmax.xlane.f32.xlu0 %v1439
        %v1441 = vpop.xlane.xlu0 %1440
        %v1442 = vsel %vm1384, %v925, -inf
        %1443 = vmax.xlane.f32.xlu0 %v1442
        %v1444 = vpop.xlane.xlu0 %1443
        %v1445 = vsel %vm1384, %v928, -inf
        %1446 = vmax.xlane.f32.xlu0 %v1445
        %v1447 = vpop.xlane.xlu0 %1446
        %v1448 = vsel %vm1384, %v931, -inf
        %1449 = vmax.xlane.f32.xlu0 %v1448
        %v1450 = vpop.xlane.xlu0 %1449
        %v1451 = vsel %vm1384, %v934, -inf
        %1452 = vmax.xlane.f32.xlu0 %v1451
        %v1453 = vpop.xlane.xlu0 %1452
        %v1454 = vsel %vm1384, %v937, -inf
        %1455 = vmax.xlane.f32.xlu0 %v1454
        %v1456 = vpop.xlane.xlu0 %1455
        %v1457 = vsel %vm1384, %v1005, -inf
        %1458 = vmax.xlane.f32.xlu0 %v1457
        %v1459 = vpop.xlane.xlu0 %1458
        %v1460 = vsel %vm1384, %v1008, -inf
        %1461 = vmax.xlane.f32.xlu0 %v1460
        %v1462 = vpop.xlane.xlu0 %1461
        %v1463 = vsel %vm1384, %v1011, -inf
        %1464 = vmax.xlane.f32.xlu0 %v1463
        %v1465 = vpop.xlane.xlu0 %1464
        %v1466 = vsel %vm1384, %v1014, -inf
        %1467 = vmax.xlane.f32.xlu0 %v1466
        %v1468 = vpop.xlane.xlu0 %1467
        %v1469 = vsel %vm1384, %v1017, -inf
        %1470 = vmax.xlane.f32.xlu0 %v1469
        %v1471 = vpop.xlane.xlu0 %1470
        %v1472 = vsel %vm1384, %v1020, -inf
        %1473 = vmax.xlane.f32.xlu0 %v1472
        %v1474 = vpop.xlane.xlu0 %1473
        %v1475 = vsel %vm1384, %v1023, -inf
        %1476 = vmax.xlane.f32.xlu0 %v1475
        %v1477 = vpop.xlane.xlu0 %1476
        %v1478 = vsel %vm1384, %v1026, -inf
        %1479 = vmax.xlane.f32.xlu0 %v1478
        %v1480 = vpop.xlane.xlu0 %1479
        %v1481 = vsel %vm1384, %v1094, -inf
        %1482 = vmax.xlane.f32.xlu0 %v1481
        %v1483 = vpop.xlane.xlu0 %1482
        %v1484 = vsel %vm1384, %v1097, -inf
        %1485 = vmax.xlane.f32.xlu0 %v1484
        %v1486 = vpop.xlane.xlu0 %1485
        %v1487 = vsel %vm1384, %v1100, -inf
        %1488 = vmax.xlane.f32.xlu0 %v1487
        %v1489 = vpop.xlane.xlu0 %1488
        %v1490 = vsel %vm1384, %v1103, -inf
        %1491 = vmax.xlane.f32.xlu0 %v1490
        %v1492 = vpop.xlane.xlu0 %1491
        %v1493 = vsel %vm1384, %v1106, -inf
        %1494 = vmax.xlane.f32.xlu0 %v1493
        %v1495 = vpop.xlane.xlu0 %1494
        %v1496 = vsel %vm1384, %v1109, -inf
        %1497 = vmax.xlane.f32.xlu0 %v1496
        %v1498 = vpop.xlane.xlu0 %1497
        %v1499 = vsel %vm1384, %v1112, -inf
        %1500 = vmax.xlane.f32.xlu0 %v1499
        %v1501 = vpop.xlane.xlu0 %1500
        %v1502 = vsel %vm1384, %v1115, -inf
        %1503 = vmax.xlane.f32.xlu0 %v1502
        %v1504 = vpop.xlane.xlu0 %1503
        %v1505 = vsel %vm1384, %v1183, -inf
        %1506 = vmax.xlane.f32.xlu0 %v1505
        %v1507 = vpop.xlane.xlu0 %1506
        %v1508 = vsel %vm1384, %v1186, -inf
        %1509 = vmax.xlane.f32.xlu0 %v1508
        %v1510 = vpop.xlane.xlu0 %1509
        %v1511 = vsel %vm1384, %v1189, -inf
        %1512 = vmax.xlane.f32.xlu0 %v1511
        %v1513 = vpop.xlane.xlu0 %1512
        %v1514 = vsel %vm1384, %v1192, -inf
        %1515 = vmax.xlane.f32.xlu0 %v1514
        %v1516 = vpop.xlane.xlu0 %1515
        %v1517 = vsel %vm1384, %v1195, -inf
        %1518 = vmax.xlane.f32.xlu0 %v1517
        %v1519 = vpop.xlane.xlu0 %1518
        %v1520 = vsel %vm1384, %v1198, -inf
        %1521 = vmax.xlane.f32.xlu0 %v1520
        %v1522 = vpop.xlane.xlu0 %1521
        %v1523 = vsel %vm1384, %v1201, -inf
        %1524 = vmax.xlane.f32.xlu0 %v1523
        %v1525 = vpop.xlane.xlu0 %1524
        %v1526 = vsel %vm1384, %v1204, -inf
        %1527 = vmax.xlane.f32.xlu0 %v1526
        %v1528 = vpop.xlane.xlu0 %1527
        %v1529 = vsel %vm1384, %v1272, -inf
        %1530 = vmax.xlane.f32.xlu0 %v1529
        %v1531 = vpop.xlane.xlu0 %1530
        %v1532 = vsel %vm1384, %v1275, -inf
        %1533 = vmax.xlane.f32.xlu0 %v1532
        %v1534 = vpop.xlane.xlu0 %1533
        %v1535 = vsel %vm1384, %v1278, -inf
        %1536 = vmax.xlane.f32.xlu0 %v1535
        %v1537 = vpop.xlane.xlu0 %1536
        %v1538 = vsel %vm1384, %v1281, -inf
        %1539 = vmax.xlane.f32.xlu0 %v1538
        %v1540 = vpop.xlane.xlu0 %1539
        %v1541 = vsel %vm1384, %v1284, -inf
        %1542 = vmax.xlane.f32.xlu0 %v1541
        %v1543 = vpop.xlane.xlu0 %1542
        %v1544 = vsel %vm1384, %v1287, -inf
        %1545 = vmax.xlane.f32.xlu0 %v1544
        %v1546 = vpop.xlane.xlu0 %1545
        %v1547 = vsel %vm1384, %v1290, -inf
        %1548 = vmax.xlane.f32.xlu0 %v1547
        %v1549 = vpop.xlane.xlu0 %1548
        %v1550 = vsel %vm1384, %v1293, -inf
        %1551 = vmax.xlane.f32.xlu0 %v1550
        %v1552 = vpop.xlane.xlu0 %1551
        %v1553 = vsel %vm1384, %v1361, -inf
        %1554 = vmax.xlane.f32.xlu0 %v1553
        %v1555 = vpop.xlane.xlu0 %1554
        %v1556 = vsel %vm1384, %v1364, -inf
        %1557 = vmax.xlane.f32.xlu0 %v1556
        %v1558 = vpop.xlane.xlu0 %1557
        %v1559 = vsel %vm1384, %v1367, -inf
        %1560 = vmax.xlane.f32.xlu0 %v1559
        %v1561 = vpop.xlane.xlu0 %1560
        %v1562 = vsel %vm1384, %v1370, -inf
        %1563 = vmax.xlane.f32.xlu0 %v1562
        %v1564 = vpop.xlane.xlu0 %1563
        %v1565 = vsel %vm1384, %v1373, -inf
        %1566 = vmax.xlane.f32.xlu0 %v1565
        %v1567 = vpop.xlane.xlu0 %1566
        %v1568 = vsel %vm1384, %v1376, -inf
        %1569 = vmax.xlane.f32.xlu0 %v1568
        %v1570 = vpop.xlane.xlu0 %1569
        %v1571 = vsel %vm1384, %v1379, -inf
        %1572 = vmax.xlane.f32.xlu0 %v1571
        %v1573 = vpop.xlane.xlu0 %1572
        %v1574 = vsel %vm1384, %v1382, -inf
        %1575 = vmax.xlane.f32.xlu0 %v1574
        %v1576 = vpop.xlane.xlu0 %1575
        %v1577 = vsub.f32 %v738, %v1387
        %v1578 = vsub.f32 %v741, %v1390
        %v1579 = vsub.f32 %v744, %v1393
        %v1580 = vsub.f32 %v747, %v1396
        %v1581 = vsub.f32 %v750, %v1399
        %v1582 = vsub.f32 %v753, %v1402
        %v1583 = vsub.f32 %v756, %v1405
        %v1584 = vsub.f32 %v759, %v1408
        %v1585 = vsub.f32 %v827, %v1411
        %v1586 = vsub.f32 %v830, %v1414
        %v1587 = vsub.f32 %v833, %v1417
        %v1588 = vsub.f32 %v836, %v1420
        %v1589 = vsub.f32 %v839, %v1423
        %v1590 = vsub.f32 %v842, %v1426
        %v1591 = vsub.f32 %v845, %v1429
        %v1592 = vsub.f32 %v848, %v1432
        %v1593 = vsub.f32 %v916, %v1435
        %v1594 = vsub.f32 %v919, %v1438
        %v1595 = vsub.f32 %v922, %v1441
        %v1596 = vsub.f32 %v925, %v1444
        %v1597 = vsub.f32 %v928, %v1447
        %v1598 = vsub.f32 %v931, %v1450
        %v1599 = vsub.f32 %v934, %v1453
        %v1600 = vsub.f32 %v937, %v1456
        %v1601 = vsub.f32 %v1005, %v1459
        %v1602 = vsub.f32 %v1008, %v1462
        %v1603 = vsub.f32 %v1011, %v1465
        %v1604 = vsub.f32 %v1014, %v1468
        %v1605 = vsub.f32 %v1017, %v1471
        %v1606 = vsub.f32 %v1020, %v1474
        %v1607 = vsub.f32 %v1023, %v1477
        %v1608 = vsub.f32 %v1026, %v1480
        %v1609 = vsub.f32 %v1094, %v1483
        %v1610 = vsub.f32 %v1097, %v1486
        %v1611 = vsub.f32 %v1100, %v1489
        %v1612 = vsub.f32 %v1103, %v1492
        %v1613 = vsub.f32 %v1106, %v1495
        %v1614 = vsub.f32 %v1109, %v1498
        %v1615 = vsub.f32 %v1112, %v1501
        %v1616 = vsub.f32 %v1115, %v1504
        %v1617 = vsub.f32 %v1183, %v1507
        %v1618 = vsub.f32 %v1186, %v1510
        %v1619 = vsub.f32 %v1189, %v1513
        %v1620 = vsub.f32 %v1192, %v1516
        %v1621 = vsub.f32 %v1195, %v1519
        %v1622 = vsub.f32 %v1198, %v1522
        %v1623 = vsub.f32 %v1201, %v1525
        %v1624 = vsub.f32 %v1204, %v1528
        %v1625 = vsub.f32 %v1272, %v1531
        %v1626 = vsub.f32 %v1275, %v1534
        %v1627 = vsub.f32 %v1278, %v1537
        %v1628 = vsub.f32 %v1281, %v1540
        %v1629 = vsub.f32 %v1284, %v1543
        %v1630 = vsub.f32 %v1287, %v1546
        %v1631 = vsub.f32 %v1290, %v1549
        %v1632 = vsub.f32 %v1293, %v1552
        %v1633 = vsub.f32 %v1361, %v1555
        %v1634 = vsub.f32 %v1364, %v1558
        %v1635 = vsub.f32 %v1367, %v1561
        %v1636 = vsub.f32 %v1370, %v1564
        %v1637 = vsub.f32 %v1373, %v1567
        %v1638 = vsub.f32 %v1376, %v1570
        %v1639 = vsub.f32 %v1379, %v1573
        %v1640 = vsub.f32 %v1382, %v1576
        %v1641 = vmul.f32 %v1577, 1.442695
        %v1642 = vpow.pop %v1641
        %v1643 = vmul.f32 %v1578, 1.442695
        %v1644 = vpow.pop %v1643
        %v1645 = vmul.f32 %v1579, 1.442695
        %v1646 = vpow.pop %v1645
        %v1647 = vmul.f32 %v1580, 1.442695
        %v1648 = vpow.pop %v1647
        %v1649 = vmul.f32 %v1581, 1.442695
        %v1650 = vpow.pop %v1649
        %v1651 = vmul.f32 %v1582, 1.442695
        %v1652 = vpow.pop %v1651
        %v1653 = vmul.f32 %v1583, 1.442695
        %v1654 = vpow.pop %v1653
        %v1655 = vmul.f32 %v1584, 1.442695
        %v1656 = vpow.pop %v1655
        %v1657 = vmul.f32 %v1585, 1.442695
        %v1658 = vpow.pop %v1657
        %v1659 = vmul.f32 %v1586, 1.442695
        %v1660 = vpow.pop %v1659
        %v1661 = vmul.f32 %v1587, 1.442695
        %v1662 = vpow.pop %v1661
        %v1663 = vmul.f32 %v1588, 1.442695
        %v1664 = vpow.pop %v1663
        %v1665 = vmul.f32 %v1589, 1.442695
        %v1666 = vpow.pop %v1665
        %v1667 = vmul.f32 %v1590, 1.442695
        %v1668 = vpow.pop %v1667
        %v1669 = vmul.f32 %v1591, 1.442695
        %v1670 = vpow.pop %v1669
        %v1671 = vmul.f32 %v1592, 1.442695
        %v1672 = vpow.pop %v1671
        %v1673 = vmul.f32 %v1593, 1.442695
        %v1674 = vpow.pop %v1673
        %v1675 = vmul.f32 %v1594, 1.442695
        %v1676 = vpow.pop %v1675
        %v1677 = vmul.f32 %v1595, 1.442695
        %v1678 = vpow.pop %v1677
        %v1679 = vmul.f32 %v1596, 1.442695
        %v1680 = vpow.pop %v1679
        %v1681 = vmul.f32 %v1597, 1.442695
        %v1682 = vpow.pop %v1681
        %v1683 = vmul.f32 %v1598, 1.442695
        %v1684 = vpow.pop %v1683
        %v1685 = vmul.f32 %v1599, 1.442695
        %v1686 = vpow.pop %v1685
        %v1687 = vmul.f32 %v1600, 1.442695
        %v1688 = vpow.pop %v1687
        %v1689 = vmul.f32 %v1601, 1.442695
        %v1690 = vpow.pop %v1689
        %v1691 = vmul.f32 %v1602, 1.442695
        %v1692 = vpow.pop %v1691
        %v1693 = vmul.f32 %v1603, 1.442695
        %v1694 = vpow.pop %v1693
        %v1695 = vmul.f32 %v1604, 1.442695
        %v1696 = vpow.pop %v1695
        %v1697 = vmul.f32 %v1605, 1.442695
        %v1698 = vpow.pop %v1697
        %v1699 = vmul.f32 %v1606, 1.442695
        %v1700 = vpow.pop %v1699
        %v1701 = vmul.f32 %v1607, 1.442695
        %v1702 = vpow.pop %v1701
        %v1703 = vmul.f32 %v1608, 1.442695
        %v1704 = vpow.pop %v1703
        %v1705 = vmul.f32 %v1609, 1.442695
        %v1706 = vpow.pop %v1705
        %v1707 = vmul.f32 %v1610, 1.442695
        %v1708 = vpow.pop %v1707
        %v1709 = vmul.f32 %v1611, 1.442695
        %v1710 = vpow.pop %v1709
        %v1711 = vmul.f32 %v1612, 1.442695
        %v1712 = vpow.pop %v1711
        %v1713 = vmul.f32 %v1613, 1.442695
        %v1714 = vpow.pop %v1713
        %v1715 = vmul.f32 %v1614, 1.442695
        %v1716 = vpow.pop %v1715
        %v1717 = vmul.f32 %v1615, 1.442695
        %v1718 = vpow.pop %v1717
        %v1719 = vmul.f32 %v1616, 1.442695
        %v1720 = vpow.pop %v1719
        %v1721 = vmul.f32 %v1617, 1.442695
        %v1722 = vpow.pop %v1721
        %v1723 = vmul.f32 %v1618, 1.442695
        %v1724 = vpow.pop %v1723
        %v1725 = vmul.f32 %v1619, 1.442695
        %v1726 = vpow.pop %v1725
        %v1727 = vmul.f32 %v1620, 1.442695
        %v1728 = vpow.pop %v1727
        %v1729 = vmul.f32 %v1621, 1.442695
        %v1730 = vpow.pop %v1729
        %v1731 = vmul.f32 %v1622, 1.442695
        %v1732 = vpow.pop %v1731
        %v1733 = vmul.f32 %v1623, 1.442695
        %v1734 = vpow.pop %v1733
        %v1735 = vmul.f32 %v1624, 1.442695
        %v1736 = vpow.pop %v1735
        %v1737 = vmul.f32 %v1625, 1.442695
        %v1738 = vpow.pop %v1737
        %v1739 = vmul.f32 %v1626, 1.442695
        %v1740 = vpow.pop %v1739
        %v1741 = vmul.f32 %v1627, 1.442695
        %v1742 = vpow.pop %v1741
        %v1743 = vmul.f32 %v1628, 1.442695
        %v1744 = vpow.pop %v1743
        %v1745 = vmul.f32 %v1629, 1.442695
        %v1746 = vpow.pop %v1745
        %v1747 = vmul.f32 %v1630, 1.442695
        %v1748 = vpow.pop %v1747
        %v1749 = vmul.f32 %v1631, 1.442695
        %v1750 = vpow.pop %v1749
        %v1751 = vmul.f32 %v1632, 1.442695
        %v1752 = vpow.pop %v1751
        %v1753 = vmul.f32 %v1633, 1.442695
        %v1754 = vpow.pop %v1753
        %v1755 = vmul.f32 %v1634, 1.442695
        %v1756 = vpow.pop %v1755
        %v1757 = vmul.f32 %v1635, 1.442695
        %v1758 = vpow.pop %v1757
        %v1759 = vmul.f32 %v1636, 1.442695
        %v1760 = vpow.pop %v1759
        %v1761 = vmul.f32 %v1637, 1.442695
        %v1762 = vpow.pop %v1761
        %v1763 = vmul.f32 %v1638, 1.442695
        %v1764 = vpow.pop %v1763
        %v1765 = vmul.f32 %v1639, 1.442695
        %v1766 = vpow.pop %v1765
        %v1767 = vmul.f32 %v1640, 1.442695
        %v1768 = vpow.pop %v1767
        %1769 = vrot.lane.b32.xlu0 %v528, 120
        %v1770 = vpop.permute.xlu0 %1769
        %1771 = vrot.lane.b32.xlu0 %v531, 120
        %v1772 = vpop.permute.xlu0 %1771
        %1773 = vrot.lane.b32.xlu0 %v534, 120
        %v1774 = vpop.permute.xlu0 %1773
        %1775 = vrot.lane.b32.xlu0 %v537, 120
        %v1776 = vpop.permute.xlu0 %1775
        %1777 = vrot.lane.b32.xlu0 %v540, 120
        %v1778 = vpop.permute.xlu0 %1777
        %1779 = vrot.lane.b32.xlu0 %v543, 120
        %v1780 = vpop.permute.xlu0 %1779
        %1781 = vrot.lane.b32.xlu0 %v546, 120
        %v1782 = vpop.permute.xlu0 %1781
        %1783 = vrot.lane.b32.xlu0 %v549, 120
        %v1784 = vpop.permute.xlu0 %1783
        %v1794 = vsel %vm1384, %v1642, 0
        %v1797 = vsel %vm1384, %v1644, 0
        %v1800 = vsel %vm1384, %v1646, 0
        %v1803 = vsel %vm1384, %v1648, 0
        %v1806 = vsel %vm1384, %v1650, 0
        %v1809 = vsel %vm1384, %v1652, 0
        %v1812 = vsel %vm1384, %v1654, 0
        %v1815 = vsel %vm1384, %v1656, 0
        %1817 = vmatpush.msra.mxu0 0.0
        %1818 = vmatpush.msra.mxu0 0.0
        %1819 = vmatpush.msra.mxu0 0.0
        %1820 = vmatpush.msra.mxu0 0.0
        %1821 = vmatpush.msra.mxu0 0.0
        %1822 = vmatpush.msra.mxu0 0.0
        %1823 = vmatpush.msra.mxu0 0.0
        %1824 = vmatpush.msra.mxu0 0.0
        %1825 = vmatpush.msra.mxu0 %v1784
        %1826 = vmatpush.msra.mxu0 %v1782
        %1827 = vmatpush.msra.mxu0 %v1780
        %1828 = vmatpush.msra.mxu0 %v1778
        %1829 = vmatpush.msra.mxu0 %v1776
        %1830 = vmatpush.msra.mxu0 %v1774
        %1831 = vmatpush.msra.mxu0 %v1772
        %1832 = vmatpush.msra.mxu0 %v1770
        %1833 = vmatmul.f32.gmra.mxu0 %v1794
        %v1834 = vpop.f32.mrf.mxu0
        %v1835 = vadd.f32 0.0, %v1834
        %1836 = vmatmul.f32.gmra.mxu0 %v1797
        %v1837 = vpop.f32.mrf.mxu0
        %v1838 = vadd.f32 0.0, %v1837
        %1839 = vmatmul.f32.gmra.mxu0 %v1800
        %v1840 = vpop.f32.mrf.mxu0
        %v1841 = vadd.f32 0.0, %v1840
        %1842 = vmatmul.f32.gmra.mxu0 %v1803
        %v1843 = vpop.f32.mrf.mxu0
        %v1844 = vadd.f32 0.0, %v1843
        %1845 = vmatmul.f32.gmra.mxu0 %v1806
        %v1846 = vpop.f32.mrf.mxu0
        %v1847 = vadd.f32 0.0, %v1846
        %1848 = vmatmul.f32.gmra.mxu0 %v1809
        %v1849 = vpop.f32.mrf.mxu0
        %v1850 = vadd.f32 0.0, %v1849
        %1851 = vmatmul.f32.gmra.mxu0 %v1812
        %v1852 = vpop.f32.mrf.mxu0
        %v1853 = vadd.f32 0.0, %v1852
        %1854 = vmatmul.f32.gmra.mxu0 %v1815
        %v1855 = vpop.f32.mrf.mxu0
        %v1856 = vadd.f32 0.0, %v1855
        %1857 = vdwg.mxu0
        %1858 = vrot.lane.b32.xlu0 %v560, 120
        %v1859 = vpop.permute.xlu0 %1858
        %1860 = vrot.lane.b32.xlu0 %v562, 120
        %v1861 = vpop.permute.xlu0 %1860
        %1862 = vrot.lane.b32.xlu0 %v564, 120
        %v1863 = vpop.permute.xlu0 %1862
        %1864 = vrot.lane.b32.xlu0 %v566, 120
        %v1865 = vpop.permute.xlu0 %1864
        %1866 = vrot.lane.b32.xlu0 %v568, 120
        %v1867 = vpop.permute.xlu0 %1866
        %1868 = vrot.lane.b32.xlu0 %v570, 120
        %v1869 = vpop.permute.xlu0 %1868
        %1870 = vrot.lane.b32.xlu0 %v572, 120
        %v1871 = vpop.permute.xlu0 %1870
        %1872 = vrot.lane.b32.xlu0 %v574, 120
        %v1873 = vpop.permute.xlu0 %1872
        %v1883 = vsel %vm1384, %v1658, 0
        %v1886 = vsel %vm1384, %v1660, 0
        %v1889 = vsel %vm1384, %v1662, 0
        %v1892 = vsel %vm1384, %v1664, 0
        %v1895 = vsel %vm1384, %v1666, 0
        %v1898 = vsel %vm1384, %v1668, 0
        %v1901 = vsel %vm1384, %v1670, 0
        %v1904 = vsel %vm1384, %v1672, 0
        %1906 = vmatpush.msra.mxu0 0.0
        %1907 = vmatpush.msra.mxu0 0.0
        %1908 = vmatpush.msra.mxu0 0.0
        %1909 = vmatpush.msra.mxu0 0.0
        %1910 = vmatpush.msra.mxu0 0.0
        %1911 = vmatpush.msra.mxu0 0.0
        %1912 = vmatpush.msra.mxu0 0.0
        %1913 = vmatpush.msra.mxu0 0.0
        %1914 = vmatpush.msra.mxu0 %v1873
        %1915 = vmatpush.msra.mxu0 %v1871
        %1916 = vmatpush.msra.mxu0 %v1869
        %1917 = vmatpush.msra.mxu0 %v1867
        %1918 = vmatpush.msra.mxu0 %v1865
        %1919 = vmatpush.msra.mxu0 %v1863
        %1920 = vmatpush.msra.mxu0 %v1861
        %1921 = vmatpush.msra.mxu0 %v1859
        %1922 = vmatmul.f32.gmra.mxu0 %v1883
        %v1923 = vpop.f32.mrf.mxu0
        %v1924 = vadd.f32 0.0, %v1923
        %1925 = vmatmul.f32.gmra.mxu0 %v1886
        %v1926 = vpop.f32.mrf.mxu0
        %v1927 = vadd.f32 0.0, %v1926
        %1928 = vmatmul.f32.gmra.mxu0 %v1889
        %v1929 = vpop.f32.mrf.mxu0
        %v1930 = vadd.f32 0.0, %v1929
        %1931 = vmatmul.f32.gmra.mxu0 %v1892
        %v1932 = vpop.f32.mrf.mxu0
        %v1933 = vadd.f32 0.0, %v1932
        %1934 = vmatmul.f32.gmra.mxu0 %v1895
        %v1935 = vpop.f32.mrf.mxu0
        %v1936 = vadd.f32 0.0, %v1935
        %1937 = vmatmul.f32.gmra.mxu0 %v1898
        %v1938 = vpop.f32.mrf.mxu0
        %v1939 = vadd.f32 0.0, %v1938
        %1940 = vmatmul.f32.gmra.mxu0 %v1901
        %v1941 = vpop.f32.mrf.mxu0
        %v1942 = vadd.f32 0.0, %v1941
        %1943 = vmatmul.f32.gmra.mxu0 %v1904
        %v1944 = vpop.f32.mrf.mxu0
        %v1945 = vadd.f32 0.0, %v1944
        %1946 = vdwg.mxu0
        %1947 = vrot.lane.b32.xlu0 %v576, 120
        %v1948 = vpop.permute.xlu0 %1947
        %1949 = vrot.lane.b32.xlu0 %v578, 120
        %v1950 = vpop.permute.xlu0 %1949
        %1951 = vrot.lane.b32.xlu0 %v580, 120
        %v1952 = vpop.permute.xlu0 %1951
        %1953 = vrot.lane.b32.xlu0 %v582, 120
        %v1954 = vpop.permute.xlu0 %1953
        %1955 = vrot.lane.b32.xlu0 %v584, 120
        %v1956 = vpop.permute.xlu0 %1955
        %1957 = vrot.lane.b32.xlu0 %v586, 120
        %v1958 = vpop.permute.xlu0 %1957
        %1959 = vrot.lane.b32.xlu0 %v588, 120
        %v1960 = vpop.permute.xlu0 %1959
        %1961 = vrot.lane.b32.xlu0 %v590, 120
        %v1962 = vpop.permute.xlu0 %1961
        %v1972 = vsel %vm1384, %v1674, 0
        %v1975 = vsel %vm1384, %v1676, 0
        %v1978 = vsel %vm1384, %v1678, 0
        %v1981 = vsel %vm1384, %v1680, 0
        %v1984 = vsel %vm1384, %v1682, 0
        %v1987 = vsel %vm1384, %v1684, 0
        %v1990 = vsel %vm1384, %v1686, 0
        %v1993 = vsel %vm1384, %v1688, 0
        %1995 = vmatpush.msra.mxu0 0.0
        %1996 = vmatpush.msra.mxu0 0.0
        %1997 = vmatpush.msra.mxu0 0.0
        %1998 = vmatpush.msra.mxu0 0.0
        %1999 = vmatpush.msra.mxu0 0.0
        %2000 = vmatpush.msra.mxu0 0.0
        %2001 = vmatpush.msra.mxu0 0.0
        %2002 = vmatpush.msra.mxu0 0.0
        %2003 = vmatpush.msra.mxu0 %v1962
        %2004 = vmatpush.msra.mxu0 %v1960
        %2005 = vmatpush.msra.mxu0 %v1958
        %2006 = vmatpush.msra.mxu0 %v1956
        %2007 = vmatpush.msra.mxu0 %v1954
        %2008 = vmatpush.msra.mxu0 %v1952
        %2009 = vmatpush.msra.mxu0 %v1950
        %2010 = vmatpush.msra.mxu0 %v1948
        %2011 = vmatmul.f32.gmra.mxu0 %v1972
        %v2012 = vpop.f32.mrf.mxu0
        %v2013 = vadd.f32 0.0, %v2012
        %2014 = vmatmul.f32.gmra.mxu0 %v1975
        %v2015 = vpop.f32.mrf.mxu0
        %v2016 = vadd.f32 0.0, %v2015
        %2017 = vmatmul.f32.gmra.mxu0 %v1978
        %v2018 = vpop.f32.mrf.mxu0
        %v2019 = vadd.f32 0.0, %v2018
        %2020 = vmatmul.f32.gmra.mxu0 %v1981
        %v2021 = vpop.f32.mrf.mxu0
        %v2022 = vadd.f32 0.0, %v2021
        %2023 = vmatmul.f32.gmra.mxu0 %v1984
        %v2024 = vpop.f32.mrf.mxu0
        %v2025 = vadd.f32 0.0, %v2024
        %2026 = vmatmul.f32.gmra.mxu0 %v1987
        %v2027 = vpop.f32.mrf.mxu0
        %v2028 = vadd.f32 0.0, %v2027
        %2029 = vmatmul.f32.gmra.mxu0 %v1990
        %v2030 = vpop.f32.mrf.mxu0
        %v2031 = vadd.f32 0.0, %v2030
        %2032 = vmatmul.f32.gmra.mxu0 %v1993
        %v2033 = vpop.f32.mrf.mxu0
        %v2034 = vadd.f32 0.0, %v2033
        %2035 = vdwg.mxu0
        %2036 = vrot.lane.b32.xlu0 %v592, 120
        %v2037 = vpop.permute.xlu0 %2036
        %2038 = vrot.lane.b32.xlu0 %v594, 120
        %v2039 = vpop.permute.xlu0 %2038
        %2040 = vrot.lane.b32.xlu0 %v596, 120
        %v2041 = vpop.permute.xlu0 %2040
        %2042 = vrot.lane.b32.xlu0 %v598, 120
        %v2043 = vpop.permute.xlu0 %2042
        %2044 = vrot.lane.b32.xlu0 %v600, 120
        %v2045 = vpop.permute.xlu0 %2044
        %2046 = vrot.lane.b32.xlu0 %v602, 120
        %v2047 = vpop.permute.xlu0 %2046
        %2048 = vrot.lane.b32.xlu0 %v604, 120
        %v2049 = vpop.permute.xlu0 %2048
        %2050 = vrot.lane.b32.xlu0 %v606, 120
        %v2051 = vpop.permute.xlu0 %2050
        %v2061 = vsel %vm1384, %v1690, 0
        %v2064 = vsel %vm1384, %v1692, 0
        %v2067 = vsel %vm1384, %v1694, 0
        %v2070 = vsel %vm1384, %v1696, 0
        %v2073 = vsel %vm1384, %v1698, 0
        %v2076 = vsel %vm1384, %v1700, 0
        %v2079 = vsel %vm1384, %v1702, 0
        %v2082 = vsel %vm1384, %v1704, 0
        %2084 = vmatpush.msra.mxu0 0.0
        %2085 = vmatpush.msra.mxu0 0.0
        %2086 = vmatpush.msra.mxu0 0.0
        %2087 = vmatpush.msra.mxu0 0.0
        %2088 = vmatpush.msra.mxu0 0.0
        %2089 = vmatpush.msra.mxu0 0.0
        %2090 = vmatpush.msra.mxu0 0.0
        %2091 = vmatpush.msra.mxu0 0.0
        %2092 = vmatpush.msra.mxu0 %v2051
        %2093 = vmatpush.msra.mxu0 %v2049
        %2094 = vmatpush.msra.mxu0 %v2047
        %2095 = vmatpush.msra.mxu0 %v2045
        %2096 = vmatpush.msra.mxu0 %v2043
        %2097 = vmatpush.msra.mxu0 %v2041
        %2098 = vmatpush.msra.mxu0 %v2039
        %2099 = vmatpush.msra.mxu0 %v2037
        %2100 = vmatmul.f32.gmra.mxu0 %v2061
        %v2101 = vpop.f32.mrf.mxu0
        %v2102 = vadd.f32 0.0, %v2101
        %2103 = vmatmul.f32.gmra.mxu0 %v2064
        %v2104 = vpop.f32.mrf.mxu0
        %v2105 = vadd.f32 0.0, %v2104
        %2106 = vmatmul.f32.gmra.mxu0 %v2067
        %v2107 = vpop.f32.mrf.mxu0
        %v2108 = vadd.f32 0.0, %v2107
        %2109 = vmatmul.f32.gmra.mxu0 %v2070
        %v2110 = vpop.f32.mrf.mxu0
        %v2111 = vadd.f32 0.0, %v2110
        %2112 = vmatmul.f32.gmra.mxu0 %v2073
        %v2113 = vpop.f32.mrf.mxu0
        %v2114 = vadd.f32 0.0, %v2113
        %2115 = vmatmul.f32.gmra.mxu0 %v2076
        %v2116 = vpop.f32.mrf.mxu0
        %v2117 = vadd.f32 0.0, %v2116
        %2118 = vmatmul.f32.gmra.mxu0 %v2079
        %v2119 = vpop.f32.mrf.mxu0
        %v2120 = vadd.f32 0.0, %v2119
        %2121 = vmatmul.f32.gmra.mxu0 %v2082
        %v2122 = vpop.f32.mrf.mxu0
        %v2123 = vadd.f32 0.0, %v2122
        %2124 = vdwg.mxu0
        %2125 = vrot.lane.b32.xlu0 %v608, 120
        %v2126 = vpop.permute.xlu0 %2125
        %2127 = vrot.lane.b32.xlu0 %v610, 120
        %v2128 = vpop.permute.xlu0 %2127
        %2129 = vrot.lane.b32.xlu0 %v612, 120
        %v2130 = vpop.permute.xlu0 %2129
        %2131 = vrot.lane.b32.xlu0 %v614, 120
        %v2132 = vpop.permute.xlu0 %2131
        %2133 = vrot.lane.b32.xlu0 %v616, 120
        %v2134 = vpop.permute.xlu0 %2133
        %2135 = vrot.lane.b32.xlu0 %v618, 120
        %v2136 = vpop.permute.xlu0 %2135
        %2137 = vrot.lane.b32.xlu0 %v620, 120
        %v2138 = vpop.permute.xlu0 %2137
        %2139 = vrot.lane.b32.xlu0 %v622, 120
        %v2140 = vpop.permute.xlu0 %2139
        %v2150 = vsel %vm1384, %v1706, 0
        %v2153 = vsel %vm1384, %v1708, 0
        %v2156 = vsel %vm1384, %v1710, 0
        %v2159 = vsel %vm1384, %v1712, 0
        %v2162 = vsel %vm1384, %v1714, 0
        %v2165 = vsel %vm1384, %v1716, 0
        %v2168 = vsel %vm1384, %v1718, 0
        %v2171 = vsel %vm1384, %v1720, 0
        %2173 = vmatpush.msra.mxu0 0.0
        %2174 = vmatpush.msra.mxu0 0.0
        %2175 = vmatpush.msra.mxu0 0.0
        %2176 = vmatpush.msra.mxu0 0.0
        %2177 = vmatpush.msra.mxu0 0.0
        %2178 = vmatpush.msra.mxu0 0.0
        %2179 = vmatpush.msra.mxu0 0.0
        %2180 = vmatpush.msra.mxu0 0.0
        %2181 = vmatpush.msra.mxu0 %v2140
        %2182 = vmatpush.msra.mxu0 %v2138
        %2183 = vmatpush.msra.mxu0 %v2136
        %2184 = vmatpush.msra.mxu0 %v2134
        %2185 = vmatpush.msra.mxu0 %v2132
        %2186 = vmatpush.msra.mxu0 %v2130
        %2187 = vmatpush.msra.mxu0 %v2128
        %2188 = vmatpush.msra.mxu0 %v2126
        %2189 = vmatmul.f32.gmra.mxu0 %v2150
        %v2190 = vpop.f32.mrf.mxu0
        %v2191 = vadd.f32 0.0, %v2190
        %2192 = vmatmul.f32.gmra.mxu0 %v2153
        %v2193 = vpop.f32.mrf.mxu0
        %v2194 = vadd.f32 0.0, %v2193
        %2195 = vmatmul.f32.gmra.mxu0 %v2156
        %v2196 = vpop.f32.mrf.mxu0
        %v2197 = vadd.f32 0.0, %v2196
        %2198 = vmatmul.f32.gmra.mxu0 %v2159
        %v2199 = vpop.f32.mrf.mxu0
        %v2200 = vadd.f32 0.0, %v2199
        %2201 = vmatmul.f32.gmra.mxu0 %v2162
        %v2202 = vpop.f32.mrf.mxu0
        %v2203 = vadd.f32 0.0, %v2202
        %2204 = vmatmul.f32.gmra.mxu0 %v2165
        %v2205 = vpop.f32.mrf.mxu0
        %v2206 = vadd.f32 0.0, %v2205
        %2207 = vmatmul.f32.gmra.mxu0 %v2168
        %v2208 = vpop.f32.mrf.mxu0
        %v2209 = vadd.f32 0.0, %v2208
        %2210 = vmatmul.f32.gmra.mxu0 %v2171
        %v2211 = vpop.f32.mrf.mxu0
        %v2212 = vadd.f32 0.0, %v2211
        %2213 = vdwg.mxu0
        %2214 = vrot.lane.b32.xlu0 %v624, 120
        %v2215 = vpop.permute.xlu0 %2214
        %2216 = vrot.lane.b32.xlu0 %v626, 120
        %v2217 = vpop.permute.xlu0 %2216
        %2218 = vrot.lane.b32.xlu0 %v628, 120
        %v2219 = vpop.permute.xlu0 %2218
        %2220 = vrot.lane.b32.xlu0 %v630, 120
        %v2221 = vpop.permute.xlu0 %2220
        %2222 = vrot.lane.b32.xlu0 %v632, 120
        %v2223 = vpop.permute.xlu0 %2222
        %2224 = vrot.lane.b32.xlu0 %v634, 120
        %v2225 = vpop.permute.xlu0 %2224
        %2226 = vrot.lane.b32.xlu0 %v636, 120
        %v2227 = vpop.permute.xlu0 %2226
        %2228 = vrot.lane.b32.xlu0 %v638, 120
        %v2229 = vpop.permute.xlu0 %2228
        %v2239 = vsel %vm1384, %v1722, 0
        %v2242 = vsel %vm1384, %v1724, 0
        %v2245 = vsel %vm1384, %v1726, 0
        %v2248 = vsel %vm1384, %v1728, 0
        %v2251 = vsel %vm1384, %v1730, 0
        %v2254 = vsel %vm1384, %v1732, 0
        %v2257 = vsel %vm1384, %v1734, 0
        %v2260 = vsel %vm1384, %v1736, 0
        %2262 = vmatpush.msra.mxu0 0.0
        %2263 = vmatpush.msra.mxu0 0.0
        %2264 = vmatpush.msra.mxu0 0.0
        %2265 = vmatpush.msra.mxu0 0.0
        %2266 = vmatpush.msra.mxu0 0.0
        %2267 = vmatpush.msra.mxu0 0.0
        %2268 = vmatpush.msra.mxu0 0.0
        %2269 = vmatpush.msra.mxu0 0.0
        %2270 = vmatpush.msra.mxu0 %v2229
        %2271 = vmatpush.msra.mxu0 %v2227
        %2272 = vmatpush.msra.mxu0 %v2225
        %2273 = vmatpush.msra.mxu0 %v2223
        %2274 = vmatpush.msra.mxu0 %v2221
        %2275 = vmatpush.msra.mxu0 %v2219
        %2276 = vmatpush.msra.mxu0 %v2217
        %2277 = vmatpush.msra.mxu0 %v2215
        %2278 = vmatmul.f32.gmra.mxu0 %v2239
        %v2279 = vpop.f32.mrf.mxu0
        %v2280 = vadd.f32 0.0, %v2279
        %2281 = vmatmul.f32.gmra.mxu0 %v2242
        %v2282 = vpop.f32.mrf.mxu0
        %v2283 = vadd.f32 0.0, %v2282
        %2284 = vmatmul.f32.gmra.mxu0 %v2245
        %v2285 = vpop.f32.mrf.mxu0
        %v2286 = vadd.f32 0.0, %v2285
        %2287 = vmatmul.f32.gmra.mxu0 %v2248
        %v2288 = vpop.f32.mrf.mxu0
        %v2289 = vadd.f32 0.0, %v2288
        %2290 = vmatmul.f32.gmra.mxu0 %v2251
        %v2291 = vpop.f32.mrf.mxu0
        %v2292 = vadd.f32 0.0, %v2291
        %2293 = vmatmul.f32.gmra.mxu0 %v2254
        %v2294 = vpop.f32.mrf.mxu0
        %v2295 = vadd.f32 0.0, %v2294
        %2296 = vmatmul.f32.gmra.mxu0 %v2257
        %v2297 = vpop.f32.mrf.mxu0
        %v2298 = vadd.f32 0.0, %v2297
        %2299 = vmatmul.f32.gmra.mxu0 %v2260
        %v2300 = vpop.f32.mrf.mxu0
        %v2301 = vadd.f32 0.0, %v2300
        %2302 = vdwg.mxu0
        %2303 = vrot.lane.b32.xlu0 %v640, 120
        %v2304 = vpop.permute.xlu0 %2303
        %2305 = vrot.lane.b32.xlu0 %v642, 120
        %v2306 = vpop.permute.xlu0 %2305
        %2307 = vrot.lane.b32.xlu0 %v644, 120
        %v2308 = vpop.permute.xlu0 %2307
        %2309 = vrot.lane.b32.xlu0 %v646, 120
        %v2310 = vpop.permute.xlu0 %2309
        %2311 = vrot.lane.b32.xlu0 %v648, 120
        %v2312 = vpop.permute.xlu0 %2311
        %2313 = vrot.lane.b32.xlu0 %v650, 120
        %v2314 = vpop.permute.xlu0 %2313
        %2315 = vrot.lane.b32.xlu0 %v652, 120
        %v2316 = vpop.permute.xlu0 %2315
        %2317 = vrot.lane.b32.xlu0 %v654, 120
        %v2318 = vpop.permute.xlu0 %2317
        %v2328 = vsel %vm1384, %v1738, 0
        %v2331 = vsel %vm1384, %v1740, 0
        %v2334 = vsel %vm1384, %v1742, 0
        %v2337 = vsel %vm1384, %v1744, 0
        %v2340 = vsel %vm1384, %v1746, 0
        %v2343 = vsel %vm1384, %v1748, 0
        %v2346 = vsel %vm1384, %v1750, 0
        %v2349 = vsel %vm1384, %v1752, 0
        %2351 = vmatpush.msra.mxu0 0.0
        %2352 = vmatpush.msra.mxu0 0.0
        %2353 = vmatpush.msra.mxu0 0.0
        %2354 = vmatpush.msra.mxu0 0.0
        %2355 = vmatpush.msra.mxu0 0.0
        %2356 = vmatpush.msra.mxu0 0.0
        %2357 = vmatpush.msra.mxu0 0.0
        %2358 = vmatpush.msra.mxu0 0.0
        %2359 = vmatpush.msra.mxu0 %v2318
        %2360 = vmatpush.msra.mxu0 %v2316
        %2361 = vmatpush.msra.mxu0 %v2314
        %2362 = vmatpush.msra.mxu0 %v2312
        %2363 = vmatpush.msra.mxu0 %v2310
        %2364 = vmatpush.msra.mxu0 %v2308
        %2365 = vmatpush.msra.mxu0 %v2306
        %2366 = vmatpush.msra.mxu0 %v2304
        %2367 = vmatmul.f32.gmra.mxu0 %v2328
        %v2368 = vpop.f32.mrf.mxu0
        %v2369 = vadd.f32 0.0, %v2368
        %2370 = vmatmul.f32.gmra.mxu0 %v2331
        %v2371 = vpop.f32.mrf.mxu0
        %v2372 = vadd.f32 0.0, %v2371
        %2373 = vmatmul.f32.gmra.mxu0 %v2334
        %v2374 = vpop.f32.mrf.mxu0
        %v2375 = vadd.f32 0.0, %v2374
        %2376 = vmatmul.f32.gmra.mxu0 %v2337
        %v2377 = vpop.f32.mrf.mxu0
        %v2378 = vadd.f32 0.0, %v2377
        %2379 = vmatmul.f32.gmra.mxu0 %v2340
        %v2380 = vpop.f32.mrf.mxu0
        %v2381 = vadd.f32 0.0, %v2380
        %2382 = vmatmul.f32.gmra.mxu0 %v2343
        %v2383 = vpop.f32.mrf.mxu0
        %v2384 = vadd.f32 0.0, %v2383
        %2385 = vmatmul.f32.gmra.mxu0 %v2346
        %v2386 = vpop.f32.mrf.mxu0
        %v2387 = vadd.f32 0.0, %v2386
        %2388 = vmatmul.f32.gmra.mxu0 %v2349
        %v2389 = vpop.f32.mrf.mxu0
        %v2390 = vadd.f32 0.0, %v2389
        %2391 = vdwg.mxu0
        %2392 = vrot.lane.b32.xlu0 %v656, 120
        %v2393 = vpop.permute.xlu0 %2392
        %2394 = vrot.lane.b32.xlu0 %v658, 120
        %v2395 = vpop.permute.xlu0 %2394
        %2396 = vrot.lane.b32.xlu0 %v660, 120
        %v2397 = vpop.permute.xlu0 %2396
        %2398 = vrot.lane.b32.xlu0 %v662, 120
        %v2399 = vpop.permute.xlu0 %2398
        %2400 = vrot.lane.b32.xlu0 %v664, 120
        %v2401 = vpop.permute.xlu0 %2400
        %2402 = vrot.lane.b32.xlu0 %v666, 120
        %v2403 = vpop.permute.xlu0 %2402
        %2404 = vrot.lane.b32.xlu0 %v668, 120
        %v2405 = vpop.permute.xlu0 %2404
        %2406 = vrot.lane.b32.xlu0 %v670, 120
        %v2407 = vpop.permute.xlu0 %2406
        %v2417 = vsel %vm1384, %v1754, 0
        %v2420 = vsel %vm1384, %v1756, 0
        %v2423 = vsel %vm1384, %v1758, 0
        %v2426 = vsel %vm1384, %v1760, 0
        %v2429 = vsel %vm1384, %v1762, 0
        %v2432 = vsel %vm1384, %v1764, 0
        %v2435 = vsel %vm1384, %v1766, 0
        %v2438 = vsel %vm1384, %v1768, 0
        %2440 = vmatpush.msra.mxu0 0.0
        %2441 = vmatpush.msra.mxu0 0.0
        %2442 = vmatpush.msra.mxu0 0.0
        %2443 = vmatpush.msra.mxu0 0.0
        %2444 = vmatpush.msra.mxu0 0.0
        %2445 = vmatpush.msra.mxu0 0.0
        %2446 = vmatpush.msra.mxu0 0.0
        %2447 = vmatpush.msra.mxu0 0.0
        %2448 = vmatpush.msra.mxu0 %v2407
        %2449 = vmatpush.msra.mxu0 %v2405
        %2450 = vmatpush.msra.mxu0 %v2403
        %2451 = vmatpush.msra.mxu0 %v2401
        %2452 = vmatpush.msra.mxu0 %v2399
        %2453 = vmatpush.msra.mxu0 %v2397
        %2454 = vmatpush.msra.mxu0 %v2395
        %2455 = vmatpush.msra.mxu0 %v2393
        %2456 = vmatmul.f32.gmra.mxu0 %v2417
        %v2457 = vpop.f32.mrf.mxu0
        %v2458 = vadd.f32 0.0, %v2457
        %2459 = vmatmul.f32.gmra.mxu0 %v2420
        %v2460 = vpop.f32.mrf.mxu0
        %v2461 = vadd.f32 0.0, %v2460
        %2462 = vmatmul.f32.gmra.mxu0 %v2423
        %v2463 = vpop.f32.mrf.mxu0
        %v2464 = vadd.f32 0.0, %v2463
        %2465 = vmatmul.f32.gmra.mxu0 %v2426
        %v2466 = vpop.f32.mrf.mxu0
        %v2467 = vadd.f32 0.0, %v2466
        %2468 = vmatmul.f32.gmra.mxu0 %v2429
        %v2469 = vpop.f32.mrf.mxu0
        %v2470 = vadd.f32 0.0, %v2469
        %2471 = vmatmul.f32.gmra.mxu0 %v2432
        %v2472 = vpop.f32.mrf.mxu0
        %v2473 = vadd.f32 0.0, %v2472
        %2474 = vmatmul.f32.gmra.mxu0 %v2435
        %v2475 = vpop.f32.mrf.mxu0
        %v2476 = vadd.f32 0.0, %v2475
        %2477 = vmatmul.f32.gmra.mxu0 %v2438
        %v2478 = vpop.f32.mrf.mxu0
        %v2479 = vadd.f32 0.0, %v2478
        %2480 = vdwg.mxu0
        %v2481 = vsel %vm1384, %v1642, 0.0
        %2482 = vadd.xlane.f32.xlu0 %v2481
        %v2483 = vpop.xlane.xlu0 %2482
        %v2484 = vsel %vm1384, %v1644, 0.0
        %2485 = vadd.xlane.f32.xlu0 %v2484
        %v2486 = vpop.xlane.xlu0 %2485
        %v2487 = vsel %vm1384, %v1646, 0.0
        %2488 = vadd.xlane.f32.xlu0 %v2487
        %v2489 = vpop.xlane.xlu0 %2488
        %v2490 = vsel %vm1384, %v1648, 0.0
        %2491 = vadd.xlane.f32.xlu0 %v2490
        %v2492 = vpop.xlane.xlu0 %2491
        %v2493 = vsel %vm1384, %v1650, 0.0
        %2494 = vadd.xlane.f32.xlu0 %v2493
        %v2495 = vpop.xlane.xlu0 %2494
        %v2496 = vsel %vm1384, %v1652, 0.0
        %2497 = vadd.xlane.f32.xlu0 %v2496
        %v2498 = vpop.xlane.xlu0 %2497
        %v2499 = vsel %vm1384, %v1654, 0.0
        %2500 = vadd.xlane.f32.xlu0 %v2499
        %v2501 = vpop.xlane.xlu0 %2500
        %v2502 = vsel %vm1384, %v1656, 0.0
        %2503 = vadd.xlane.f32.xlu0 %v2502
        %v2504 = vpop.xlane.xlu0 %2503
        %v2505 = vsel %vm1384, %v1658, 0.0
        %2506 = vadd.xlane.f32.xlu0 %v2505
        %v2507 = vpop.xlane.xlu0 %2506
        %v2508 = vsel %vm1384, %v1660, 0.0
        %2509 = vadd.xlane.f32.xlu0 %v2508
        %v2510 = vpop.xlane.xlu0 %2509
        %v2511 = vsel %vm1384, %v1662, 0.0
        %2512 = vadd.xlane.f32.xlu0 %v2511
        %v2513 = vpop.xlane.xlu0 %2512
        %v2514 = vsel %vm1384, %v1664, 0.0
        %2515 = vadd.xlane.f32.xlu0 %v2514
        %v2516 = vpop.xlane.xlu0 %2515
        %v2517 = vsel %vm1384, %v1666, 0.0
        %2518 = vadd.xlane.f32.xlu0 %v2517
        %v2519 = vpop.xlane.xlu0 %2518
        %v2520 = vsel %vm1384, %v1668, 0.0
        %2521 = vadd.xlane.f32.xlu0 %v2520
        %v2522 = vpop.xlane.xlu0 %2521
        %v2523 = vsel %vm1384, %v1670, 0.0
        %2524 = vadd.xlane.f32.xlu0 %v2523
        %v2525 = vpop.xlane.xlu0 %2524
        %v2526 = vsel %vm1384, %v1672, 0.0
        %2527 = vadd.xlane.f32.xlu0 %v2526
        %v2528 = vpop.xlane.xlu0 %2527
        %v2529 = vsel %vm1384, %v1674, 0.0
        %2530 = vadd.xlane.f32.xlu0 %v2529
        %v2531 = vpop.xlane.xlu0 %2530
        %v2532 = vsel %vm1384, %v1676, 0.0
        %2533 = vadd.xlane.f32.xlu0 %v2532
        %v2534 = vpop.xlane.xlu0 %2533
        %v2535 = vsel %vm1384, %v1678, 0.0
        %2536 = vadd.xlane.f32.xlu0 %v2535
        %v2537 = vpop.xlane.xlu0 %2536
        %v2538 = vsel %vm1384, %v1680, 0.0
        %2539 = vadd.xlane.f32.xlu0 %v2538
        %v2540 = vpop.xlane.xlu0 %2539
        %v2541 = vsel %vm1384, %v1682, 0.0
        %2542 = vadd.xlane.f32.xlu0 %v2541
        %v2543 = vpop.xlane.xlu0 %2542
        %v2544 = vsel %vm1384, %v1684, 0.0
        %2545 = vadd.xlane.f32.xlu0 %v2544
        %v2546 = vpop.xlane.xlu0 %2545
        %v2547 = vsel %vm1384, %v1686, 0.0
        %2548 = vadd.xlane.f32.xlu0 %v2547
        %v2549 = vpop.xlane.xlu0 %2548
        %v2550 = vsel %vm1384, %v1688, 0.0
        %2551 = vadd.xlane.f32.xlu0 %v2550
        %v2552 = vpop.xlane.xlu0 %2551
        %v2553 = vsel %vm1384, %v1690, 0.0
        %2554 = vadd.xlane.f32.xlu0 %v2553
        %v2555 = vpop.xlane.xlu0 %2554
        %v2556 = vsel %vm1384, %v1692, 0.0
        %2557 = vadd.xlane.f32.xlu0 %v2556
        %v2558 = vpop.xlane.xlu0 %2557
        %v2559 = vsel %vm1384, %v1694, 0.0
        %2560 = vadd.xlane.f32.xlu0 %v2559
        %v2561 = vpop.xlane.xlu0 %2560
        %v2562 = vsel %vm1384, %v1696, 0.0
        %2563 = vadd.xlane.f32.xlu0 %v2562
        %v2564 = vpop.xlane.xlu0 %2563
        %v2565 = vsel %vm1384, %v1698, 0.0
        %2566 = vadd.xlane.f32.xlu0 %v2565
        %v2567 = vpop.xlane.xlu0 %2566
        %v2568 = vsel %vm1384, %v1700, 0.0
        %2569 = vadd.xlane.f32.xlu0 %v2568
        %v2570 = vpop.xlane.xlu0 %2569
        %v2571 = vsel %vm1384, %v1702, 0.0
        %2572 = vadd.xlane.f32.xlu0 %v2571
        %v2573 = vpop.xlane.xlu0 %2572
        %v2574 = vsel %vm1384, %v1704, 0.0
        %2575 = vadd.xlane.f32.xlu0 %v2574
        %v2576 = vpop.xlane.xlu0 %2575
        %v2577 = vsel %vm1384, %v1706, 0.0
        %2578 = vadd.xlane.f32.xlu0 %v2577
        %v2579 = vpop.xlane.xlu0 %2578
        %v2580 = vsel %vm1384, %v1708, 0.0
        %2581 = vadd.xlane.f32.xlu0 %v2580
        %v2582 = vpop.xlane.xlu0 %2581
        %v2583 = vsel %vm1384, %v1710, 0.0
        %2584 = vadd.xlane.f32.xlu0 %v2583
        %v2585 = vpop.xlane.xlu0 %2584
        %v2586 = vsel %vm1384, %v1712, 0.0
        %2587 = vadd.xlane.f32.xlu0 %v2586
        %v2588 = vpop.xlane.xlu0 %2587
        %v2589 = vsel %vm1384, %v1714, 0.0
        %2590 = vadd.xlane.f32.xlu0 %v2589
        %v2591 = vpop.xlane.xlu0 %2590
        %v2592 = vsel %vm1384, %v1716, 0.0
        %2593 = vadd.xlane.f32.xlu0 %v2592
        %v2594 = vpop.xlane.xlu0 %2593
        %v2595 = vsel %vm1384, %v1718, 0.0
        %2596 = vadd.xlane.f32.xlu0 %v2595
        %v2597 = vpop.xlane.xlu0 %2596
        %v2598 = vsel %vm1384, %v1720, 0.0
        %2599 = vadd.xlane.f32.xlu0 %v2598
        %v2600 = vpop.xlane.xlu0 %2599
        %v2601 = vsel %vm1384, %v1722, 0.0
        %2602 = vadd.xlane.f32.xlu0 %v2601
        %v2603 = vpop.xlane.xlu0 %2602
        %v2604 = vsel %vm1384, %v1724, 0.0
        %2605 = vadd.xlane.f32.xlu0 %v2604
        %v2606 = vpop.xlane.xlu0 %2605
        %v2607 = vsel %vm1384, %v1726, 0.0
        %2608 = vadd.xlane.f32.xlu0 %v2607
        %v2609 = vpop.xlane.xlu0 %2608
        %v2610 = vsel %vm1384, %v1728, 0.0
        %2611 = vadd.xlane.f32.xlu0 %v2610
        %v2612 = vpop.xlane.xlu0 %2611
        %v2613 = vsel %vm1384, %v1730, 0.0
        %2614 = vadd.xlane.f32.xlu0 %v2613
        %v2615 = vpop.xlane.xlu0 %2614
        %v2616 = vsel %vm1384, %v1732, 0.0
        %2617 = vadd.xlane.f32.xlu0 %v2616
        %v2618 = vpop.xlane.xlu0 %2617
        %v2619 = vsel %vm1384, %v1734, 0.0
        %2620 = vadd.xlane.f32.xlu0 %v2619
        %v2621 = vpop.xlane.xlu0 %2620
        %v2622 = vsel %vm1384, %v1736, 0.0
        %2623 = vadd.xlane.f32.xlu0 %v2622
        %v2624 = vpop.xlane.xlu0 %2623
        %v2625 = vsel %vm1384, %v1738, 0.0
        %2626 = vadd.xlane.f32.xlu0 %v2625
        %v2627 = vpop.xlane.xlu0 %2626
        %v2628 = vsel %vm1384, %v1740, 0.0
        %2629 = vadd.xlane.f32.xlu0 %v2628
        %v2630 = vpop.xlane.xlu0 %2629
        %v2631 = vsel %vm1384, %v1742, 0.0
        %2632 = vadd.xlane.f32.xlu0 %v2631
        %v2633 = vpop.xlane.xlu0 %2632
        %v2634 = vsel %vm1384, %v1744, 0.0
        %2635 = vadd.xlane.f32.xlu0 %v2634
        %v2636 = vpop.xlane.xlu0 %2635
        %v2637 = vsel %vm1384, %v1746, 0.0
        %2638 = vadd.xlane.f32.xlu0 %v2637
        %v2639 = vpop.xlane.xlu0 %2638
        %v2640 = vsel %vm1384, %v1748, 0.0
        %2641 = vadd.xlane.f32.xlu0 %v2640
        %v2642 = vpop.xlane.xlu0 %2641
        %v2643 = vsel %vm1384, %v1750, 0.0
        %2644 = vadd.xlane.f32.xlu0 %v2643
        %v2645 = vpop.xlane.xlu0 %2644
        %v2646 = vsel %vm1384, %v1752, 0.0
        %2647 = vadd.xlane.f32.xlu0 %v2646
        %v2648 = vpop.xlane.xlu0 %2647
        %v2649 = vsel %vm1384, %v1754, 0.0
        %2650 = vadd.xlane.f32.xlu0 %v2649
        %v2651 = vpop.xlane.xlu0 %2650
        %v2652 = vsel %vm1384, %v1756, 0.0
        %2653 = vadd.xlane.f32.xlu0 %v2652
        %v2654 = vpop.xlane.xlu0 %2653
        %v2655 = vsel %vm1384, %v1758, 0.0
        %2656 = vadd.xlane.f32.xlu0 %v2655
        %v2657 = vpop.xlane.xlu0 %2656
        %v2658 = vsel %vm1384, %v1760, 0.0
        %2659 = vadd.xlane.f32.xlu0 %v2658
        %v2660 = vpop.xlane.xlu0 %2659
        %v2661 = vsel %vm1384, %v1762, 0.0
        %2662 = vadd.xlane.f32.xlu0 %v2661
        %v2663 = vpop.xlane.xlu0 %2662
        %v2664 = vsel %vm1384, %v1764, 0.0
        %2665 = vadd.xlane.f32.xlu0 %v2664
        %v2666 = vpop.xlane.xlu0 %2665
        %v2667 = vsel %vm1384, %v1766, 0.0
        %2668 = vadd.xlane.f32.xlu0 %v2667
        %v2669 = vpop.xlane.xlu0 %2668
        %v2670 = vsel %vm1384, %v1768, 0.0
        %2671 = vadd.xlane.f32.xlu0 %v2670
        %v2672 = vpop.xlane.xlu0 %2671
        %v2673 = vrcp.pop %v2483
        %v2674 = vmul.f32 %v2483, %v2673
        %v2675 = vsub.f32 1.0, %v2674
        %v2676 = vmul.f32 %v2673, %v2675
        %v2677 = vadd.f32 %v2673, %v2676
        %vm2678 = vweird.f32 %v2483
        %vm2679 = vweird.f32 %v2673
        %vm2680 = vmor %vm2678, %vm2679
        %v2681 = vsel %vm2680, %v2673, %v2677
        %v2682 = vand.u32 2147483647, %v2483
        %vm2683 = vcmp.eq.f32.partialorder %v2682, 8.507059e+37
        %v2684 = vand.u32 %v2483, 2147483648
        %v2685 = vor.u32 1.1754944e-38, %v2684
        %v2686 = vsel %vm2683, %v2685, %v2681
        %v2687 = vmul.f32 %v1835, %v2686
        %v2688 = vrcp.pop %v2486
        %v2689 = vmul.f32 %v2486, %v2688
        %v2690 = vsub.f32 1.0, %v2689
        %v2691 = vmul.f32 %v2688, %v2690
        %v2692 = vadd.f32 %v2688, %v2691
        %vm2693 = vweird.f32 %v2486
        %vm2694 = vweird.f32 %v2688
        %vm2695 = vmor %vm2693, %vm2694
        %v2696 = vsel %vm2695, %v2688, %v2692
        %v2697 = vand.u32 2147483647, %v2486
        %vm2698 = vcmp.eq.f32.partialorder %v2697, 8.507059e+37
        %v2699 = vand.u32 %v2486, 2147483648
        %v2700 = vor.u32 1.1754944e-38, %v2699
        %v2701 = vsel %vm2698, %v2700, %v2696
        %v2702 = vmul.f32 %v1838, %v2701
        %v2703 = vrcp.pop %v2489
        %v2704 = vmul.f32 %v2489, %v2703
        %v2705 = vsub.f32 1.0, %v2704
        %v2706 = vmul.f32 %v2703, %v2705
        %v2707 = vadd.f32 %v2703, %v2706
        %vm2708 = vweird.f32 %v2489
        %vm2709 = vweird.f32 %v2703
        %vm2710 = vmor %vm2708, %vm2709
        %v2711 = vsel %vm2710, %v2703, %v2707
        %v2712 = vand.u32 2147483647, %v2489
        %vm2713 = vcmp.eq.f32.partialorder %v2712, 8.507059e+37
        %v2714 = vand.u32 %v2489, 2147483648
        %v2715 = vor.u32 1.1754944e-38, %v2714
        %v2716 = vsel %vm2713, %v2715, %v2711
        %v2717 = vmul.f32 %v1841, %v2716
        %v2718 = vrcp.pop %v2492
        %v2719 = vmul.f32 %v2492, %v2718
        %v2720 = vsub.f32 1.0, %v2719
        %v2721 = vmul.f32 %v2718, %v2720
        %v2722 = vadd.f32 %v2718, %v2721
        %vm2723 = vweird.f32 %v2492
        %vm2724 = vweird.f32 %v2718
        %vm2725 = vmor %vm2723, %vm2724
        %v2726 = vsel %vm2725, %v2718, %v2722
        %v2727 = vand.u32 2147483647, %v2492
        %vm2728 = vcmp.eq.f32.partialorder %v2727, 8.507059e+37
        %v2729 = vand.u32 %v2492, 2147483648
        %v2730 = vor.u32 1.1754944e-38, %v2729
        %v2731 = vsel %vm2728, %v2730, %v2726
        %v2732 = vmul.f32 %v1844, %v2731
        %v2733 = vrcp.pop %v2495
        %v2734 = vmul.f32 %v2495, %v2733
        %v2735 = vsub.f32 1.0, %v2734
        %v2736 = vmul.f32 %v2733, %v2735
        %v2737 = vadd.f32 %v2733, %v2736
        %vm2738 = vweird.f32 %v2495
        %vm2739 = vweird.f32 %v2733
        %vm2740 = vmor %vm2738, %vm2739
        %v2741 = vsel %vm2740, %v2733, %v2737
        %v2742 = vand.u32 2147483647, %v2495
        %vm2743 = vcmp.eq.f32.partialorder %v2742, 8.507059e+37
        %v2744 = vand.u32 %v2495, 2147483648
        %v2745 = vor.u32 1.1754944e-38, %v2744
        %v2746 = vsel %vm2743, %v2745, %v2741
        %v2747 = vmul.f32 %v1847, %v2746
        %v2748 = vrcp.pop %v2498
        %v2749 = vmul.f32 %v2498, %v2748
        %v2750 = vsub.f32 1.0, %v2749
        %v2751 = vmul.f32 %v2748, %v2750
        %v2752 = vadd.f32 %v2748, %v2751
        %vm2753 = vweird.f32 %v2498
        %vm2754 = vweird.f32 %v2748
        %vm2755 = vmor %vm2753, %vm2754
        %v2756 = vsel %vm2755, %v2748, %v2752
        %v2757 = vand.u32 2147483647, %v2498
        %vm2758 = vcmp.eq.f32.partialorder %v2757, 8.507059e+37
        %v2759 = vand.u32 %v2498, 2147483648
        %v2760 = vor.u32 1.1754944e-38, %v2759
        %v2761 = vsel %vm2758, %v2760, %v2756
        %v2762 = vmul.f32 %v1850, %v2761
        %v2763 = vrcp.pop %v2501
        %v2764 = vmul.f32 %v2501, %v2763
        %v2765 = vsub.f32 1.0, %v2764
        %v2766 = vmul.f32 %v2763, %v2765
        %v2767 = vadd.f32 %v2763, %v2766
        %vm2768 = vweird.f32 %v2501
        %vm2769 = vweird.f32 %v2763
        %vm2770 = vmor %vm2768, %vm2769
        %v2771 = vsel %vm2770, %v2763, %v2767
        %v2772 = vand.u32 2147483647, %v2501
        %vm2773 = vcmp.eq.f32.partialorder %v2772, 8.507059e+37
        %v2774 = vand.u32 %v2501, 2147483648
        %v2775 = vor.u32 1.1754944e-38, %v2774
        %v2776 = vsel %vm2773, %v2775, %v2771
        %v2777 = vmul.f32 %v1853, %v2776
        %v2778 = vrcp.pop %v2504
        %v2779 = vmul.f32 %v2504, %v2778
        %v2780 = vsub.f32 1.0, %v2779
        %v2781 = vmul.f32 %v2778, %v2780
        %v2782 = vadd.f32 %v2778, %v2781
        %vm2783 = vweird.f32 %v2504
        %vm2784 = vweird.f32 %v2778
        %vm2785 = vmor %vm2783, %vm2784
        %v2786 = vsel %vm2785, %v2778, %v2782
        %v2787 = vand.u32 2147483647, %v2504
        %vm2788 = vcmp.eq.f32.partialorder %v2787, 8.507059e+37
        %v2789 = vand.u32 %v2504, 2147483648
        %v2790 = vor.u32 1.1754944e-38, %v2789
        %v2791 = vsel %vm2788, %v2790, %v2786
        %v2792 = vmul.f32 %v1856, %v2791
        %v2793 = vrcp.pop %v2507
        %v2794 = vmul.f32 %v2507, %v2793
        %v2795 = vsub.f32 1.0, %v2794
        %v2796 = vmul.f32 %v2793, %v2795
        %v2797 = vadd.f32 %v2793, %v2796
        %vm2798 = vweird.f32 %v2507
        %vm2799 = vweird.f32 %v2793
        %vm2800 = vmor %vm2798, %vm2799
        %v2801 = vsel %vm2800, %v2793, %v2797
        %v2802 = vand.u32 2147483647, %v2507
        %vm2803 = vcmp.eq.f32.partialorder %v2802, 8.507059e+37
        %v2804 = vand.u32 %v2507, 2147483648
        %v2805 = vor.u32 1.1754944e-38, %v2804
        %v2806 = vsel %vm2803, %v2805, %v2801
        %v2807 = vmul.f32 %v1924, %v2806
        %v2808 = vrcp.pop %v2510
        %v2809 = vmul.f32 %v2510, %v2808
        %v2810 = vsub.f32 1.0, %v2809
        %v2811 = vmul.f32 %v2808, %v2810
        %v2812 = vadd.f32 %v2808, %v2811
        %vm2813 = vweird.f32 %v2510
        %vm2814 = vweird.f32 %v2808
        %vm2815 = vmor %vm2813, %vm2814
        %v2816 = vsel %vm2815, %v2808, %v2812
        %v2817 = vand.u32 2147483647, %v2510
        %vm2818 = vcmp.eq.f32.partialorder %v2817, 8.507059e+37
        %v2819 = vand.u32 %v2510, 2147483648
        %v2820 = vor.u32 1.1754944e-38, %v2819
        %v2821 = vsel %vm2818, %v2820, %v2816
        %v2822 = vmul.f32 %v1927, %v2821
        %v2823 = vrcp.pop %v2513
        %v2824 = vmul.f32 %v2513, %v2823
        %v2825 = vsub.f32 1.0, %v2824
        %v2826 = vmul.f32 %v2823, %v2825
        %v2827 = vadd.f32 %v2823, %v2826
        %vm2828 = vweird.f32 %v2513
        %vm2829 = vweird.f32 %v2823
        %vm2830 = vmor %vm2828, %vm2829
        %v2831 = vsel %vm2830, %v2823, %v2827
        %v2832 = vand.u32 2147483647, %v2513
        %vm2833 = vcmp.eq.f32.partialorder %v2832, 8.507059e+37
        %v2834 = vand.u32 %v2513, 2147483648
        %v2835 = vor.u32 1.1754944e-38, %v2834
        %v2836 = vsel %vm2833, %v2835, %v2831
        %v2837 = vmul.f32 %v1930, %v2836
        %v2838 = vrcp.pop %v2516
        %v2839 = vmul.f32 %v2516, %v2838
        %v2840 = vsub.f32 1.0, %v2839
        %v2841 = vmul.f32 %v2838, %v2840
        %v2842 = vadd.f32 %v2838, %v2841
        %vm2843 = vweird.f32 %v2516
        %vm2844 = vweird.f32 %v2838
        %vm2845 = vmor %vm2843, %vm2844
        %v2846 = vsel %vm2845, %v2838, %v2842
        %v2847 = vand.u32 2147483647, %v2516
        %vm2848 = vcmp.eq.f32.partialorder %v2847, 8.507059e+37
        %v2849 = vand.u32 %v2516, 2147483648
        %v2850 = vor.u32 1.1754944e-38, %v2849
        %v2851 = vsel %vm2848, %v2850, %v2846
        %v2852 = vmul.f32 %v1933, %v2851
        %v2853 = vrcp.pop %v2519
        %v2854 = vmul.f32 %v2519, %v2853
        %v2855 = vsub.f32 1.0, %v2854
        %v2856 = vmul.f32 %v2853, %v2855
        %v2857 = vadd.f32 %v2853, %v2856
        %vm2858 = vweird.f32 %v2519
        %vm2859 = vweird.f32 %v2853
        %vm2860 = vmor %vm2858, %vm2859
        %v2861 = vsel %vm2860, %v2853, %v2857
        %v2862 = vand.u32 2147483647, %v2519
        %vm2863 = vcmp.eq.f32.partialorder %v2862, 8.507059e+37
        %v2864 = vand.u32 %v2519, 2147483648
        %v2865 = vor.u32 1.1754944e-38, %v2864
        %v2866 = vsel %vm2863, %v2865, %v2861
        %v2867 = vmul.f32 %v1936, %v2866
        %v2868 = vrcp.pop %v2522
        %v2869 = vmul.f32 %v2522, %v2868
        %v2870 = vsub.f32 1.0, %v2869
        %v2871 = vmul.f32 %v2868, %v2870
        %v2872 = vadd.f32 %v2868, %v2871
        %vm2873 = vweird.f32 %v2522
        %vm2874 = vweird.f32 %v2868
        %vm2875 = vmor %vm2873, %vm2874
        %v2876 = vsel %vm2875, %v2868, %v2872
        %v2877 = vand.u32 2147483647, %v2522
        %vm2878 = vcmp.eq.f32.partialorder %v2877, 8.507059e+37
        %v2879 = vand.u32 %v2522, 2147483648
        %v2880 = vor.u32 1.1754944e-38, %v2879
        %v2881 = vsel %vm2878, %v2880, %v2876
        %v2882 = vmul.f32 %v1939, %v2881
        %v2883 = vrcp.pop %v2525
        %v2884 = vmul.f32 %v2525, %v2883
        %v2885 = vsub.f32 1.0, %v2884
        %v2886 = vmul.f32 %v2883, %v2885
        %v2887 = vadd.f32 %v2883, %v2886
        %vm2888 = vweird.f32 %v2525
        %vm2889 = vweird.f32 %v2883
        %vm2890 = vmor %vm2888, %vm2889
        %v2891 = vsel %vm2890, %v2883, %v2887
        %v2892 = vand.u32 2147483647, %v2525
        %vm2893 = vcmp.eq.f32.partialorder %v2892, 8.507059e+37
        %v2894 = vand.u32 %v2525, 2147483648
        %v2895 = vor.u32 1.1754944e-38, %v2894
        %v2896 = vsel %vm2893, %v2895, %v2891
        %v2897 = vmul.f32 %v1942, %v2896
        %v2898 = vrcp.pop %v2528
        %v2899 = vmul.f32 %v2528, %v2898
        %v2900 = vsub.f32 1.0, %v2899
        %v2901 = vmul.f32 %v2898, %v2900
        %v2902 = vadd.f32 %v2898, %v2901
        %vm2903 = vweird.f32 %v2528
        %vm2904 = vweird.f32 %v2898
        %vm2905 = vmor %vm2903, %vm2904
        %v2906 = vsel %vm2905, %v2898, %v2902
        %v2907 = vand.u32 2147483647, %v2528
        %vm2908 = vcmp.eq.f32.partialorder %v2907, 8.507059e+37
        %v2909 = vand.u32 %v2528, 2147483648
        %v2910 = vor.u32 1.1754944e-38, %v2909
        %v2911 = vsel %vm2908, %v2910, %v2906
        %v2912 = vmul.f32 %v1945, %v2911
        %v2913 = vrcp.pop %v2531
        %v2914 = vmul.f32 %v2531, %v2913
        %v2915 = vsub.f32 1.0, %v2914
        %v2916 = vmul.f32 %v2913, %v2915
        %v2917 = vadd.f32 %v2913, %v2916
        %vm2918 = vweird.f32 %v2531
        %vm2919 = vweird.f32 %v2913
        %vm2920 = vmor %vm2918, %vm2919
        %v2921 = vsel %vm2920, %v2913, %v2917
        %v2922 = vand.u32 2147483647, %v2531
        %vm2923 = vcmp.eq.f32.partialorder %v2922, 8.507059e+37
        %v2924 = vand.u32 %v2531, 2147483648
        %v2925 = vor.u32 1.1754944e-38, %v2924
        %v2926 = vsel %vm2923, %v2925, %v2921
        %v2927 = vmul.f32 %v2013, %v2926
        %v2928 = vrcp.pop %v2534
        %v2929 = vmul.f32 %v2534, %v2928
        %v2930 = vsub.f32 1.0, %v2929
        %v2931 = vmul.f32 %v2928, %v2930
        %v2932 = vadd.f32 %v2928, %v2931
        %vm2933 = vweird.f32 %v2534
        %vm2934 = vweird.f32 %v2928
        %vm2935 = vmor %vm2933, %vm2934
        %v2936 = vsel %vm2935, %v2928, %v2932
        %v2937 = vand.u32 2147483647, %v2534
        %vm2938 = vcmp.eq.f32.partialorder %v2937, 8.507059e+37
        %v2939 = vand.u32 %v2534, 2147483648
        %v2940 = vor.u32 1.1754944e-38, %v2939
        %v2941 = vsel %vm2938, %v2940, %v2936
        %v2942 = vmul.f32 %v2016, %v2941
        %v2943 = vrcp.pop %v2537
        %v2944 = vmul.f32 %v2537, %v2943
        %v2945 = vsub.f32 1.0, %v2944
        %v2946 = vmul.f32 %v2943, %v2945
        %v2947 = vadd.f32 %v2943, %v2946
        %vm2948 = vweird.f32 %v2537
        %vm2949 = vweird.f32 %v2943
        %vm2950 = vmor %vm2948, %vm2949
        %v2951 = vsel %vm2950, %v2943, %v2947
        %v2952 = vand.u32 2147483647, %v2537
        %vm2953 = vcmp.eq.f32.partialorder %v2952, 8.507059e+37
        %v2954 = vand.u32 %v2537, 2147483648
        %v2955 = vor.u32 1.1754944e-38, %v2954
        %v2956 = vsel %vm2953, %v2955, %v2951
        %v2957 = vmul.f32 %v2019, %v2956
        %v2958 = vrcp.pop %v2540
        %v2959 = vmul.f32 %v2540, %v2958
        %v2960 = vsub.f32 1.0, %v2959
        %v2961 = vmul.f32 %v2958, %v2960
        %v2962 = vadd.f32 %v2958, %v2961
        %vm2963 = vweird.f32 %v2540
        %vm2964 = vweird.f32 %v2958
        %vm2965 = vmor %vm2963, %vm2964
        %v2966 = vsel %vm2965, %v2958, %v2962
        %v2967 = vand.u32 2147483647, %v2540
        %vm2968 = vcmp.eq.f32.partialorder %v2967, 8.507059e+37
        %v2969 = vand.u32 %v2540, 2147483648
        %v2970 = vor.u32 1.1754944e-38, %v2969
        %v2971 = vsel %vm2968, %v2970, %v2966
        %v2972 = vmul.f32 %v2022, %v2971
        %v2973 = vrcp.pop %v2543
        %v2974 = vmul.f32 %v2543, %v2973
        %v2975 = vsub.f32 1.0, %v2974
        %v2976 = vmul.f32 %v2973, %v2975
        %v2977 = vadd.f32 %v2973, %v2976
        %vm2978 = vweird.f32 %v2543
        %vm2979 = vweird.f32 %v2973
        %vm2980 = vmor %vm2978, %vm2979
        %v2981 = vsel %vm2980, %v2973, %v2977
        %v2982 = vand.u32 2147483647, %v2543
        %vm2983 = vcmp.eq.f32.partialorder %v2982, 8.507059e+37
        %v2984 = vand.u32 %v2543, 2147483648
        %v2985 = vor.u32 1.1754944e-38, %v2984
        %v2986 = vsel %vm2983, %v2985, %v2981
        %v2987 = vmul.f32 %v2025, %v2986
        %v2988 = vrcp.pop %v2546
        %v2989 = vmul.f32 %v2546, %v2988
        %v2990 = vsub.f32 1.0, %v2989
        %v2991 = vmul.f32 %v2988, %v2990
        %v2992 = vadd.f32 %v2988, %v2991
        %vm2993 = vweird.f32 %v2546
        %vm2994 = vweird.f32 %v2988
        %vm2995 = vmor %vm2993, %vm2994
        %v2996 = vsel %vm2995, %v2988, %v2992
        %v2997 = vand.u32 2147483647, %v2546
        %vm2998 = vcmp.eq.f32.partialorder %v2997, 8.507059e+37
        %v2999 = vand.u32 %v2546, 2147483648
        %v3000 = vor.u32 1.1754944e-38, %v2999
        %v3001 = vsel %vm2998, %v3000, %v2996
        %v3002 = vmul.f32 %v2028, %v3001
        %v3003 = vrcp.pop %v2549
        %v3004 = vmul.f32 %v2549, %v3003
        %v3005 = vsub.f32 1.0, %v3004
        %v3006 = vmul.f32 %v3003, %v3005
        %v3007 = vadd.f32 %v3003, %v3006
        %vm3008 = vweird.f32 %v2549
        %vm3009 = vweird.f32 %v3003
        %vm3010 = vmor %vm3008, %vm3009
        %v3011 = vsel %vm3010, %v3003, %v3007
        %v3012 = vand.u32 2147483647, %v2549
        %vm3013 = vcmp.eq.f32.partialorder %v3012, 8.507059e+37
        %v3014 = vand.u32 %v2549, 2147483648
        %v3015 = vor.u32 1.1754944e-38, %v3014
        %v3016 = vsel %vm3013, %v3015, %v3011
        %v3017 = vmul.f32 %v2031, %v3016
        %v3018 = vrcp.pop %v2552
        %v3019 = vmul.f32 %v2552, %v3018
        %v3020 = vsub.f32 1.0, %v3019
        %v3021 = vmul.f32 %v3018, %v3020
        %v3022 = vadd.f32 %v3018, %v3021
        %vm3023 = vweird.f32 %v2552
        %vm3024 = vweird.f32 %v3018
        %vm3025 = vmor %vm3023, %vm3024
        %v3026 = vsel %vm3025, %v3018, %v3022
        %v3027 = vand.u32 2147483647, %v2552
        %vm3028 = vcmp.eq.f32.partialorder %v3027, 8.507059e+37
        %v3029 = vand.u32 %v2552, 2147483648
        %v3030 = vor.u32 1.1754944e-38, %v3029
        %v3031 = vsel %vm3028, %v3030, %v3026
        %v3032 = vmul.f32 %v2034, %v3031
        %v3033 = vrcp.pop %v2555
        %v3034 = vmul.f32 %v2555, %v3033
        %v3035 = vsub.f32 1.0, %v3034
        %v3036 = vmul.f32 %v3033, %v3035
        %v3037 = vadd.f32 %v3033, %v3036
        %vm3038 = vweird.f32 %v2555
        %vm3039 = vweird.f32 %v3033
        %vm3040 = vmor %vm3038, %vm3039
        %v3041 = vsel %vm3040, %v3033, %v3037
        %v3042 = vand.u32 2147483647, %v2555
        %vm3043 = vcmp.eq.f32.partialorder %v3042, 8.507059e+37
        %v3044 = vand.u32 %v2555, 2147483648
        %v3045 = vor.u32 1.1754944e-38, %v3044
        %v3046 = vsel %vm3043, %v3045, %v3041
        %v3047 = vmul.f32 %v2102, %v3046
        %v3048 = vrcp.pop %v2558
        %v3049 = vmul.f32 %v2558, %v3048
        %v3050 = vsub.f32 1.0, %v3049
        %v3051 = vmul.f32 %v3048, %v3050
        %v3052 = vadd.f32 %v3048, %v3051
        %vm3053 = vweird.f32 %v2558
        %vm3054 = vweird.f32 %v3048
        %vm3055 = vmor %vm3053, %vm3054
        %v3056 = vsel %vm3055, %v3048, %v3052
        %v3057 = vand.u32 2147483647, %v2558
        %vm3058 = vcmp.eq.f32.partialorder %v3057, 8.507059e+37
        %v3059 = vand.u32 %v2558, 2147483648
        %v3060 = vor.u32 1.1754944e-38, %v3059
        %v3061 = vsel %vm3058, %v3060, %v3056
        %v3062 = vmul.f32 %v2105, %v3061
        %v3063 = vrcp.pop %v2561
        %v3064 = vmul.f32 %v2561, %v3063
        %v3065 = vsub.f32 1.0, %v3064
        %v3066 = vmul.f32 %v3063, %v3065
        %v3067 = vadd.f32 %v3063, %v3066
        %vm3068 = vweird.f32 %v2561
        %vm3069 = vweird.f32 %v3063
        %vm3070 = vmor %vm3068, %vm3069
        %v3071 = vsel %vm3070, %v3063, %v3067
        %v3072 = vand.u32 2147483647, %v2561
        %vm3073 = vcmp.eq.f32.partialorder %v3072, 8.507059e+37
        %v3074 = vand.u32 %v2561, 2147483648
        %v3075 = vor.u32 1.1754944e-38, %v3074
        %v3076 = vsel %vm3073, %v3075, %v3071
        %v3077 = vmul.f32 %v2108, %v3076
        %v3078 = vrcp.pop %v2564
        %v3079 = vmul.f32 %v2564, %v3078
        %v3080 = vsub.f32 1.0, %v3079
        %v3081 = vmul.f32 %v3078, %v3080
        %v3082 = vadd.f32 %v3078, %v3081
        %vm3083 = vweird.f32 %v2564
        %vm3084 = vweird.f32 %v3078
        %vm3085 = vmor %vm3083, %vm3084
        %v3086 = vsel %vm3085, %v3078, %v3082
        %v3087 = vand.u32 2147483647, %v2564
        %vm3088 = vcmp.eq.f32.partialorder %v3087, 8.507059e+37
        %v3089 = vand.u32 %v2564, 2147483648
        %v3090 = vor.u32 1.1754944e-38, %v3089
        %v3091 = vsel %vm3088, %v3090, %v3086
        %v3092 = vmul.f32 %v2111, %v3091
        %v3093 = vrcp.pop %v2567
        %v3094 = vmul.f32 %v2567, %v3093
        %v3095 = vsub.f32 1.0, %v3094
        %v3096 = vmul.f32 %v3093, %v3095
        %v3097 = vadd.f32 %v3093, %v3096
        %vm3098 = vweird.f32 %v2567
        %vm3099 = vweird.f32 %v3093
        %vm3100 = vmor %vm3098, %vm3099
        %v3101 = vsel %vm3100, %v3093, %v3097
        %v3102 = vand.u32 2147483647, %v2567
        %vm3103 = vcmp.eq.f32.partialorder %v3102, 8.507059e+37
        %v3104 = vand.u32 %v2567, 2147483648
        %v3105 = vor.u32 1.1754944e-38, %v3104
        %v3106 = vsel %vm3103, %v3105, %v3101
        %v3107 = vmul.f32 %v2114, %v3106
        %v3108 = vrcp.pop %v2570
        %v3109 = vmul.f32 %v2570, %v3108
        %v3110 = vsub.f32 1.0, %v3109
        %v3111 = vmul.f32 %v3108, %v3110
        %v3112 = vadd.f32 %v3108, %v3111
        %vm3113 = vweird.f32 %v2570
        %vm3114 = vweird.f32 %v3108
        %vm3115 = vmor %vm3113, %vm3114
        %v3116 = vsel %vm3115, %v3108, %v3112
        %v3117 = vand.u32 2147483647, %v2570
        %vm3118 = vcmp.eq.f32.partialorder %v3117, 8.507059e+37
        %v3119 = vand.u32 %v2570, 2147483648
        %v3120 = vor.u32 1.1754944e-38, %v3119
        %v3121 = vsel %vm3118, %v3120, %v3116
        %v3122 = vmul.f32 %v2117, %v3121
        %v3123 = vrcp.pop %v2573
        %v3124 = vmul.f32 %v2573, %v3123
        %v3125 = vsub.f32 1.0, %v3124
        %v3126 = vmul.f32 %v3123, %v3125
        %v3127 = vadd.f32 %v3123, %v3126
        %vm3128 = vweird.f32 %v2573
        %vm3129 = vweird.f32 %v3123
        %vm3130 = vmor %vm3128, %vm3129
        %v3131 = vsel %vm3130, %v3123, %v3127
        %v3132 = vand.u32 2147483647, %v2573
        %vm3133 = vcmp.eq.f32.partialorder %v3132, 8.507059e+37
        %v3134 = vand.u32 %v2573, 2147483648
        %v3135 = vor.u32 1.1754944e-38, %v3134
        %v3136 = vsel %vm3133, %v3135, %v3131
        %v3137 = vmul.f32 %v2120, %v3136
        %v3138 = vrcp.pop %v2576
        %v3139 = vmul.f32 %v2576, %v3138
        %v3140 = vsub.f32 1.0, %v3139
        %v3141 = vmul.f32 %v3138, %v3140
        %v3142 = vadd.f32 %v3138, %v3141
        %vm3143 = vweird.f32 %v2576
        %vm3144 = vweird.f32 %v3138
        %vm3145 = vmor %vm3143, %vm3144
        %v3146 = vsel %vm3145, %v3138, %v3142
        %v3147 = vand.u32 2147483647, %v2576
        %vm3148 = vcmp.eq.f32.partialorder %v3147, 8.507059e+37
        %v3149 = vand.u32 %v2576, 2147483648
        %v3150 = vor.u32 1.1754944e-38, %v3149
        %v3151 = vsel %vm3148, %v3150, %v3146
        %v3152 = vmul.f32 %v2123, %v3151
        %v3153 = vrcp.pop %v2579
        %v3154 = vmul.f32 %v2579, %v3153
        %v3155 = vsub.f32 1.0, %v3154
        %v3156 = vmul.f32 %v3153, %v3155
        %v3157 = vadd.f32 %v3153, %v3156
        %vm3158 = vweird.f32 %v2579
        %vm3159 = vweird.f32 %v3153
        %vm3160 = vmor %vm3158, %vm3159
        %v3161 = vsel %vm3160, %v3153, %v3157
        %v3162 = vand.u32 2147483647, %v2579
        %vm3163 = vcmp.eq.f32.partialorder %v3162, 8.507059e+37
        %v3164 = vand.u32 %v2579, 2147483648
        %v3165 = vor.u32 1.1754944e-38, %v3164
        %v3166 = vsel %vm3163, %v3165, %v3161
        %v3167 = vmul.f32 %v2191, %v3166
        %v3168 = vrcp.pop %v2582
        %v3169 = vmul.f32 %v2582, %v3168
        %v3170 = vsub.f32 1.0, %v3169
        %v3171 = vmul.f32 %v3168, %v3170
        %v3172 = vadd.f32 %v3168, %v3171
        %vm3173 = vweird.f32 %v2582
        %vm3174 = vweird.f32 %v3168
        %vm3175 = vmor %vm3173, %vm3174
        %v3176 = vsel %vm3175, %v3168, %v3172
        %v3177 = vand.u32 2147483647, %v2582
        %vm3178 = vcmp.eq.f32.partialorder %v3177, 8.507059e+37
        %v3179 = vand.u32 %v2582, 2147483648
        %v3180 = vor.u32 1.1754944e-38, %v3179
        %v3181 = vsel %vm3178, %v3180, %v3176
        %v3182 = vmul.f32 %v2194, %v3181
        %v3183 = vrcp.pop %v2585
        %v3184 = vmul.f32 %v2585, %v3183
        %v3185 = vsub.f32 1.0, %v3184
        %v3186 = vmul.f32 %v3183, %v3185
        %v3187 = vadd.f32 %v3183, %v3186
        %vm3188 = vweird.f32 %v2585
        %vm3189 = vweird.f32 %v3183
        %vm3190 = vmor %vm3188, %vm3189
        %v3191 = vsel %vm3190, %v3183, %v3187
        %v3192 = vand.u32 2147483647, %v2585
        %vm3193 = vcmp.eq.f32.partialorder %v3192, 8.507059e+37
        %v3194 = vand.u32 %v2585, 2147483648
        %v3195 = vor.u32 1.1754944e-38, %v3194
        %v3196 = vsel %vm3193, %v3195, %v3191
        %v3197 = vmul.f32 %v2197, %v3196
        %v3198 = vrcp.pop %v2588
        %v3199 = vmul.f32 %v2588, %v3198
        %v3200 = vsub.f32 1.0, %v3199
        %v3201 = vmul.f32 %v3198, %v3200
        %v3202 = vadd.f32 %v3198, %v3201
        %vm3203 = vweird.f32 %v2588
        %vm3204 = vweird.f32 %v3198
        %vm3205 = vmor %vm3203, %vm3204
        %v3206 = vsel %vm3205, %v3198, %v3202
        %v3207 = vand.u32 2147483647, %v2588
        %vm3208 = vcmp.eq.f32.partialorder %v3207, 8.507059e+37
        %v3209 = vand.u32 %v2588, 2147483648
        %v3210 = vor.u32 1.1754944e-38, %v3209
        %v3211 = vsel %vm3208, %v3210, %v3206
        %v3212 = vmul.f32 %v2200, %v3211
        %v3213 = vrcp.pop %v2591
        %v3214 = vmul.f32 %v2591, %v3213
        %v3215 = vsub.f32 1.0, %v3214
        %v3216 = vmul.f32 %v3213, %v3215
        %v3217 = vadd.f32 %v3213, %v3216
        %vm3218 = vweird.f32 %v2591
        %vm3219 = vweird.f32 %v3213
        %vm3220 = vmor %vm3218, %vm3219
        %v3221 = vsel %vm3220, %v3213, %v3217
        %v3222 = vand.u32 2147483647, %v2591
        %vm3223 = vcmp.eq.f32.partialorder %v3222, 8.507059e+37
        %v3224 = vand.u32 %v2591, 2147483648
        %v3225 = vor.u32 1.1754944e-38, %v3224
        %v3226 = vsel %vm3223, %v3225, %v3221
        %v3227 = vmul.f32 %v2203, %v3226
        %v3228 = vrcp.pop %v2594
        %v3229 = vmul.f32 %v2594, %v3228
        %v3230 = vsub.f32 1.0, %v3229
        %v3231 = vmul.f32 %v3228, %v3230
        %v3232 = vadd.f32 %v3228, %v3231
        %vm3233 = vweird.f32 %v2594
        %vm3234 = vweird.f32 %v3228
        %vm3235 = vmor %vm3233, %vm3234
        %v3236 = vsel %vm3235, %v3228, %v3232
        %v3237 = vand.u32 2147483647, %v2594
        %vm3238 = vcmp.eq.f32.partialorder %v3237, 8.507059e+37
        %v3239 = vand.u32 %v2594, 2147483648
        %v3240 = vor.u32 1.1754944e-38, %v3239
        %v3241 = vsel %vm3238, %v3240, %v3236
        %v3242 = vmul.f32 %v2206, %v3241
        %v3243 = vrcp.pop %v2597
        %v3244 = vmul.f32 %v2597, %v3243
        %v3245 = vsub.f32 1.0, %v3244
        %v3246 = vmul.f32 %v3243, %v3245
        %v3247 = vadd.f32 %v3243, %v3246
        %vm3248 = vweird.f32 %v2597
        %vm3249 = vweird.f32 %v3243
        %vm3250 = vmor %vm3248, %vm3249
        %v3251 = vsel %vm3250, %v3243, %v3247
        %v3252 = vand.u32 2147483647, %v2597
        %vm3253 = vcmp.eq.f32.partialorder %v3252, 8.507059e+37
        %v3254 = vand.u32 %v2597, 2147483648
        %v3255 = vor.u32 1.1754944e-38, %v3254
        %v3256 = vsel %vm3253, %v3255, %v3251
        %v3257 = vmul.f32 %v2209, %v3256
        %v3258 = vrcp.pop %v2600
        %v3259 = vmul.f32 %v2600, %v3258
        %v3260 = vsub.f32 1.0, %v3259
        %v3261 = vmul.f32 %v3258, %v3260
        %v3262 = vadd.f32 %v3258, %v3261
        %vm3263 = vweird.f32 %v2600
        %vm3264 = vweird.f32 %v3258
        %vm3265 = vmor %vm3263, %vm3264
        %v3266 = vsel %vm3265, %v3258, %v3262
        %v3267 = vand.u32 2147483647, %v2600
        %vm3268 = vcmp.eq.f32.partialorder %v3267, 8.507059e+37
        %v3269 = vand.u32 %v2600, 2147483648
        %v3270 = vor.u32 1.1754944e-38, %v3269
        %v3271 = vsel %vm3268, %v3270, %v3266
        %v3272 = vmul.f32 %v2212, %v3271
        %v3273 = vrcp.pop %v2603
        %v3274 = vmul.f32 %v2603, %v3273
        %v3275 = vsub.f32 1.0, %v3274
        %v3276 = vmul.f32 %v3273, %v3275
        %v3277 = vadd.f32 %v3273, %v3276
        %vm3278 = vweird.f32 %v2603
        %vm3279 = vweird.f32 %v3273
        %vm3280 = vmor %vm3278, %vm3279
        %v3281 = vsel %vm3280, %v3273, %v3277
        %v3282 = vand.u32 2147483647, %v2603
        %vm3283 = vcmp.eq.f32.partialorder %v3282, 8.507059e+37
        %v3284 = vand.u32 %v2603, 2147483648
        %v3285 = vor.u32 1.1754944e-38, %v3284
        %v3286 = vsel %vm3283, %v3285, %v3281
        %v3287 = vmul.f32 %v2280, %v3286
        %v3288 = vrcp.pop %v2606
        %v3289 = vmul.f32 %v2606, %v3288
        %v3290 = vsub.f32 1.0, %v3289
        %v3291 = vmul.f32 %v3288, %v3290
        %v3292 = vadd.f32 %v3288, %v3291
        %vm3293 = vweird.f32 %v2606
        %vm3294 = vweird.f32 %v3288
        %vm3295 = vmor %vm3293, %vm3294
        %v3296 = vsel %vm3295, %v3288, %v3292
        %v3297 = vand.u32 2147483647, %v2606
        %vm3298 = vcmp.eq.f32.partialorder %v3297, 8.507059e+37
        %v3299 = vand.u32 %v2606, 2147483648
        %v3300 = vor.u32 1.1754944e-38, %v3299
        %v3301 = vsel %vm3298, %v3300, %v3296
        %v3302 = vmul.f32 %v2283, %v3301
        %v3303 = vrcp.pop %v2609
        %v3304 = vmul.f32 %v2609, %v3303
        %v3305 = vsub.f32 1.0, %v3304
        %v3306 = vmul.f32 %v3303, %v3305
        %v3307 = vadd.f32 %v3303, %v3306
        %vm3308 = vweird.f32 %v2609
        %vm3309 = vweird.f32 %v3303
        %vm3310 = vmor %vm3308, %vm3309
        %v3311 = vsel %vm3310, %v3303, %v3307
        %v3312 = vand.u32 2147483647, %v2609
        %vm3313 = vcmp.eq.f32.partialorder %v3312, 8.507059e+37
        %v3314 = vand.u32 %v2609, 2147483648
        %v3315 = vor.u32 1.1754944e-38, %v3314
        %v3316 = vsel %vm3313, %v3315, %v3311
        %v3317 = vmul.f32 %v2286, %v3316
        %v3318 = vrcp.pop %v2612
        %v3319 = vmul.f32 %v2612, %v3318
        %v3320 = vsub.f32 1.0, %v3319
        %v3321 = vmul.f32 %v3318, %v3320
        %v3322 = vadd.f32 %v3318, %v3321
        %vm3323 = vweird.f32 %v2612
        %vm3324 = vweird.f32 %v3318
        %vm3325 = vmor %vm3323, %vm3324
        %v3326 = vsel %vm3325, %v3318, %v3322
        %v3327 = vand.u32 2147483647, %v2612
        %vm3328 = vcmp.eq.f32.partialorder %v3327, 8.507059e+37
        %v3329 = vand.u32 %v2612, 2147483648
        %v3330 = vor.u32 1.1754944e-38, %v3329
        %v3331 = vsel %vm3328, %v3330, %v3326
        %v3332 = vmul.f32 %v2289, %v3331
        %v3333 = vrcp.pop %v2615
        %v3334 = vmul.f32 %v2615, %v3333
        %v3335 = vsub.f32 1.0, %v3334
        %v3336 = vmul.f32 %v3333, %v3335
        %v3337 = vadd.f32 %v3333, %v3336
        %vm3338 = vweird.f32 %v2615
        %vm3339 = vweird.f32 %v3333
        %vm3340 = vmor %vm3338, %vm3339
        %v3341 = vsel %vm3340, %v3333, %v3337
        %v3342 = vand.u32 2147483647, %v2615
        %vm3343 = vcmp.eq.f32.partialorder %v3342, 8.507059e+37
        %v3344 = vand.u32 %v2615, 2147483648
        %v3345 = vor.u32 1.1754944e-38, %v3344
        %v3346 = vsel %vm3343, %v3345, %v3341
        %v3347 = vmul.f32 %v2292, %v3346
        %v3348 = vrcp.pop %v2618
        %v3349 = vmul.f32 %v2618, %v3348
        %v3350 = vsub.f32 1.0, %v3349
        %v3351 = vmul.f32 %v3348, %v3350
        %v3352 = vadd.f32 %v3348, %v3351
        %vm3353 = vweird.f32 %v2618
        %vm3354 = vweird.f32 %v3348
        %vm3355 = vmor %vm3353, %vm3354
        %v3356 = vsel %vm3355, %v3348, %v3352
        %v3357 = vand.u32 2147483647, %v2618
        %vm3358 = vcmp.eq.f32.partialorder %v3357, 8.507059e+37
        %v3359 = vand.u32 %v2618, 2147483648
        %v3360 = vor.u32 1.1754944e-38, %v3359
        %v3361 = vsel %vm3358, %v3360, %v3356
        %v3362 = vmul.f32 %v2295, %v3361
        %v3363 = vrcp.pop %v2621
        %v3364 = vmul.f32 %v2621, %v3363
        %v3365 = vsub.f32 1.0, %v3364
        %v3366 = vmul.f32 %v3363, %v3365
        %v3367 = vadd.f32 %v3363, %v3366
        %vm3368 = vweird.f32 %v2621
        %vm3369 = vweird.f32 %v3363
        %vm3370 = vmor %vm3368, %vm3369
        %v3371 = vsel %vm3370, %v3363, %v3367
        %v3372 = vand.u32 2147483647, %v2621
        %vm3373 = vcmp.eq.f32.partialorder %v3372, 8.507059e+37
        %v3374 = vand.u32 %v2621, 2147483648
        %v3375 = vor.u32 1.1754944e-38, %v3374
        %v3376 = vsel %vm3373, %v3375, %v3371
        %v3377 = vmul.f32 %v2298, %v3376
        %v3378 = vrcp.pop %v2624
        %v3379 = vmul.f32 %v2624, %v3378
        %v3380 = vsub.f32 1.0, %v3379
        %v3381 = vmul.f32 %v3378, %v3380
        %v3382 = vadd.f32 %v3378, %v3381
        %vm3383 = vweird.f32 %v2624
        %vm3384 = vweird.f32 %v3378
        %vm3385 = vmor %vm3383, %vm3384
        %v3386 = vsel %vm3385, %v3378, %v3382
        %v3387 = vand.u32 2147483647, %v2624
        %vm3388 = vcmp.eq.f32.partialorder %v3387, 8.507059e+37
        %v3389 = vand.u32 %v2624, 2147483648
        %v3390 = vor.u32 1.1754944e-38, %v3389
        %v3391 = vsel %vm3388, %v3390, %v3386
        %v3392 = vmul.f32 %v2301, %v3391
        %v3393 = vrcp.pop %v2627
        %v3394 = vmul.f32 %v2627, %v3393
        %v3395 = vsub.f32 1.0, %v3394
        %v3396 = vmul.f32 %v3393, %v3395
        %v3397 = vadd.f32 %v3393, %v3396
        %vm3398 = vweird.f32 %v2627
        %vm3399 = vweird.f32 %v3393
        %vm3400 = vmor %vm3398, %vm3399
        %v3401 = vsel %vm3400, %v3393, %v3397
        %v3402 = vand.u32 2147483647, %v2627
        %vm3403 = vcmp.eq.f32.partialorder %v3402, 8.507059e+37
        %v3404 = vand.u32 %v2627, 2147483648
        %v3405 = vor.u32 1.1754944e-38, %v3404
        %v3406 = vsel %vm3403, %v3405, %v3401
        %v3407 = vmul.f32 %v2369, %v3406
        %v3408 = vrcp.pop %v2630
        %v3409 = vmul.f32 %v2630, %v3408
        %v3410 = vsub.f32 1.0, %v3409
        %v3411 = vmul.f32 %v3408, %v3410
        %v3412 = vadd.f32 %v3408, %v3411
        %vm3413 = vweird.f32 %v2630
        %vm3414 = vweird.f32 %v3408
        %vm3415 = vmor %vm3413, %vm3414
        %v3416 = vsel %vm3415, %v3408, %v3412
        %v3417 = vand.u32 2147483647, %v2630
        %vm3418 = vcmp.eq.f32.partialorder %v3417, 8.507059e+37
        %v3419 = vand.u32 %v2630, 2147483648
        %v3420 = vor.u32 1.1754944e-38, %v3419
        %v3421 = vsel %vm3418, %v3420, %v3416
        %v3422 = vmul.f32 %v2372, %v3421
        %v3423 = vrcp.pop %v2633
        %v3424 = vmul.f32 %v2633, %v3423
        %v3425 = vsub.f32 1.0, %v3424
        %v3426 = vmul.f32 %v3423, %v3425
        %v3427 = vadd.f32 %v3423, %v3426
        %vm3428 = vweird.f32 %v2633
        %vm3429 = vweird.f32 %v3423
        %vm3430 = vmor %vm3428, %vm3429
        %v3431 = vsel %vm3430, %v3423, %v3427
        %v3432 = vand.u32 2147483647, %v2633
        %vm3433 = vcmp.eq.f32.partialorder %v3432, 8.507059e+37
        %v3434 = vand.u32 %v2633, 2147483648
        %v3435 = vor.u32 1.1754944e-38, %v3434
        %v3436 = vsel %vm3433, %v3435, %v3431
        %v3437 = vmul.f32 %v2375, %v3436
        %v3438 = vrcp.pop %v2636
        %v3439 = vmul.f32 %v2636, %v3438
        %v3440 = vsub.f32 1.0, %v3439
        %v3441 = vmul.f32 %v3438, %v3440
        %v3442 = vadd.f32 %v3438, %v3441
        %vm3443 = vweird.f32 %v2636
        %vm3444 = vweird.f32 %v3438
        %vm3445 = vmor %vm3443, %vm3444
        %v3446 = vsel %vm3445, %v3438, %v3442
        %v3447 = vand.u32 2147483647, %v2636
        %vm3448 = vcmp.eq.f32.partialorder %v3447, 8.507059e+37
        %v3449 = vand.u32 %v2636, 2147483648
        %v3450 = vor.u32 1.1754944e-38, %v3449
        %v3451 = vsel %vm3448, %v3450, %v3446
        %v3452 = vmul.f32 %v2378, %v3451
        %v3453 = vrcp.pop %v2639
        %v3454 = vmul.f32 %v2639, %v3453
        %v3455 = vsub.f32 1.0, %v3454
        %v3456 = vmul.f32 %v3453, %v3455
        %v3457 = vadd.f32 %v3453, %v3456
        %vm3458 = vweird.f32 %v2639
        %vm3459 = vweird.f32 %v3453
        %vm3460 = vmor %vm3458, %vm3459
        %v3461 = vsel %vm3460, %v3453, %v3457
        %v3462 = vand.u32 2147483647, %v2639
        %vm3463 = vcmp.eq.f32.partialorder %v3462, 8.507059e+37
        %v3464 = vand.u32 %v2639, 2147483648
        %v3465 = vor.u32 1.1754944e-38, %v3464
        %v3466 = vsel %vm3463, %v3465, %v3461
        %v3467 = vmul.f32 %v2381, %v3466
        %v3468 = vrcp.pop %v2642
        %v3469 = vmul.f32 %v2642, %v3468
        %v3470 = vsub.f32 1.0, %v3469
        %v3471 = vmul.f32 %v3468, %v3470
        %v3472 = vadd.f32 %v3468, %v3471
        %vm3473 = vweird.f32 %v2642
        %vm3474 = vweird.f32 %v3468
        %vm3475 = vmor %vm3473, %vm3474
        %v3476 = vsel %vm3475, %v3468, %v3472
        %v3477 = vand.u32 2147483647, %v2642
        %vm3478 = vcmp.eq.f32.partialorder %v3477, 8.507059e+37
        %v3479 = vand.u32 %v2642, 2147483648
        %v3480 = vor.u32 1.1754944e-38, %v3479
        %v3481 = vsel %vm3478, %v3480, %v3476
        %v3482 = vmul.f32 %v2384, %v3481
        %v3483 = vrcp.pop %v2645
        %v3484 = vmul.f32 %v2645, %v3483
        %v3485 = vsub.f32 1.0, %v3484
        %v3486 = vmul.f32 %v3483, %v3485
        %v3487 = vadd.f32 %v3483, %v3486
        %vm3488 = vweird.f32 %v2645
        %vm3489 = vweird.f32 %v3483
        %vm3490 = vmor %vm3488, %vm3489
        %v3491 = vsel %vm3490, %v3483, %v3487
        %v3492 = vand.u32 2147483647, %v2645
        %vm3493 = vcmp.eq.f32.partialorder %v3492, 8.507059e+37
        %v3494 = vand.u32 %v2645, 2147483648
        %v3495 = vor.u32 1.1754944e-38, %v3494
        %v3496 = vsel %vm3493, %v3495, %v3491
        %v3497 = vmul.f32 %v2387, %v3496
        %v3498 = vrcp.pop %v2648
        %v3499 = vmul.f32 %v2648, %v3498
        %v3500 = vsub.f32 1.0, %v3499
        %v3501 = vmul.f32 %v3498, %v3500
        %v3502 = vadd.f32 %v3498, %v3501
        %vm3503 = vweird.f32 %v2648
        %vm3504 = vweird.f32 %v3498
        %vm3505 = vmor %vm3503, %vm3504
        %v3506 = vsel %vm3505, %v3498, %v3502
        %v3507 = vand.u32 2147483647, %v2648
        %vm3508 = vcmp.eq.f32.partialorder %v3507, 8.507059e+37
        %v3509 = vand.u32 %v2648, 2147483648
        %v3510 = vor.u32 1.1754944e-38, %v3509
        %v3511 = vsel %vm3508, %v3510, %v3506
        %v3512 = vmul.f32 %v2390, %v3511
        %v3513 = vrcp.pop %v2651
        %v3514 = vmul.f32 %v2651, %v3513
        %v3515 = vsub.f32 1.0, %v3514
        %v3516 = vmul.f32 %v3513, %v3515
        %v3517 = vadd.f32 %v3513, %v3516
        %vm3518 = vweird.f32 %v2651
        %vm3519 = vweird.f32 %v3513
        %vm3520 = vmor %vm3518, %vm3519
        %v3521 = vsel %vm3520, %v3513, %v3517
        %v3522 = vand.u32 2147483647, %v2651
        %vm3523 = vcmp.eq.f32.partialorder %v3522, 8.507059e+37
        %v3524 = vand.u32 %v2651, 2147483648
        %v3525 = vor.u32 1.1754944e-38, %v3524
        %v3526 = vsel %vm3523, %v3525, %v3521
        %v3527 = vmul.f32 %v2458, %v3526
        %v3528 = vrcp.pop %v2654
        %v3529 = vmul.f32 %v2654, %v3528
        %v3530 = vsub.f32 1.0, %v3529
        %v3531 = vmul.f32 %v3528, %v3530
        %v3532 = vadd.f32 %v3528, %v3531
        %vm3533 = vweird.f32 %v2654
        %vm3534 = vweird.f32 %v3528
        %vm3535 = vmor %vm3533, %vm3534
        %v3536 = vsel %vm3535, %v3528, %v3532
        %v3537 = vand.u32 2147483647, %v2654
        %vm3538 = vcmp.eq.f32.partialorder %v3537, 8.507059e+37
        %v3539 = vand.u32 %v2654, 2147483648
        %v3540 = vor.u32 1.1754944e-38, %v3539
        %v3541 = vsel %vm3538, %v3540, %v3536
        %v3542 = vmul.f32 %v2461, %v3541
        %v3543 = vrcp.pop %v2657
        %v3544 = vmul.f32 %v2657, %v3543
        %v3545 = vsub.f32 1.0, %v3544
        %v3546 = vmul.f32 %v3543, %v3545
        %v3547 = vadd.f32 %v3543, %v3546
        %vm3548 = vweird.f32 %v2657
        %vm3549 = vweird.f32 %v3543
        %vm3550 = vmor %vm3548, %vm3549
        %v3551 = vsel %vm3550, %v3543, %v3547
        %v3552 = vand.u32 2147483647, %v2657
        %vm3553 = vcmp.eq.f32.partialorder %v3552, 8.507059e+37
        %v3554 = vand.u32 %v2657, 2147483648
        %v3555 = vor.u32 1.1754944e-38, %v3554
        %v3556 = vsel %vm3553, %v3555, %v3551
        %v3557 = vmul.f32 %v2464, %v3556
        %v3558 = vrcp.pop %v2660
        %v3559 = vmul.f32 %v2660, %v3558
        %v3560 = vsub.f32 1.0, %v3559
        %v3561 = vmul.f32 %v3558, %v3560
        %v3562 = vadd.f32 %v3558, %v3561
        %vm3563 = vweird.f32 %v2660
        %vm3564 = vweird.f32 %v3558
        %vm3565 = vmor %vm3563, %vm3564
        %v3566 = vsel %vm3565, %v3558, %v3562
        %v3567 = vand.u32 2147483647, %v2660
        %vm3568 = vcmp.eq.f32.partialorder %v3567, 8.507059e+37
        %v3569 = vand.u32 %v2660, 2147483648
        %v3570 = vor.u32 1.1754944e-38, %v3569
        %v3571 = vsel %vm3568, %v3570, %v3566
        %v3572 = vmul.f32 %v2467, %v3571
        %v3573 = vrcp.pop %v2663
        %v3574 = vmul.f32 %v2663, %v3573
        %v3575 = vsub.f32 1.0, %v3574
        %v3576 = vmul.f32 %v3573, %v3575
        %v3577 = vadd.f32 %v3573, %v3576
        %vm3578 = vweird.f32 %v2663
        %vm3579 = vweird.f32 %v3573
        %vm3580 = vmor %vm3578, %vm3579
        %v3581 = vsel %vm3580, %v3573, %v3577
        %v3582 = vand.u32 2147483647, %v2663
        %vm3583 = vcmp.eq.f32.partialorder %v3582, 8.507059e+37
        %v3584 = vand.u32 %v2663, 2147483648
        %v3585 = vor.u32 1.1754944e-38, %v3584
        %v3586 = vsel %vm3583, %v3585, %v3581
        %v3587 = vmul.f32 %v2470, %v3586
        %v3588 = vrcp.pop %v2666
        %v3589 = vmul.f32 %v2666, %v3588
        %v3590 = vsub.f32 1.0, %v3589
        %v3591 = vmul.f32 %v3588, %v3590
        %v3592 = vadd.f32 %v3588, %v3591
        %vm3593 = vweird.f32 %v2666
        %vm3594 = vweird.f32 %v3588
        %vm3595 = vmor %vm3593, %vm3594
        %v3596 = vsel %vm3595, %v3588, %v3592
        %v3597 = vand.u32 2147483647, %v2666
        %vm3598 = vcmp.eq.f32.partialorder %v3597, 8.507059e+37
        %v3599 = vand.u32 %v2666, 2147483648
        %v3600 = vor.u32 1.1754944e-38, %v3599
        %v3601 = vsel %vm3598, %v3600, %v3596
        %v3602 = vmul.f32 %v2473, %v3601
        %v3603 = vrcp.pop %v2669
        %v3604 = vmul.f32 %v2669, %v3603
        %v3605 = vsub.f32 1.0, %v3604
        %v3606 = vmul.f32 %v3603, %v3605
        %v3607 = vadd.f32 %v3603, %v3606
        %vm3608 = vweird.f32 %v2669
        %vm3609 = vweird.f32 %v3603
        %vm3610 = vmor %vm3608, %vm3609
        %v3611 = vsel %vm3610, %v3603, %v3607
        %v3612 = vand.u32 2147483647, %v2669
        %vm3613 = vcmp.eq.f32.partialorder %v3612, 8.507059e+37
        %v3614 = vand.u32 %v2669, 2147483648
        %v3615 = vor.u32 1.1754944e-38, %v3614
        %v3616 = vsel %vm3613, %v3615, %v3611
        %v3617 = vmul.f32 %v2476, %v3616
        %v3618 = vrcp.pop %v2672
        %v3619 = vmul.f32 %v2672, %v3618
        %v3620 = vsub.f32 1.0, %v3619
        %v3621 = vmul.f32 %v3618, %v3620
        %v3622 = vadd.f32 %v3618, %v3621
        %vm3623 = vweird.f32 %v2672
        %vm3624 = vweird.f32 %v3618
        %vm3625 = vmor %vm3623, %vm3624
        %v3626 = vsel %vm3625, %v3618, %v3622
        %v3627 = vand.u32 2147483647, %v2672
        %vm3628 = vcmp.eq.f32.partialorder %v3627, 8.507059e+37
        %v3629 = vand.u32 %v2672, 2147483648
        %v3630 = vor.u32 1.1754944e-38, %v3629
        %v3631 = vsel %vm3628, %v3630, %v3626
        %v3632 = vmul.f32 %v2479, %v3631
        %3641 = vrot.lane.b32.xlu0 %v2807, 4
        %v3642 = vpop.permute.xlu0 %3641
        %3643 = vrot.lane.b32.xlu0 %v2822, 4
        %v3644 = vpop.permute.xlu0 %3643
        %3645 = vrot.lane.b32.xlu0 %v2837, 4
        %v3646 = vpop.permute.xlu0 %3645
        %3647 = vrot.lane.b32.xlu0 %v2852, 4
        %v3648 = vpop.permute.xlu0 %3647
        %3649 = vrot.lane.b32.xlu0 %v2867, 4
        %v3650 = vpop.permute.xlu0 %3649
        %3651 = vrot.lane.b32.xlu0 %v2882, 4
        %v3652 = vpop.permute.xlu0 %3651
        %3653 = vrot.lane.b32.xlu0 %v2897, 4
        %v3654 = vpop.permute.xlu0 %3653
        %3655 = vrot.lane.b32.xlu0 %v2912, 4
        %v3656 = vpop.permute.xlu0 %3655
        %3673 = vrot.lane.b32.xlu0 %v2927, 8
        %v3674 = vpop.permute.xlu0 %3673
        %3675 = vrot.lane.b32.xlu0 %v2942, 8
        %v3676 = vpop.permute.xlu0 %3675
        %3677 = vrot.lane.b32.xlu0 %v2957, 8
        %v3678 = vpop.permute.xlu0 %3677
        %3679 = vrot.lane.b32.xlu0 %v2972, 8
        %v3680 = vpop.permute.xlu0 %3679
        %3681 = vrot.lane.b32.xlu0 %v2987, 8
        %v3682 = vpop.permute.xlu0 %3681
        %3683 = vrot.lane.b32.xlu0 %v3002, 8
        %v3684 = vpop.permute.xlu0 %3683
        %3685 = vrot.lane.b32.xlu0 %v3017, 8
        %v3686 = vpop.permute.xlu0 %3685
        %3687 = vrot.lane.b32.xlu0 %v3032, 8
        %v3688 = vpop.permute.xlu0 %3687
        %3705 = vrot.lane.b32.xlu0 %v3047, 12
        %v3706 = vpop.permute.xlu0 %3705
        %3707 = vrot.lane.b32.xlu0 %v3062, 12
        %v3708 = vpop.permute.xlu0 %3707
        %3709 = vrot.lane.b32.xlu0 %v3077, 12
        %v3710 = vpop.permute.xlu0 %3709
        %3711 = vrot.lane.b32.xlu0 %v3092, 12
        %v3712 = vpop.permute.xlu0 %3711
        %3713 = vrot.lane.b32.xlu0 %v3107, 12
        %v3714 = vpop.permute.xlu0 %3713
        %3715 = vrot.lane.b32.xlu0 %v3122, 12
        %v3716 = vpop.permute.xlu0 %3715
        %3717 = vrot.lane.b32.xlu0 %v3137, 12
        %v3718 = vpop.permute.xlu0 %3717
        %3719 = vrot.lane.b32.xlu0 %v3152, 12
        %v3720 = vpop.permute.xlu0 %3719
        %3737 = vrot.lane.b32.xlu0 %v3167, 16
        %v3738 = vpop.permute.xlu0 %3737
        %3739 = vrot.lane.b32.xlu0 %v3182, 16
        %v3740 = vpop.permute.xlu0 %3739
        %3741 = vrot.lane.b32.xlu0 %v3197, 16
        %v3742 = vpop.permute.xlu0 %3741
        %3743 = vrot.lane.b32.xlu0 %v3212, 16
        %v3744 = vpop.permute.xlu0 %3743
        %3745 = vrot.lane.b32.xlu0 %v3227, 16
        %v3746 = vpop.permute.xlu0 %3745
        %3747 = vrot.lane.b32.xlu0 %v3242, 16
        %v3748 = vpop.permute.xlu0 %3747
        %3749 = vrot.lane.b32.xlu0 %v3257, 16
        %v3750 = vpop.permute.xlu0 %3749
        %3751 = vrot.lane.b32.xlu0 %v3272, 16
        %v3752 = vpop.permute.xlu0 %3751
        %3769 = vrot.lane.b32.xlu0 %v3287, 20
        %v3770 = vpop.permute.xlu0 %3769
        %3771 = vrot.lane.b32.xlu0 %v3302, 20
        %v3772 = vpop.permute.xlu0 %3771
        %3773 = vrot.lane.b32.xlu0 %v3317, 20
        %v3774 = vpop.permute.xlu0 %3773
        %3775 = vrot.lane.b32.xlu0 %v3332, 20
        %v3776 = vpop.permute.xlu0 %3775
        %3777 = vrot.lane.b32.xlu0 %v3347, 20
        %v3778 = vpop.permute.xlu0 %3777
        %3779 = vrot.lane.b32.xlu0 %v3362, 20
        %v3780 = vpop.permute.xlu0 %3779
        %3781 = vrot.lane.b32.xlu0 %v3377, 20
        %v3782 = vpop.permute.xlu0 %3781
        %3783 = vrot.lane.b32.xlu0 %v3392, 20
        %v3784 = vpop.permute.xlu0 %3783
        %3801 = vrot.lane.b32.xlu0 %v3407, 24
        %v3802 = vpop.permute.xlu0 %3801
        %3803 = vrot.lane.b32.xlu0 %v3422, 24
        %v3804 = vpop.permute.xlu0 %3803
        %3805 = vrot.lane.b32.xlu0 %v3437, 24
        %v3806 = vpop.permute.xlu0 %3805
        %3807 = vrot.lane.b32.xlu0 %v3452, 24
        %v3808 = vpop.permute.xlu0 %3807
        %3809 = vrot.lane.b32.xlu0 %v3467, 24
        %v3810 = vpop.permute.xlu0 %3809
        %3811 = vrot.lane.b32.xlu0 %v3482, 24
        %v3812 = vpop.permute.xlu0 %3811
        %3813 = vrot.lane.b32.xlu0 %v3497, 24
        %v3814 = vpop.permute.xlu0 %3813
        %3815 = vrot.lane.b32.xlu0 %v3512, 24
        %v3816 = vpop.permute.xlu0 %3815
        %3833 = vrot.lane.b32.xlu0 %v3527, 28
        %v3834 = vpop.permute.xlu0 %3833
        %3835 = vrot.lane.b32.xlu0 %v3542, 28
        %v3836 = vpop.permute.xlu0 %3835
        %3837 = vrot.lane.b32.xlu0 %v3557, 28
        %v3838 = vpop.permute.xlu0 %3837
        %3839 = vrot.lane.b32.xlu0 %v3572, 28
        %v3840 = vpop.permute.xlu0 %3839
        %3841 = vrot.lane.b32.xlu0 %v3587, 28
        %v3842 = vpop.permute.xlu0 %3841
        %3843 = vrot.lane.b32.xlu0 %v3602, 28
        %v3844 = vpop.permute.xlu0 %3843
        %3845 = vrot.lane.b32.xlu0 %v3617, 28
        %v3846 = vpop.permute.xlu0 %3845
        %3847 = vrot.lane.b32.xlu0 %v3632, 28
        %v3848 = vpop.permute.xlu0 %3847
        %v3857 = vsel %vm687, %v2687, %v3642
        %v3858 = vsel %vm687, %v2702, %v3644
        %v3859 = vsel %vm687, %v2717, %v3646
        %v3860 = vsel %vm687, %v2732, %v3648
        %v3861 = vsel %vm687, %v2747, %v3650
        %v3862 = vsel %vm687, %v2762, %v3652
        %v3863 = vsel %vm687, %v2777, %v3654
        %v3864 = vsel %vm687, %v2792, %v3656
        %vm3865 = vcmask 64512
        %v3866 = vsel %vm3865, %v3857, %v3674
        %v3867 = vsel %vm3865, %v3858, %v3676
        %v3868 = vsel %vm3865, %v3859, %v3678
        %v3869 = vsel %vm3865, %v3860, %v3680
        %v3870 = vsel %vm3865, %v3861, %v3682
        %v3871 = vsel %vm3865, %v3862, %v3684
        %v3872 = vsel %vm3865, %v3863, %v3686
        %v3873 = vsel %vm3865, %v3864, %v3688
        %vm3874 = vcmask 97280
        %v3875 = vsel %vm3874, %v3866, %v3706
        %v3876 = vsel %vm3874, %v3867, %v3708
        %v3877 = vsel %vm3874, %v3868, %v3710
        %v3878 = vsel %vm3874, %v3869, %v3712
        %v3879 = vsel %vm3874, %v3870, %v3714
        %v3880 = vsel %vm3874, %v3871, %v3716
        %v3881 = vsel %vm3874, %v3872, %v3718
        %v3882 = vsel %vm3874, %v3873, %v3720
        %vm3883 = vcmask 130048
        %v3884 = vsel %vm3883, %v3875, %v3738
        %v3885 = vsel %vm3883, %v3876, %v3740
        %v3886 = vsel %vm3883, %v3877, %v3742
        %v3887 = vsel %vm3883, %v3878, %v3744
        %v3888 = vsel %vm3883, %v3879, %v3746
        %v3889 = vsel %vm3883, %v3880, %v3748
        %v3890 = vsel %vm3883, %v3881, %v3750
        %v3891 = vsel %vm3883, %v3882, %v3752
        %vm3892 = vcmask 162816
        %v3893 = vsel %vm3892, %v3884, %v3770
        %v3894 = vsel %vm3892, %v3885, %v3772
        %v3895 = vsel %vm3892, %v3886, %v3774
        %v3896 = vsel %vm3892, %v3887, %v3776
        %v3897 = vsel %vm3892, %v3888, %v3778
        %v3898 = vsel %vm3892, %v3889, %v3780
        %v3899 = vsel %vm3892, %v3890, %v3782
        %v3900 = vsel %vm3892, %v3891, %v3784
        %vm3901 = vcmask 195584
        %v3902 = vsel %vm3901, %v3893, %v3802
        %v3903 = vsel %vm3901, %v3894, %v3804
        %v3904 = vsel %vm3901, %v3895, %v3806
        %v3905 = vsel %vm3901, %v3896, %v3808
        %v3906 = vsel %vm3901, %v3897, %v3810
        %v3907 = vsel %vm3901, %v3898, %v3812
        %v3908 = vsel %vm3901, %v3899, %v3814
        %v3909 = vsel %vm3901, %v3900, %v3816
        %vm3910 = vcmask 228352
        %v3911 = vsel %vm3910, %v3902, %v3834
        %v3912 = vsel %vm3910, %v3903, %v3836
        %v3913 = vsel %vm3910, %v3904, %v3838
        %v3914 = vsel %vm3910, %v3905, %v3840
        %v3915 = vsel %vm3910, %v3906, %v3842
        %v3916 = vsel %vm3910, %v3907, %v3844
        %v3917 = vsel %vm3910, %v3908, %v3846
        %v3918 = vsel %vm3910, %v3909, %v3848
        %3919 = vst.msk [vmem:[%s212] sm:$0xff] %vm280, %v3911
        %3920 = vst.msk [vmem:[%s212 + $0x8] sm:$0xff] %vm280, %v3912
        %3921 = vst.msk [vmem:[%s212 + $0x10] sm:$0xff] %vm280, %v3913
        %3922 = vst.msk [vmem:[%s212 + $0x18] sm:$0xff] %vm280, %v3914
        %3923 = vst.msk [vmem:[%s212 + $0x20] sm:$0xff] %vm280, %v3915
        %3924 = vst.msk [vmem:[%s212 + $0x28] sm:$0xff] %vm280, %v3916
        %3925 = vst.msk [vmem:[%s212 + $0x30] sm:$0xff] %vm280, %v3917
        %3926 = vst.msk [vmem:[%s212 + $0x38] sm:$0xff] %vm280, %v3918
        %p3927 = scmp.lt.s32.totalorder %s16, 1
        %s3928 = scalar_select %p3927, %s16, 1
        %s3929 = smul.addr %s3928, 8
        %s3930 = smul.addr %s3929, 8
        %s3931 = scalar_lea.vmem %s4, %s3930
        // Predicated region
        $region41: #{tpu_custom_call.1} parent=35 // pred_check
          %p3932 = pneg %p123
        $region42: #{tpu_custom_call.1} parent=35 // pred_check_branch
          %3934 = sbr.rel (%p3932) target = $region44
        $region43: #{tpu_custom_call.1} parent=35 // pred_region
          _
        $region44: #{tpu_custom_call.1} parent=35 // pred_fallthru
          _
      $region36: #{tpu_custom_call.1} parent=5 // pred_fallthru
        _
      %p3935 = scmp.le.s32.totalorder 2, %s11
      // Predicated region
      $region45: #{tpu_custom_call.1} parent=5 // pred_check
        %p3936 = pneg %p3935
      $region46: #{tpu_custom_call.1} parent=5 // pred_check_branch
        %3938 = sbr.rel (%p3936) target = $region48
      $region47: #{tpu_custom_call.1} parent=5 // pred_region
        %s3939 = ssub.s32 %s11, 2
        // Predicated region
        $region49: #{tpu_custom_call.1} parent=47 // pred_check
          %p3940 = pneg %p129
        $region50: #{tpu_custom_call.1} parent=47 // pred_check_branch
          %3942 = sbr.rel (%p3940) target = $region52
        $region51: #{tpu_custom_call.1} parent=47 // pred_region
          %p3943 = scmp.lt.s32.totalorder %s17, 1
          %s3944 = scalar_select %p3943, %s17, 1
          %s3945 = smul.addr %s3944, 8
          %s3946 = smul.addr %s3945, 8
          %s3947 = scalar_lea.vmem %s4, %s3946
        $region52: #{tpu_custom_call.1} parent=47 // pred_fallthru
          _
      $region48: #{tpu_custom_call.1} parent=5 // pred_fallthru
        _
    $region6: #{tpu_custom_call.1} parent=1 // loop_footer
      %s15 = sadd.s32 1, %s11
    $region7: #{tpu_custom_call.1} parent=1 // loop_footer_branch
      %10 = sbr.rel target = $region3
    $region8: #{tpu_custom_call.1} parent=1 // loop_exit
      _
    %3948 = vsyncpa [#allocation3], 1
    %s3949 = scalar_lea.sflag [#allocation3], 1
    %3950 = vsyncpa %s3949, 1

</llo_original>
